<compile_context>
chip_gen: v7x
topology: tpu7x:2x2x1
jax: 0.10.0
libtpu: 0.0.40
codegen_flags: <defaults>
</compile_context>

<pallas_src>
import jax
import jax.numpy as jnp
from jax import lax
from jax.experimental import pallas as pl
from jax.experimental.pallas import tpu as pltpu


def _silu(x):
    return x * jax.nn.sigmoid(x)


# --------------------------------------------------------------------------
# Fused kernel
# --------------------------------------------------------------------------
def _make_downsample_kernel(fused_out):
    """Builds the kernel; `fused_out` selects one (B,Ho,Wo,2C) output vs two."""

    def kernel(x_ref, w1_ref, b1_ref, w2a_ref, b2a_ref, w2b_ref, b2b_ref,
               *outs_and_scratch):
        if fused_out:
            o_ref, act_ref, acc_ref = outs_and_scratch
        else:
            o1_ref, o2_ref, act_ref, acc_ref = outs_and_scratch

        _, H, W, C = x_ref.shape
        Ho, Wo = H // 2, W // 2
        f32, bf16 = jnp.float32, jnp.bfloat16

        # ---- zero only the read-but-never-written border of the parity-split
        # activation scratch. Layout act_ref[rp, cp, r, c, :]:
        #   rp=0: even input rows  (row r   <- input row 2r,   r in [0,Ho))
        #   rp=1: odd  input rows  (row r   <- input row 2r-1, r in [1,Ho]); row 0 = top zero pad
        #   cp=0: even input cols  (col 8+c <- input col 2c)
        #   cp=1: odd  input cols  (col 8+c <- input col 2c+1); col 7 = left zero pad
        # Redone every grid step so it stays correct when the batch axis is
        # split across TensorCores (megacore).
        zrow = jnp.zeros((Wo + 8, C), bf16)
        act_ref[1, 0, 0, :, :] = zrow
        act_ref[1, 1, 0, :, :] = zrow
        zcol = jnp.zeros((Ho + 1, 8, C), bf16)
        act_ref[0, 1, :, 0:8, :] = zcol
        act_ref[1, 1, :, 0:8, :] = zcol

        # ---- single phase split of the input, shared by both branches -------
        x = x_ref[0]                                  # (H, W, C) f32
        xr = x.reshape(Ho, 2, Wo, 2, C)
        x_ee = xr[:, 0, :, 0, :]                      # even rows, even cols
        x_eo = xr[:, 0, :, 1, :]                      # even rows, odd  cols
        x_oe = xr[:, 1, :, 0, :]                      # odd  rows, even cols
        x_oo = xr[:, 1, :, 1, :]                      # odd  rows, odd  cols

        # ---- branch 1: maxpool 2x2 s2 (f32 VPU) -> 1x1 conv (bf16 MXU) + SiLU
        m = jnp.maximum(jnp.maximum(x_ee, x_eo), jnp.maximum(x_oe, x_oo))
        y1 = jnp.dot(m.reshape(Ho * Wo, C).astype(bf16), w1_ref[...],
                     preferred_element_type=f32) + b1_ref[...]
        y1 = _silu(y1).reshape(Ho, Wo, C)

        # ---- branch 2 head: per-phase 1x1 conv + SiLU, stored parity-split --
        # (4 matmuls of M=Ho*Wo instead of one of M=H*W; same FLOPs, but the
        # results can be stored contiguously/aligned into their parity planes.)
        def cv2a(phase):
            y = jnp.dot(phase.reshape(Ho * Wo, C).astype(bf16), w2a_ref[...],
                        preferred_element_type=f32) + b2a_ref[...]
            return _silu(y).reshape(Ho, Wo, C).astype(bf16)

        act_ref[0, 0, 0:Ho, 8:8 + Wo, :] = cv2a(x_ee)
        act_ref[0, 1, 0:Ho, 8:8 + Wo, :] = cv2a(x_eo)
        act_ref[1, 0, 1:Ho + 1, 8:8 + Wo, :] = cv2a(x_oe)
        act_ref[1, 1, 1:Ho + 1, 8:8 + Wo, :] = cv2a(x_oo)

        # ---- branch 2 tail: 3x3 stride-2 pad-1 conv as 9 accumulated K=C
        # matmuls into a single f32 VMEM accumulator. Each tap is a plain
        # contiguous slice of a parity plane (padding handled by the zero
        # border / shifted planes).
        acc_ref[...] = jnp.zeros((Ho * Wo, C), f32)
        for kh in range(3):
            rp = 0 if kh == 1 else 1
            r0 = 1 if kh == 2 else 0
            for kw in range(3):
                cp = 0 if kw == 1 else 1
                c0 = 7 if kw == 0 else 8
                tap = act_ref[rp, cp, r0:r0 + Ho, c0:c0 + Wo, :]      # (Ho,Wo,C) bf16
                wk = w2b_ref[(kh * 3 + kw) * C:(kh * 3 + kw + 1) * C, :]
                acc_ref[...] += jnp.dot(tap.reshape(Ho * Wo, C), wk,
                                        preferred_element_type=f32)
        y3 = _silu(acc_ref[...] + b2b_ref[...]).reshape(Ho, Wo, C)

        # ---- write outputs ---------------------------------------------------
        if fused_out:
            o_ref[0, :, :, 0:C] = y1.astype(o_ref.dtype)
            o_ref[0, :, :, C:2 * C] = y3.astype(o_ref.dtype)
        else:
            o1_ref[0] = y1.astype(o1_ref.dtype)
            o2_ref[0] = y3.astype(o2_ref.dtype)

    return kernel


# --------------------------------------------------------------------------
# pallas_call wrapper (NHWC native)
# --------------------------------------------------------------------------
def _vmem_limit_bytes():
    # Leave headroom for Mosaic internal scratch + pipeline double buffers:
    # <= 64 MiB, and at most 3/4 of physical VMEM (v7x has only 64 MiB/core).
    cap = 128 * 1024 * 1024
    try:
        cap = int(pltpu.get_tpu_info().vmem_capacity_bytes)
    except Exception:
        pass
    return min(64 * 1024 * 1024, (cap * 3) // 4)


def downsample_pallas(x_nhwc, params, fuse_output=None):
    """NHWC DownSample. Returns (B,Ho,Wo,2C) if fused, else a 2-tuple of
    (B,Ho,Wo,C) branch outputs (caller concatenates on the channel axis)."""
    B, H, W, C = x_nhwc.shape
    assert H % 2 == 0 and W % 2 == 0, "DownSample requires even H and W"
    Ho, Wo = H // 2, W // 2
    if fuse_output is None:
        # A lane offset of C >= 128 is lane-aligned -> single fused output is
        # an unmasked store and kills the external concat HBM pass.
        fuse_output = (C % 128 == 0)

    if fuse_output:
        out_shape = jax.ShapeDtypeStruct((B, Ho, Wo, 2 * C), x_nhwc.dtype)
        out_specs = pl.BlockSpec((1, Ho, Wo, 2 * C), lambda b: (b, 0, 0, 0))
    else:
        out_shape = (jax.ShapeDtypeStruct((B, Ho, Wo, C), x_nhwc.dtype),
                     jax.ShapeDtypeStruct((B, Ho, Wo, C), x_nhwc.dtype))
        out_specs = (pl.BlockSpec((1, Ho, Wo, C), lambda b: (b, 0, 0, 0)),
                     pl.BlockSpec((1, Ho, Wo, C), lambda b: (b, 0, 0, 0)))

    bf16 = jnp.bfloat16
    return pl.pallas_call(
        _make_downsample_kernel(fuse_output),
        out_shape=out_shape,
        grid_spec=pltpu.PrefetchScalarGridSpec(
            num_scalar_prefetch=0,
            grid=(B,),
            in_specs=[
                pl.BlockSpec((1, H, W, C), lambda b: (b, 0, 0, 0)),
                pl.BlockSpec((C, C), lambda b: (0, 0)),        # cv1  weight (bf16)
                pl.BlockSpec((1, C), lambda b: (0, 0)),        # cv1  bias   (f32)
                pl.BlockSpec((C, C), lambda b: (0, 0)),        # cv2a weight (bf16)
                pl.BlockSpec((1, C), lambda b: (0, 0)),        # cv2a bias   (f32)
                pl.BlockSpec((9 * C, C), lambda b: (0, 0)),    # cv2b weight (bf16)
                pl.BlockSpec((1, C), lambda b: (0, 0)),        # cv2b bias   (f32)
            ],
            out_specs=out_specs,
            scratch_shapes=[
                # parity-split cv2a activation, bf16, interior at col offset 8
                pltpu.VMEM((2, 2, Ho + 1, Wo + 8, C), bf16),
                # f32 accumulator for the 3x3 s2 conv
                pltpu.VMEM((Ho * Wo, C), jnp.float32),
            ],
        ),
        compiler_params=pltpu.CompilerParams(
            dimension_semantics=("parallel",),
            vmem_limit_bytes=_vmem_limit_bytes(),
        ),
    )(x_nhwc,
      params["w_cv1"].astype(bf16), params["b_cv1"],
      params["w_cv2a"].astype(bf16), params["b_cv2a"],
      params["w_cv2b"].astype(bf16), params["b_cv2b"])


def downsample_forward(x_nchw, params):
    """PyTorch-compatible forward: x [B,C,H,W] -> out [B,2C,H//2,W//2].
    NOTE: production should keep activations NHWC end-to-end and call
    downsample_pallas directly; the transposes here only preserve the NCHW
    interface of the original module."""
    x = jnp.transpose(x_nchw, (0, 2, 3, 1))                 # NCHW -> NHWC
    y = downsample_pallas(x, params)
    if isinstance(y, (tuple, list)):
        y = jnp.concatenate(y, axis=-1)                     # channel concat (C < 128 path)
    return jnp.transpose(y, (0, 3, 1, 2))                   # NHWC -> NCHW


# --------------------------------------------------------------------------
# Deterministic parameter setup (conv weights + folded inference BatchNorm)
# --------------------------------------------------------------------------
def _fold_bn(w_oihw, gamma, beta, mean, var, eps=1e-5):
    scale = gamma / jnp.sqrt(var + eps)
    w = w_oihw * scale[:, None, None, None]
    b = beta - mean * scale
    return w, b


def init_params(key, C):
    keys = jax.random.split(key, 6)
    w1 = jax.random.normal(keys[0], (C, C, 1, 1), jnp.float32) * 0.1
    w2a = jax.random.normal(keys[1], (C, C, 1, 1), jnp.float32) * 0.1
    w2b = jax.random.normal(keys[2], (C, C, 3, 3), jnp.float32) * 0.1

    def bn_params(k):
        k1, k2, k3, k4 = jax.random.split(k, 4)
        gamma = jax.random.uniform(k1, (C,), jnp.float32, 0.5, 1.5)
        beta = jax.random.normal(k2, (C,), jnp.float32) * 0.1
        mean = jax.random.normal(k3, (C,), jnp.float32) * 0.1
        var = jax.random.uniform(k4, (C,), jnp.float32, 0.5, 1.5)
        return gamma, beta, mean, var

    w1f, b1 = _fold_bn(w1, *bn_params(keys[3]))
    w2af, b2a = _fold_bn(w2a, *bn_params(keys[4]))
    w2bf, b2b = _fold_bn(w2b, *bn_params(keys[5]))

    return dict(
        # NHWC matmul layout: [Cin, Cout] (f32 masters; cast bf16 at call site)
        w_cv1=jnp.transpose(w1f[:, :, 0, 0], (1, 0)),
        b_cv1=b1.reshape(1, C),
        w_cv2a=jnp.transpose(w2af[:, :, 0, 0], (1, 0)),
        b_cv2a=b2a.reshape(1, C),
        # [9C, Cout], row index = (kh*3 + kw)*C + cin (matches kernel tap loop)
        w_cv2b=jnp.transpose(w2bf, (2, 3, 1, 0)).reshape(9 * C, C),
        b_cv2b=b2b.reshape(1, C),
    )


# --------------------------------------------------------------------------
# Pure-JAX reference (same folded params, same bf16 operand policy)
# --------------------------------------------------------------------------
def reference_forward(x_nchw, params):
    x = jnp.transpose(x_nchw, (0, 2, 3, 1))
    C = x.shape[-1]
    bf16, f32 = jnp.bfloat16, jnp.float32
    w1 = params["w_cv1"].astype(bf16)
    w2a = params["w_cv2a"].astype(bf16)
    w2b = params["w_cv2b"].astype(bf16).reshape(3, 3, C, C)   # HWIO

    mp = lax.reduce_window(x, -jnp.inf, lax.max, (1, 2, 2, 1), (1, 2, 2, 1), "VALID")
    y1 = jnp.einsum("bhwi,io->bhwo", mp.astype(bf16), w1,
                    preferred_element_type=f32) + params["b_cv1"][0]
    y1 = _silu(y1)

    y2 = jnp.einsum("bhwi,io->bhwo", x.astype(bf16), w2a,
                    preferred_element_type=f32) + params["b_cv2a"][0]
    y2 = _silu(y2).astype(bf16)            # kernel stores the activation in bf16
    y3 = lax.conv_general_dilated(y2, w2b, window_strides=(2, 2),
                                  padding=((1, 1), (1, 1)),
                                  dimension_numbers=("NHWC", "HWIO", "NHWC"),
                                  preferred_element_type=f32)
    y3 = _silu(y3 + params["b_cv2b"][0])

    out = jnp.concatenate([y1, y3], axis=-1)
    return jnp.transpose(out, (0, 3, 1, 2))


if __name__ == "__main__":
    key = jax.random.PRNGKey(0)
    kx, kp, kx2, kp2 = jax.random.split(key, 4)

    # Small-channel demo (C < 128): two lane-dense outputs + external concat.
    B, C, H, W = 2, 4, 16, 16
    x = jax.random.normal(kx, (B, C, H, W), jnp.float32)
    params = init_params(kp, C)
    out = jax.block_until_ready(downsample_forward(x, params))
    assert out.shape == (B, 2 * C, H // 2, W // 2), out.shape
    ref = reference_forward(x, params)
    err = float(jnp.max(jnp.abs(out - ref)))
    assert err < 1e-2, f"max abs err {err}"

    # Lane-aligned channel count (C % 128 == 0): single fused (B,Ho,Wo,2C) output.
    B2, C2, H2, W2 = 1, 128, 16, 16
    x2 = jax.random.normal(kx2, (B2, C2, H2, W2), jnp.float32)
    params2 = init_params(kp2, C2)
    out2 = jax.block_until_ready(downsample_forward(x2, params2))
    assert out2.shape == (B2, 2 * C2, H2 // 2, W2 // 2), out2.shape
    ref2 = reference_forward(x2, params2)
    err2 = float(jnp.max(jnp.abs(out2 - ref2)))
    assert err2 < 1e-2, f"max abs err {err2}"

    print("KERNEL_OK")
</pallas_src>

<mosaic_0001>
module attributes {stable_mosaic.version = 11 : i64} {
  func.func @kernel(%arg0: i32, %arg1: memref<1x16x16x4xf32, #tpu.memory_space<vmem>>, %arg2: memref<4x4xbf16, #tpu.memory_space<vmem>>, %arg3: memref<1x4xf32, #tpu.memory_space<vmem>>, %arg4: memref<4x4xbf16, #tpu.memory_space<vmem>>, %arg5: memref<1x4xf32, #tpu.memory_space<vmem>>, %arg6: memref<36x4xbf16, #tpu.memory_space<vmem>>, %arg7: memref<1x4xf32, #tpu.memory_space<vmem>>, %arg8: memref<1x8x8x4xf32, #tpu.memory_space<vmem>>, %arg9: memref<1x8x8x4xf32, #tpu.memory_space<vmem>>, %arg10: memref<2x2x9x16x4xbf16, #tpu.memory_space<vmem>>, %arg11: memref<64x4xf32, #tpu.memory_space<vmem>>) attributes {dimension_semantics = [#tpu.dimension_semantics<parallel>], iteration_bounds = array<i64: 2>, scalar_prefetch = 0 : i64, scratch_operands = 2 : i64, tpu.core_type = #tpu.core_type<tc>, window_params = [{transform_indices = @transform_0, window_bounds = array<i64: 1, 16, 16, 4>}, {pipeline_mode = #tpu.pipeline_mode<synchronous>, transform_indices = @transform_1, window_bounds = array<i64: 4, 4>}, {pipeline_mode = #tpu.pipeline_mode<synchronous>, transform_indices = @transform_2, window_bounds = array<i64: 1, 4>}, {pipeline_mode = #tpu.pipeline_mode<synchronous>, transform_indices = @transform_3, window_bounds = array<i64: 4, 4>}, {pipeline_mode = #tpu.pipeline_mode<synchronous>, transform_indices = @transform_4, window_bounds = array<i64: 1, 4>}, {pipeline_mode = #tpu.pipeline_mode<synchronous>, transform_indices = @transform_5, window_bounds = array<i64: 36, 4>}, {pipeline_mode = #tpu.pipeline_mode<synchronous>, transform_indices = @transform_6, window_bounds = array<i64: 1, 4>}, {transform_indices = @transform_7, window_bounds = array<i64: 1, 8, 8, 4>}, {transform_indices = @transform_8, window_bounds = array<i64: 1, 8, 8, 4>}]} {
    %cst = arith.constant 0.000000e+00 : bf16
    %0 = vector.broadcast %cst : bf16 to vector<16x4xbf16>
    %c1 = arith.constant 1 : index
    %c0 = arith.constant 0 : index
    %c0_0 = arith.constant 0 : index
    %c0_1 = arith.constant 0 : index
    %c0_2 = arith.constant 0 : index
    %1 = vector.load %arg10[%c1, %c0, %c0_0, %c0_1, %c0_2] : memref<2x2x9x16x4xbf16, #tpu.memory_space<vmem>>, vector<1x1x1x16x4xbf16>
    %2 = vector.shape_cast %1 : vector<1x1x1x16x4xbf16> to vector<16x4xbf16>
    %3 = vector.shape_cast %0 : vector<16x4xbf16> to vector<1x1x1x16x4xbf16>
    tpu.vector_store %arg10[%c1, %c0, %c0_0, %c0_1, %c0_2], %3 {strides = array<i32>} : memref<2x2x9x16x4xbf16, #tpu.memory_space<vmem>>, vector<1x1x1x16x4xbf16>,
    %c1_3 = arith.constant 1 : index
    %c1_4 = arith.constant 1 : index
    %c0_5 = arith.constant 0 : index
    %c0_6 = arith.constant 0 : index
    %c0_7 = arith.constant 0 : index
    %4 = vector.load %arg10[%c1_3, %c1_4, %c0_5, %c0_6, %c0_7] : memref<2x2x9x16x4xbf16, #tpu.memory_space<vmem>>, vector<1x1x1x16x4xbf16>
    %5 = vector.shape_cast %4 : vector<1x1x1x16x4xbf16> to vector<16x4xbf16>
    %6 = vector.shape_cast %0 : vector<16x4xbf16> to vector<1x1x1x16x4xbf16>
    tpu.vector_store %arg10[%c1_3, %c1_4, %c0_5, %c0_6, %c0_7], %6 {strides = array<i32>} : memref<2x2x9x16x4xbf16, #tpu.memory_space<vmem>>, vector<1x1x1x16x4xbf16>,
    %cst_8 = arith.constant 0.000000e+00 : bf16
    %7 = vector.broadcast %cst_8 : bf16 to vector<9x8x4xbf16>
    %c0_9 = arith.constant 0 : index
    %c1_10 = arith.constant 1 : index
    %c0_11 = arith.constant 0 : index
    %c0_12 = arith.constant 0 : index
    %c0_13 = arith.constant 0 : index
    %8 = vector.load %arg10[%c0_9, %c1_10, %c0_11, %c0_12, %c0_13] : memref<2x2x9x16x4xbf16, #tpu.memory_space<vmem>>, vector<1x1x9x8x4xbf16>
    %9 = vector.shape_cast %8 : vector<1x1x9x8x4xbf16> to vector<9x8x4xbf16>
    %10 = vector.shape_cast %7 : vector<9x8x4xbf16> to vector<1x1x9x8x4xbf16>
    tpu.vector_store %arg10[%c0_9, %c1_10, %c0_11, %c0_12, %c0_13], %10 {strides = array<i32>} : memref<2x2x9x16x4xbf16, #tpu.memory_space<vmem>>, vector<1x1x9x8x4xbf16>,
    %c1_14 = arith.constant 1 : index
    %c1_15 = arith.constant 1 : index
    %c0_16 = arith.constant 0 : index
    %c0_17 = arith.constant 0 : index
    %c0_18 = arith.constant 0 : index
    %11 = vector.load %arg10[%c1_14, %c1_15, %c0_16, %c0_17, %c0_18] : memref<2x2x9x16x4xbf16, #tpu.memory_space<vmem>>, vector<1x1x9x8x4xbf16>
    %12 = vector.shape_cast %11 : vector<1x1x9x8x4xbf16> to vector<9x8x4xbf16>
    %13 = vector.shape_cast %7 : vector<9x8x4xbf16> to vector<1x1x9x8x4xbf16>
    tpu.vector_store %arg10[%c1_14, %c1_15, %c0_16, %c0_17, %c0_18], %13 {strides = array<i32>} : memref<2x2x9x16x4xbf16, #tpu.memory_space<vmem>>, vector<1x1x9x8x4xbf16>,
    %c0_19 = arith.constant 0 : index
    %c0_20 = arith.constant 0 : index
    %c0_21 = arith.constant 0 : index
    %c0_22 = arith.constant 0 : index
    %14 = vector.load %arg1[%c0_19, %c0_20, %c0_21, %c0_22] : memref<1x16x16x4xf32, #tpu.memory_space<vmem>>, vector<1x16x16x4xf32>
    %15 = vector.shape_cast %14 : vector<1x16x16x4xf32> to vector<16x16x4xf32>
    %16 = vector.shape_cast %15 : vector<16x16x4xf32> to vector<8x2x8x2x4xf32>
    %17 = vector.extract_strided_slice %16 {offsets = [0, 0, 0, 0, 0], sizes = [8, 1, 8, 1, 4], strides = [1, 1, 1, 1, 1]} : vector<8x2x8x2x4xf32> to vector<8x1x8x1x4xf32>
    %18 = vector.shape_cast %17 : vector<8x1x8x1x4xf32> to vector<8x8x4xf32>
    %19 = vector.extract_strided_slice %16 {offsets = [0, 0, 0, 1, 0], sizes = [8, 1, 8, 1, 4], strides = [1, 1, 1, 1, 1]} : vector<8x2x8x2x4xf32> to vector<8x1x8x1x4xf32>
    %20 = vector.shape_cast %19 : vector<8x1x8x1x4xf32> to vector<8x8x4xf32>
    %21 = vector.extract_strided_slice %16 {offsets = [0, 1, 0, 0, 0], sizes = [8, 1, 8, 1, 4], strides = [1, 1, 1, 1, 1]} : vector<8x2x8x2x4xf32> to vector<8x1x8x1x4xf32>
    %22 = vector.shape_cast %21 : vector<8x1x8x1x4xf32> to vector<8x8x4xf32>
    %23 = vector.extract_strided_slice %16 {offsets = [0, 1, 0, 1, 0], sizes = [8, 1, 8, 1, 4], strides = [1, 1, 1, 1, 1]} : vector<8x2x8x2x4xf32> to vector<8x1x8x1x4xf32>
    %24 = vector.shape_cast %23 : vector<8x1x8x1x4xf32> to vector<8x8x4xf32>
    %25 = arith.maximumf %18, %20 : vector<8x8x4xf32>
    %26 = arith.maximumf %22, %24 : vector<8x8x4xf32>
    %27 = arith.maximumf %25, %26 : vector<8x8x4xf32>
    %28 = vector.shape_cast %27 : vector<8x8x4xf32> to vector<64x4xf32>
    %29 = arith.truncf %28 : vector<64x4xf32> to vector<64x4xbf16>
    %c0_23 = arith.constant 0 : index
    %c0_24 = arith.constant 0 : index
    %30 = vector.load %arg2[%c0_23, %c0_24] : memref<4x4xbf16, #tpu.memory_space<vmem>>, vector<4x4xbf16>
    %cst_25 = arith.constant dense<0.000000e+00> : vector<64x4xf32>
    %31 = tpu.matmul %29, %30, %cst_25 {dimension_numbers = #tpu.dot_dimension_numbers<[1], [0], [0], [1], [0, 0, 1, 1], [], []>} : vector<64x4xbf16>, vector<4x4xbf16>, vector<64x4xf32> -> vector<64x4xf32>
    %c0_26 = arith.constant 0 : index
    %c0_27 = arith.constant 0 : index
    %32 = vector.load %arg3[%c0_26, %c0_27] : memref<1x4xf32, #tpu.memory_space<vmem>>, vector<1x4xf32>
    %33 = vector.broadcast %32 : vector<1x4xf32> to vector<64x4xf32>
    %34 = arith.addf %31, %33 : vector<64x4xf32>
    %35 = arith.negf %34 : vector<64x4xf32>
    %36 = math.exp %35 : vector<64x4xf32>
    %cst_28 = arith.constant 1.000000e+00 : f32
    %37 = vector.broadcast %cst_28 : f32 to vector<64x4xf32>
    %38 = arith.addf %37, %36 : vector<64x4xf32>
    %39 = arith.divf %37, %38 : vector<64x4xf32>
    %40 = arith.mulf %34, %39 : vector<64x4xf32>
    %41 = vector.shape_cast %40 : vector<64x4xf32> to vector<8x8x4xf32>
    %42 = vector.shape_cast %18 : vector<8x8x4xf32> to vector<64x4xf32>
    %43 = arith.truncf %42 : vector<64x4xf32> to vector<64x4xbf16>
    %c0_29 = arith.constant 0 : index
    %c0_30 = arith.constant 0 : index
    %44 = vector.load %arg4[%c0_29, %c0_30] : memref<4x4xbf16, #tpu.memory_space<vmem>>, vector<4x4xbf16>
    %cst_31 = arith.constant dense<0.000000e+00> : vector<64x4xf32>
    %45 = tpu.matmul %43, %44, %cst_31 {dimension_numbers = #tpu.dot_dimension_numbers<[1], [0], [0], [1], [0, 0, 1, 1], [], []>} : vector<64x4xbf16>, vector<4x4xbf16>, vector<64x4xf32> -> vector<64x4xf32>
    %c0_32 = arith.constant 0 : index
    %c0_33 = arith.constant 0 : index
    %46 = vector.load %arg5[%c0_32, %c0_33] : memref<1x4xf32, #tpu.memory_space<vmem>>, vector<1x4xf32>
    %47 = vector.broadcast %46 : vector<1x4xf32> to vector<64x4xf32>
    %48 = arith.addf %45, %47 : vector<64x4xf32>
    %49 = arith.negf %48 : vector<64x4xf32>
    %50 = math.exp %49 : vector<64x4xf32>
    %cst_34 = arith.constant 1.000000e+00 : f32
    %51 = vector.broadcast %cst_34 : f32 to vector<64x4xf32>
    %52 = arith.addf %51, %50 : vector<64x4xf32>
    %53 = arith.divf %51, %52 : vector<64x4xf32>
    %54 = arith.mulf %48, %53 : vector<64x4xf32>
    %55 = vector.shape_cast %54 : vector<64x4xf32> to vector<8x8x4xf32>
    %56 = arith.truncf %55 : vector<8x8x4xf32> to vector<8x8x4xbf16>
    %c0_35 = arith.constant 0 : index
    %c0_36 = arith.constant 0 : index
    %c0_37 = arith.constant 0 : index
    %c8 = arith.constant 8 : index
    %c0_38 = arith.constant 0 : index
    %57 = vector.load %arg10[%c0_35, %c0_36, %c0_37, %c8, %c0_38] : memref<2x2x9x16x4xbf16, #tpu.memory_space<vmem>>, vector<1x1x8x8x4xbf16>
    %58 = vector.shape_cast %57 : vector<1x1x8x8x4xbf16> to vector<8x8x4xbf16>
    %59 = vector.shape_cast %56 : vector<8x8x4xbf16> to vector<1x1x8x8x4xbf16>
    tpu.vector_store %arg10[%c0_35, %c0_36, %c0_37, %c8, %c0_38], %59 {strides = array<i32>} : memref<2x2x9x16x4xbf16, #tpu.memory_space<vmem>>, vector<1x1x8x8x4xbf16>,
    %60 = vector.shape_cast %20 : vector<8x8x4xf32> to vector<64x4xf32>
    %61 = arith.truncf %60 : vector<64x4xf32> to vector<64x4xbf16>
    %c0_39 = arith.constant 0 : index
    %c0_40 = arith.constant 0 : index
    %62 = vector.load %arg4[%c0_39, %c0_40] : memref<4x4xbf16, #tpu.memory_space<vmem>>, vector<4x4xbf16>
    %cst_41 = arith.constant dense<0.000000e+00> : vector<64x4xf32>
    %63 = tpu.matmul %61, %62, %cst_41 {dimension_numbers = #tpu.dot_dimension_numbers<[1], [0], [0], [1], [0, 0, 1, 1], [], []>} : vector<64x4xbf16>, vector<4x4xbf16>, vector<64x4xf32> -> vector<64x4xf32>
    %c0_42 = arith.constant 0 : index
    %c0_43 = arith.constant 0 : index
    %64 = vector.load %arg5[%c0_42, %c0_43] : memref<1x4xf32, #tpu.memory_space<vmem>>, vector<1x4xf32>
    %65 = vector.broadcast %64 : vector<1x4xf32> to vector<64x4xf32>
    %66 = arith.addf %63, %65 : vector<64x4xf32>
    %67 = arith.negf %66 : vector<64x4xf32>
    %68 = math.exp %67 : vector<64x4xf32>
    %cst_44 = arith.constant 1.000000e+00 : f32
    %69 = vector.broadcast %cst_44 : f32 to vector<64x4xf32>
    %70 = arith.addf %69, %68 : vector<64x4xf32>
    %71 = arith.divf %69, %70 : vector<64x4xf32>
    %72 = arith.mulf %66, %71 : vector<64x4xf32>
    %73 = vector.shape_cast %72 : vector<64x4xf32> to vector<8x8x4xf32>
    %74 = arith.truncf %73 : vector<8x8x4xf32> to vector<8x8x4xbf16>
    %c0_45 = arith.constant 0 : index
    %c1_46 = arith.constant 1 : index
    %c0_47 = arith.constant 0 : index
    %c8_48 = arith.constant 8 : index
    %c0_49 = arith.constant 0 : index
    %75 = vector.load %arg10[%c0_45, %c1_46, %c0_47, %c8_48, %c0_49] : memref<2x2x9x16x4xbf16, #tpu.memory_space<vmem>>, vector<1x1x8x8x4xbf16>
    %76 = vector.shape_cast %75 : vector<1x1x8x8x4xbf16> to vector<8x8x4xbf16>
    %77 = vector.shape_cast %74 : vector<8x8x4xbf16> to vector<1x1x8x8x4xbf16>
    tpu.vector_store %arg10[%c0_45, %c1_46, %c0_47, %c8_48, %c0_49], %77 {strides = array<i32>} : memref<2x2x9x16x4xbf16, #tpu.memory_space<vmem>>, vector<1x1x8x8x4xbf16>,
    %78 = vector.shape_cast %22 : vector<8x8x4xf32> to vector<64x4xf32>
    %79 = arith.truncf %78 : vector<64x4xf32> to vector<64x4xbf16>
    %c0_50 = arith.constant 0 : index
    %c0_51 = arith.constant 0 : index
    %80 = vector.load %arg4[%c0_50, %c0_51] : memref<4x4xbf16, #tpu.memory_space<vmem>>, vector<4x4xbf16>
    %cst_52 = arith.constant dense<0.000000e+00> : vector<64x4xf32>
    %81 = tpu.matmul %79, %80, %cst_52 {dimension_numbers = #tpu.dot_dimension_numbers<[1], [0], [0], [1], [0, 0, 1, 1], [], []>} : vector<64x4xbf16>, vector<4x4xbf16>, vector<64x4xf32> -> vector<64x4xf32>
    %c0_53 = arith.constant 0 : index
    %c0_54 = arith.constant 0 : index
    %82 = vector.load %arg5[%c0_53, %c0_54] : memref<1x4xf32, #tpu.memory_space<vmem>>, vector<1x4xf32>
    %83 = vector.broadcast %82 : vector<1x4xf32> to vector<64x4xf32>
    %84 = arith.addf %81, %83 : vector<64x4xf32>
    %85 = arith.negf %84 : vector<64x4xf32>
    %86 = math.exp %85 : vector<64x4xf32>
    %cst_55 = arith.constant 1.000000e+00 : f32
    %87 = vector.broadcast %cst_55 : f32 to vector<64x4xf32>
    %88 = arith.addf %87, %86 : vector<64x4xf32>
    %89 = arith.divf %87, %88 : vector<64x4xf32>
    %90 = arith.mulf %84, %89 : vector<64x4xf32>
    %91 = vector.shape_cast %90 : vector<64x4xf32> to vector<8x8x4xf32>
    %92 = arith.truncf %91 : vector<8x8x4xf32> to vector<8x8x4xbf16>
    %c1_56 = arith.constant 1 : index
    %c0_57 = arith.constant 0 : index
    %c1_58 = arith.constant 1 : index
    %c8_59 = arith.constant 8 : index
    %c0_60 = arith.constant 0 : index
    %93 = vector.load %arg10[%c1_56, %c0_57, %c1_58, %c8_59, %c0_60] : memref<2x2x9x16x4xbf16, #tpu.memory_space<vmem>>, vector<1x1x8x8x4xbf16>
    %94 = vector.shape_cast %93 : vector<1x1x8x8x4xbf16> to vector<8x8x4xbf16>
    %95 = vector.shape_cast %92 : vector<8x8x4xbf16> to vector<1x1x8x8x4xbf16>
    tpu.vector_store %arg10[%c1_56, %c0_57, %c1_58, %c8_59, %c0_60], %95 {strides = array<i32>} : memref<2x2x9x16x4xbf16, #tpu.memory_space<vmem>>, vector<1x1x8x8x4xbf16>,
    %96 = vector.shape_cast %24 : vector<8x8x4xf32> to vector<64x4xf32>
    %97 = arith.truncf %96 : vector<64x4xf32> to vector<64x4xbf16>
    %c0_61 = arith.constant 0 : index
    %c0_62 = arith.constant 0 : index
    %98 = vector.load %arg4[%c0_61, %c0_62] : memref<4x4xbf16, #tpu.memory_space<vmem>>, vector<4x4xbf16>
    %cst_63 = arith.constant dense<0.000000e+00> : vector<64x4xf32>
    %99 = tpu.matmul %97, %98, %cst_63 {dimension_numbers = #tpu.dot_dimension_numbers<[1], [0], [0], [1], [0, 0, 1, 1], [], []>} : vector<64x4xbf16>, vector<4x4xbf16>, vector<64x4xf32> -> vector<64x4xf32>
    %c0_64 = arith.constant 0 : index
    %c0_65 = arith.constant 0 : index
    %100 = vector.load %arg5[%c0_64, %c0_65] : memref<1x4xf32, #tpu.memory_space<vmem>>, vector<1x4xf32>
    %101 = vector.broadcast %100 : vector<1x4xf32> to vector<64x4xf32>
    %102 = arith.addf %99, %101 : vector<64x4xf32>
    %103 = arith.negf %102 : vector<64x4xf32>
    %104 = math.exp %103 : vector<64x4xf32>
    %cst_66 = arith.constant 1.000000e+00 : f32
    %105 = vector.broadcast %cst_66 : f32 to vector<64x4xf32>
    %106 = arith.addf %105, %104 : vector<64x4xf32>
    %107 = arith.divf %105, %106 : vector<64x4xf32>
    %108 = arith.mulf %102, %107 : vector<64x4xf32>
    %109 = vector.shape_cast %108 : vector<64x4xf32> to vector<8x8x4xf32>
    %110 = arith.truncf %109 : vector<8x8x4xf32> to vector<8x8x4xbf16>
    %c1_67 = arith.constant 1 : index
    %c1_68 = arith.constant 1 : index
    %c1_69 = arith.constant 1 : index
    %c8_70 = arith.constant 8 : index
    %c0_71 = arith.constant 0 : index
    %111 = vector.load %arg10[%c1_67, %c1_68, %c1_69, %c8_70, %c0_71] : memref<2x2x9x16x4xbf16, #tpu.memory_space<vmem>>, vector<1x1x8x8x4xbf16>
    %112 = vector.shape_cast %111 : vector<1x1x8x8x4xbf16> to vector<8x8x4xbf16>
    %113 = vector.shape_cast %110 : vector<8x8x4xbf16> to vector<1x1x8x8x4xbf16>
    tpu.vector_store %arg10[%c1_67, %c1_68, %c1_69, %c8_70, %c0_71], %113 {strides = array<i32>} : memref<2x2x9x16x4xbf16, #tpu.memory_space<vmem>>, vector<1x1x8x8x4xbf16>,
    %cst_72 = arith.constant 0.000000e+00 : f32
    %114 = vector.broadcast %cst_72 : f32 to vector<64x4xf32>
    %c0_73 = arith.constant 0 : index
    %c0_74 = arith.constant 0 : index
    %115 = vector.load %arg11[%c0_73, %c0_74] : memref<64x4xf32, #tpu.memory_space<vmem>>, vector<64x4xf32>
    tpu.vector_store %arg11[%c0_73, %c0_74], %114 {strides = array<i32>} : memref<64x4xf32, #tpu.memory_space<vmem>>, vector<64x4xf32>,
    %c1_75 = arith.constant 1 : index
    %c1_76 = arith.constant 1 : index
    %c0_77 = arith.constant 0 : index
    %c7 = arith.constant 7 : index
    %c0_78 = arith.constant 0 : index
    %116 = vector.load %arg10[%c1_75, %c1_76, %c0_77, %c7, %c0_78] : memref<2x2x9x16x4xbf16, #tpu.memory_space<vmem>>, vector<1x1x8x8x4xbf16>
    %117 = vector.shape_cast %116 : vector<1x1x8x8x4xbf16> to vector<8x8x4xbf16>
    %c0_79 = arith.constant 0 : index
    %c0_80 = arith.constant 0 : index
    %118 = vector.load %arg6[%c0_79, %c0_80] : memref<36x4xbf16, #tpu.memory_space<vmem>>, vector<4x4xbf16>
    %c0_81 = arith.constant 0 : index
    %c0_82 = arith.constant 0 : index
    %119 = vector.load %arg11[%c0_81, %c0_82] : memref<64x4xf32, #tpu.memory_space<vmem>>, vector<64x4xf32>
    %120 = vector.shape_cast %117 : vector<8x8x4xbf16> to vector<64x4xbf16>
    %cst_83 = arith.constant dense<0.000000e+00> : vector<64x4xf32>
    %121 = tpu.matmul %120, %118, %cst_83 {dimension_numbers = #tpu.dot_dimension_numbers<[1], [0], [0], [1], [0, 0, 1, 1], [], []>} : vector<64x4xbf16>, vector<4x4xbf16>, vector<64x4xf32> -> vector<64x4xf32>
    %122 = arith.addf %119, %121 : vector<64x4xf32>
    %c0_84 = arith.constant 0 : index
    %c0_85 = arith.constant 0 : index
    %123 = vector.load %arg11[%c0_84, %c0_85] : memref<64x4xf32, #tpu.memory_space<vmem>>, vector<64x4xf32>
    tpu.vector_store %arg11[%c0_84, %c0_85], %122 {strides = array<i32>} : memref<64x4xf32, #tpu.memory_space<vmem>>, vector<64x4xf32>,
    %c1_86 = arith.constant 1 : index
    %c0_87 = arith.constant 0 : index
    %c0_88 = arith.constant 0 : index
    %c8_89 = arith.constant 8 : index
    %c0_90 = arith.constant 0 : index
    %124 = vector.load %arg10[%c1_86, %c0_87, %c0_88, %c8_89, %c0_90] : memref<2x2x9x16x4xbf16, #tpu.memory_space<vmem>>, vector<1x1x8x8x4xbf16>
    %125 = vector.shape_cast %124 : vector<1x1x8x8x4xbf16> to vector<8x8x4xbf16>
    %c4 = arith.constant 4 : index
    %c0_91 = arith.constant 0 : index
    %126 = vector.load %arg6[%c4, %c0_91] : memref<36x4xbf16, #tpu.memory_space<vmem>>, vector<4x4xbf16>
    %c0_92 = arith.constant 0 : index
    %c0_93 = arith.constant 0 : index
    %127 = vector.load %arg11[%c0_92, %c0_93] : memref<64x4xf32, #tpu.memory_space<vmem>>, vector<64x4xf32>
    %128 = vector.shape_cast %125 : vector<8x8x4xbf16> to vector<64x4xbf16>
    %cst_94 = arith.constant dense<0.000000e+00> : vector<64x4xf32>
    %129 = tpu.matmul %128, %126, %cst_94 {dimension_numbers = #tpu.dot_dimension_numbers<[1], [0], [0], [1], [0, 0, 1, 1], [], []>} : vector<64x4xbf16>, vector<4x4xbf16>, vector<64x4xf32> -> vector<64x4xf32>
    %130 = arith.addf %127, %129 : vector<64x4xf32>
    %c0_95 = arith.constant 0 : index
    %c0_96 = arith.constant 0 : index
    %131 = vector.load %arg11[%c0_95, %c0_96] : memref<64x4xf32, #tpu.memory_space<vmem>>, vector<64x4xf32>
    tpu.vector_store %arg11[%c0_95, %c0_96], %130 {strides = array<i32>} : memref<64x4xf32, #tpu.memory_space<vmem>>, vector<64x4xf32>,
    %c1_97 = arith.constant 1 : index
    %c1_98 = arith.constant 1 : index
    %c0_99 = arith.constant 0 : index
    %c8_100 = arith.constant 8 : index
    %c0_101 = arith.constant 0 : index
    %132 = vector.load %arg10[%c1_97, %c1_98, %c0_99, %c8_100, %c0_101] : memref<2x2x9x16x4xbf16, #tpu.memory_space<vmem>>, vector<1x1x8x8x4xbf16>
    %133 = vector.shape_cast %132 : vector<1x1x8x8x4xbf16> to vector<8x8x4xbf16>
    %c8_102 = arith.constant 8 : index
    %c0_103 = arith.constant 0 : index
    %134 = vector.load %arg6[%c8_102, %c0_103] : memref<36x4xbf16, #tpu.memory_space<vmem>>, vector<4x4xbf16>
    %c0_104 = arith.constant 0 : index
    %c0_105 = arith.constant 0 : index
    %135 = vector.load %arg11[%c0_104, %c0_105] : memref<64x4xf32, #tpu.memory_space<vmem>>, vector<64x4xf32>
    %136 = vector.shape_cast %133 : vector<8x8x4xbf16> to vector<64x4xbf16>
    %cst_106 = arith.constant dense<0.000000e+00> : vector<64x4xf32>
    %137 = tpu.matmul %136, %134, %cst_106 {dimension_numbers = #tpu.dot_dimension_numbers<[1], [0], [0], [1], [0, 0, 1, 1], [], []>} : vector<64x4xbf16>, vector<4x4xbf16>, vector<64x4xf32> -> vector<64x4xf32>
    %138 = arith.addf %135, %137 : vector<64x4xf32>
    %c0_107 = arith.constant 0 : index
    %c0_108 = arith.constant 0 : index
    %139 = vector.load %arg11[%c0_107, %c0_108] : memref<64x4xf32, #tpu.memory_space<vmem>>, vector<64x4xf32>
    tpu.vector_store %arg11[%c0_107, %c0_108], %138 {strides = array<i32>} : memref<64x4xf32, #tpu.memory_space<vmem>>, vector<64x4xf32>,
    %c0_109 = arith.constant 0 : index
    %c1_110 = arith.constant 1 : index
    %c0_111 = arith.constant 0 : index
    %c7_112 = arith.constant 7 : index
    %c0_113 = arith.constant 0 : index
    %140 = vector.load %arg10[%c0_109, %c1_110, %c0_111, %c7_112, %c0_113] : memref<2x2x9x16x4xbf16, #tpu.memory_space<vmem>>, vector<1x1x8x8x4xbf16>
    %141 = vector.shape_cast %140 : vector<1x1x8x8x4xbf16> to vector<8x8x4xbf16>
    %c12 = arith.constant 12 : index
    %c0_114 = arith.constant 0 : index
    %142 = vector.load %arg6[%c12, %c0_114] : memref<36x4xbf16, #tpu.memory_space<vmem>>, vector<4x4xbf16>
    %c0_115 = arith.constant 0 : index
    %c0_116 = arith.constant 0 : index
    %143 = vector.load %arg11[%c0_115, %c0_116] : memref<64x4xf32, #tpu.memory_space<vmem>>, vector<64x4xf32>
    %144 = vector.shape_cast %141 : vector<8x8x4xbf16> to vector<64x4xbf16>
    %cst_117 = arith.constant dense<0.000000e+00> : vector<64x4xf32>
    %145 = tpu.matmul %144, %142, %cst_117 {dimension_numbers = #tpu.dot_dimension_numbers<[1], [0], [0], [1], [0, 0, 1, 1], [], []>} : vector<64x4xbf16>, vector<4x4xbf16>, vector<64x4xf32> -> vector<64x4xf32>
    %146 = arith.addf %143, %145 : vector<64x4xf32>
    %c0_118 = arith.constant 0 : index
    %c0_119 = arith.constant 0 : index
    %147 = vector.load %arg11[%c0_118, %c0_119] : memref<64x4xf32, #tpu.memory_space<vmem>>, vector<64x4xf32>
    tpu.vector_store %arg11[%c0_118, %c0_119], %146 {strides = array<i32>} : memref<64x4xf32, #tpu.memory_space<vmem>>, vector<64x4xf32>,
    %c0_120 = arith.constant 0 : index
    %c0_121 = arith.constant 0 : index
    %c0_122 = arith.constant 0 : index
    %c8_123 = arith.constant 8 : index
    %c0_124 = arith.constant 0 : index
    %148 = vector.load %arg10[%c0_120, %c0_121, %c0_122, %c8_123, %c0_124] : memref<2x2x9x16x4xbf16, #tpu.memory_space<vmem>>, vector<1x1x8x8x4xbf16>
    %149 = vector.shape_cast %148 : vector<1x1x8x8x4xbf16> to vector<8x8x4xbf16>
    %c16 = arith.constant 16 : index
    %c0_125 = arith.constant 0 : index
    %150 = vector.load %arg6[%c16, %c0_125] : memref<36x4xbf16, #tpu.memory_space<vmem>>, vector<4x4xbf16>
    %c0_126 = arith.constant 0 : index
    %c0_127 = arith.constant 0 : index
    %151 = vector.load %arg11[%c0_126, %c0_127] : memref<64x4xf32, #tpu.memory_space<vmem>>, vector<64x4xf32>
    %152 = vector.shape_cast %149 : vector<8x8x4xbf16> to vector<64x4xbf16>
    %cst_128 = arith.constant dense<0.000000e+00> : vector<64x4xf32>
    %153 = tpu.matmul %152, %150, %cst_128 {dimension_numbers = #tpu.dot_dimension_numbers<[1], [0], [0], [1], [0, 0, 1, 1], [], []>} : vector<64x4xbf16>, vector<4x4xbf16>, vector<64x4xf32> -> vector<64x4xf32>
    %154 = arith.addf %151, %153 : vector<64x4xf32>
    %c0_129 = arith.constant 0 : index
    %c0_130 = arith.constant 0 : index
    %155 = vector.load %arg11[%c0_129, %c0_130] : memref<64x4xf32, #tpu.memory_space<vmem>>, vector<64x4xf32>
    tpu.vector_store %arg11[%c0_129, %c0_130], %154 {strides = array<i32>} : memref<64x4xf32, #tpu.memory_space<vmem>>, vector<64x4xf32>,
    %c0_131 = arith.constant 0 : index
    %c1_132 = arith.constant 1 : index
    %c0_133 = arith.constant 0 : index
    %c8_134 = arith.constant 8 : index
    %c0_135 = arith.constant 0 : index
    %156 = vector.load %arg10[%c0_131, %c1_132, %c0_133, %c8_134, %c0_135] : memref<2x2x9x16x4xbf16, #tpu.memory_space<vmem>>, vector<1x1x8x8x4xbf16>
    %157 = vector.shape_cast %156 : vector<1x1x8x8x4xbf16> to vector<8x8x4xbf16>
    %c20 = arith.constant 20 : index
    %c0_136 = arith.constant 0 : index
    %158 = vector.load %arg6[%c20, %c0_136] : memref<36x4xbf16, #tpu.memory_space<vmem>>, vector<4x4xbf16>
    %c0_137 = arith.constant 0 : index
    %c0_138 = arith.constant 0 : index
    %159 = vector.load %arg11[%c0_137, %c0_138] : memref<64x4xf32, #tpu.memory_space<vmem>>, vector<64x4xf32>
    %160 = vector.shape_cast %157 : vector<8x8x4xbf16> to vector<64x4xbf16>
    %cst_139 = arith.constant dense<0.000000e+00> : vector<64x4xf32>
    %161 = tpu.matmul %160, %158, %cst_139 {dimension_numbers = #tpu.dot_dimension_numbers<[1], [0], [0], [1], [0, 0, 1, 1], [], []>} : vector<64x4xbf16>, vector<4x4xbf16>, vector<64x4xf32> -> vector<64x4xf32>
    %162 = arith.addf %159, %161 : vector<64x4xf32>
    %c0_140 = arith.constant 0 : index
    %c0_141 = arith.constant 0 : index
    %163 = vector.load %arg11[%c0_140, %c0_141] : memref<64x4xf32, #tpu.memory_space<vmem>>, vector<64x4xf32>
    tpu.vector_store %arg11[%c0_140, %c0_141], %162 {strides = array<i32>} : memref<64x4xf32, #tpu.memory_space<vmem>>, vector<64x4xf32>,
    %c1_142 = arith.constant 1 : index
    %c1_143 = arith.constant 1 : index
    %c1_144 = arith.constant 1 : index
    %c7_145 = arith.constant 7 : index
    %c0_146 = arith.constant 0 : index
    %164 = vector.load %arg10[%c1_142, %c1_143, %c1_144, %c7_145, %c0_146] : memref<2x2x9x16x4xbf16, #tpu.memory_space<vmem>>, vector<1x1x8x8x4xbf16>
    %165 = vector.shape_cast %164 : vector<1x1x8x8x4xbf16> to vector<8x8x4xbf16>
    %c24 = arith.constant 24 : index
    %c0_147 = arith.constant 0 : index
    %166 = vector.load %arg6[%c24, %c0_147] : memref<36x4xbf16, #tpu.memory_space<vmem>>, vector<4x4xbf16>
    %c0_148 = arith.constant 0 : index
    %c0_149 = arith.constant 0 : index
    %167 = vector.load %arg11[%c0_148, %c0_149] : memref<64x4xf32, #tpu.memory_space<vmem>>, vector<64x4xf32>
    %168 = vector.shape_cast %165 : vector<8x8x4xbf16> to vector<64x4xbf16>
    %cst_150 = arith.constant dense<0.000000e+00> : vector<64x4xf32>
    %169 = tpu.matmul %168, %166, %cst_150 {dimension_numbers = #tpu.dot_dimension_numbers<[1], [0], [0], [1], [0, 0, 1, 1], [], []>} : vector<64x4xbf16>, vector<4x4xbf16>, vector<64x4xf32> -> vector<64x4xf32>
    %170 = arith.addf %167, %169 : vector<64x4xf32>
    %c0_151 = arith.constant 0 : index
    %c0_152 = arith.constant 0 : index
    %171 = vector.load %arg11[%c0_151, %c0_152] : memref<64x4xf32, #tpu.memory_space<vmem>>, vector<64x4xf32>
    tpu.vector_store %arg11[%c0_151, %c0_152], %170 {strides = array<i32>} : memref<64x4xf32, #tpu.memory_space<vmem>>, vector<64x4xf32>,
    %c1_153 = arith.constant 1 : index
    %c0_154 = arith.constant 0 : index
    %c1_155 = arith.constant 1 : index
    %c8_156 = arith.constant 8 : index
    %c0_157 = arith.constant 0 : index
    %172 = vector.load %arg10[%c1_153, %c0_154, %c1_155, %c8_156, %c0_157] : memref<2x2x9x16x4xbf16, #tpu.memory_space<vmem>>, vector<1x1x8x8x4xbf16>
    %173 = vector.shape_cast %172 : vector<1x1x8x8x4xbf16> to vector<8x8x4xbf16>
    %c28 = arith.constant 28 : index
    %c0_158 = arith.constant 0 : index
    %174 = vector.load %arg6[%c28, %c0_158] : memref<36x4xbf16, #tpu.memory_space<vmem>>, vector<4x4xbf16>
    %c0_159 = arith.constant 0 : index
    %c0_160 = arith.constant 0 : index
    %175 = vector.load %arg11[%c0_159, %c0_160] : memref<64x4xf32, #tpu.memory_space<vmem>>, vector<64x4xf32>
    %176 = vector.shape_cast %173 : vector<8x8x4xbf16> to vector<64x4xbf16>
    %cst_161 = arith.constant dense<0.000000e+00> : vector<64x4xf32>
    %177 = tpu.matmul %176, %174, %cst_161 {dimension_numbers = #tpu.dot_dimension_numbers<[1], [0], [0], [1], [0, 0, 1, 1], [], []>} : vector<64x4xbf16>, vector<4x4xbf16>, vector<64x4xf32> -> vector<64x4xf32>
    %178 = arith.addf %175, %177 : vector<64x4xf32>
    %c0_162 = arith.constant 0 : index
    %c0_163 = arith.constant 0 : index
    %179 = vector.load %arg11[%c0_162, %c0_163] : memref<64x4xf32, #tpu.memory_space<vmem>>, vector<64x4xf32>
    tpu.vector_store %arg11[%c0_162, %c0_163], %178 {strides = array<i32>} : memref<64x4xf32, #tpu.memory_space<vmem>>, vector<64x4xf32>,
    %c1_164 = arith.constant 1 : index
    %c1_165 = arith.constant 1 : index
    %c1_166 = arith.constant 1 : index
    %c8_167 = arith.constant 8 : index
    %c0_168 = arith.constant 0 : index
    %180 = vector.load %arg10[%c1_164, %c1_165, %c1_166, %c8_167, %c0_168] : memref<2x2x9x16x4xbf16, #tpu.memory_space<vmem>>, vector<1x1x8x8x4xbf16>
    %181 = vector.shape_cast %180 : vector<1x1x8x8x4xbf16> to vector<8x8x4xbf16>
    %c32 = arith.constant 32 : index
    %c0_169 = arith.constant 0 : index
    %182 = vector.load %arg6[%c32, %c0_169] : memref<36x4xbf16, #tpu.memory_space<vmem>>, vector<4x4xbf16>
    %c0_170 = arith.constant 0 : index
    %c0_171 = arith.constant 0 : index
    %183 = vector.load %arg11[%c0_170, %c0_171] : memref<64x4xf32, #tpu.memory_space<vmem>>, vector<64x4xf32>
    %184 = vector.shape_cast %181 : vector<8x8x4xbf16> to vector<64x4xbf16>
    %cst_172 = arith.constant dense<0.000000e+00> : vector<64x4xf32>
    %185 = tpu.matmul %184, %182, %cst_172 {dimension_numbers = #tpu.dot_dimension_numbers<[1], [0], [0], [1], [0, 0, 1, 1], [], []>} : vector<64x4xbf16>, vector<4x4xbf16>, vector<64x4xf32> -> vector<64x4xf32>
    %186 = arith.addf %183, %185 : vector<64x4xf32>
    %c0_173 = arith.constant 0 : index
    %c0_174 = arith.constant 0 : index
    %187 = vector.load %arg11[%c0_173, %c0_174] : memref<64x4xf32, #tpu.memory_space<vmem>>, vector<64x4xf32>
    tpu.vector_store %arg11[%c0_173, %c0_174], %186 {strides = array<i32>} : memref<64x4xf32, #tpu.memory_space<vmem>>, vector<64x4xf32>,
    %c0_175 = arith.constant 0 : index
    %c0_176 = arith.constant 0 : index
    %188 = vector.load %arg11[%c0_175, %c0_176] : memref<64x4xf32, #tpu.memory_space<vmem>>, vector<64x4xf32>
    %c0_177 = arith.constant 0 : index
    %c0_178 = arith.constant 0 : index
    %189 = vector.load %arg7[%c0_177, %c0_178] : memref<1x4xf32, #tpu.memory_space<vmem>>, vector<1x4xf32>
    %190 = vector.broadcast %189 : vector<1x4xf32> to vector<64x4xf32>
    %191 = arith.addf %188, %190 : vector<64x4xf32>
    %192 = arith.negf %191 : vector<64x4xf32>
    %193 = math.exp %192 : vector<64x4xf32>
    %cst_179 = arith.constant 1.000000e+00 : f32
    %194 = vector.broadcast %cst_179 : f32 to vector<64x4xf32>
    %195 = arith.addf %194, %193 : vector<64x4xf32>
    %196 = arith.divf %194, %195 : vector<64x4xf32>
    %197 = arith.mulf %191, %196 : vector<64x4xf32>
    %198 = vector.shape_cast %197 : vector<64x4xf32> to vector<8x8x4xf32>
    %c0_180 = arith.constant 0 : index
    %c0_181 = arith.constant 0 : index
    %c0_182 = arith.constant 0 : index
    %c0_183 = arith.constant 0 : index
    %199 = vector.load %arg8[%c0_180, %c0_181, %c0_182, %c0_183] : memref<1x8x8x4xf32, #tpu.memory_space<vmem>>, vector<1x8x8x4xf32>
    %200 = vector.shape_cast %199 : vector<1x8x8x4xf32> to vector<8x8x4xf32>
    %201 = vector.shape_cast %41 : vector<8x8x4xf32> to vector<1x8x8x4xf32>
    tpu.vector_store %arg8[%c0_180, %c0_181, %c0_182, %c0_183], %201 {strides = array<i32>} : memref<1x8x8x4xf32, #tpu.memory_space<vmem>>, vector<1x8x8x4xf32>,
    %c0_184 = arith.constant 0 : index
    %c0_185 = arith.constant 0 : index
    %c0_186 = arith.constant 0 : index
    %c0_187 = arith.constant 0 : index
    %202 = vector.load %arg9[%c0_184, %c0_185, %c0_186, %c0_187] : memref<1x8x8x4xf32, #tpu.memory_space<vmem>>, vector<1x8x8x4xf32>
    %203 = vector.shape_cast %202 : vector<1x8x8x4xf32> to vector<8x8x4xf32>
    %204 = vector.shape_cast %198 : vector<8x8x4xf32> to vector<1x8x8x4xf32>
    tpu.vector_store %arg9[%c0_184, %c0_185, %c0_186, %c0_187], %204 {strides = array<i32>} : memref<1x8x8x4xf32, #tpu.memory_space<vmem>>, vector<1x8x8x4xf32>,
    return
  }
  func.func @transform_0(%arg0: i32) -> (i32, i32, i32, i32) {
    %c0_i32 = arith.constant 0 : i32
    %c0_i32_0 = arith.constant 0 : i32
    %c0_i32_1 = arith.constant 0 : i32
    %c0_i32_2 = arith.constant 0 : i32
    return %arg0, %c0_i32, %c0_i32_0, %c0_i32_1 : i32, i32, i32, i32
  }
  func.func @transform_1(%arg0: i32) -> (i32, i32) {
    %c0_i32 = arith.constant 0 : i32
    %c0_i32_0 = arith.constant 0 : i32
    %c0_i32_1 = arith.constant 0 : i32
    return %c0_i32, %c0_i32_0 : i32, i32
  }
  func.func @transform_2(%arg0: i32) -> (i32, i32) {
    %c0_i32 = arith.constant 0 : i32
    %c0_i32_0 = arith.constant 0 : i32
    %c0_i32_1 = arith.constant 0 : i32
    return %c0_i32, %c0_i32_0 : i32, i32
  }
  func.func @transform_3(%arg0: i32) -> (i32, i32) {
    %c0_i32 = arith.constant 0 : i32
    %c0_i32_0 = arith.constant 0 : i32
    %c0_i32_1 = arith.constant 0 : i32
    return %c0_i32, %c0_i32_0 : i32, i32
  }
  func.func @transform_4(%arg0: i32) -> (i32, i32) {
    %c0_i32 = arith.constant 0 : i32
    %c0_i32_0 = arith.constant 0 : i32
    %c0_i32_1 = arith.constant 0 : i32
    return %c0_i32, %c0_i32_0 : i32, i32
  }
  func.func @transform_5(%arg0: i32) -> (i32, i32) {
    %c0_i32 = arith.constant 0 : i32
    %c0_i32_0 = arith.constant 0 : i32
    %c0_i32_1 = arith.constant 0 : i32
    return %c0_i32, %c0_i32_0 : i32, i32
  }
  func.func @transform_6(%arg0: i32) -> (i32, i32) {
    %c0_i32 = arith.constant 0 : i32
    %c0_i32_0 = arith.constant 0 : i32
    %c0_i32_1 = arith.constant 0 : i32
    return %c0_i32, %c0_i32_0 : i32, i32
  }
  func.func @transform_7(%arg0: i32) -> (i32, i32, i32, i32) {
    %c0_i32 = arith.constant 0 : i32
    %c0_i32_0 = arith.constant 0 : i32
    %c0_i32_1 = arith.constant 0 : i32
    %c0_i32_2 = arith.constant 0 : i32
    return %arg0, %c0_i32, %c0_i32_0, %c0_i32_1 : i32, i32, i32, i32
  }
  func.func @transform_8(%arg0: i32) -> (i32, i32, i32, i32) {
    %c0_i32 = arith.constant 0 : i32
    %c0_i32_0 = arith.constant 0 : i32
    %c0_i32_1 = arith.constant 0 : i32
    %c0_i32_2 = arith.constant 0 : i32
    return %arg0, %c0_i32, %c0_i32_0, %c0_i32_1 : i32, i32, i32, i32
  }
}

</mosaic_0001>

<llo_original>
// kernel: tpu_custom_call.1
$region0: #{tpu_custom_call.1}
  #allocation0 [shape = 'u32[]', space=smem, size = 0x4, offset = 0x4, fixed_abs, tag = 'smem constant byte address 0x4 - core index']
  #allocation1 [shape = 'u32[144,128]{1,0:T(1,128)}', space=vmem, size = 0x12000, scoped, tag = 'internal scratch']
  #allocation2 [shape = 'bf16[2,2,9,16,4]{4,3,2,1,0:T(16,128)(2,1)}', space=vmem, size = 0x24000, scoped, tag = 'scratch operand']
  #allocation3 [shape = 'f32[64,4]{1,0:T(8,128)}', space=vmem, size = 0x8000, scoped, tag = 'scratch operand']
  %s0 = inlined_call_operand.hbm [shape: f32[2,16,16,4], index: 0, kind: input, shape index: {}]
  %s1 = inlined_call_operand.hbm [shape: bf16[4,4], index: 1, kind: input, shape index: {}]
  %s2 = inlined_call_operand.hbm [shape: f32[1,4], index: 2, kind: input, shape index: {}]
  %s3 = inlined_call_operand.hbm [shape: bf16[4,4], index: 3, kind: input, shape index: {}]
  %s4 = inlined_call_operand.hbm [shape: f32[1,4], index: 4, kind: input, shape index: {}]
  %s5 = inlined_call_operand.hbm [shape: bf16[36,4], index: 5, kind: input, shape index: {}]
  %s6 = inlined_call_operand.hbm [shape: f32[1,4], index: 6, kind: input, shape index: {}]
  %s7 = inlined_call_operand.hbm [shape: f32[2,8,8,4], index: 7, kind: output, shape index: {0}]
  %s8 = inlined_call_operand.hbm [shape: f32[2,8,8,4], index: 8, kind: output, shape index: {1}]
  %9 = xla_tuple %s7, %s8
  %s10 = sld [smem:[#allocation0]]
  $region97: #{tpu_custom_call.1} parent=0
    _
  %s12 = ssub.s32 1, %s10
  %s13 = scalar_select 0, %s12, %s10
  $region1: #{tpu_custom_call.1} parent=0
    #allocation4 [shape = 'u8[262144]{0}', space=vmem, size = 0x40000, scoped, tag = 'input window, operand 0']
    #allocation5 [shape = 's32[2]{0}', space=sflag, size = 0x8, scoped, tag = 'scoped memory for tpu_custom_call.1']
    #allocation6 [shape = 's32[2]{0}', space=sflag, size = 0x8, scoped, tag = 'scoped memory for tpu_custom_call.1']
    #allocation7 [shape = 'u8[1024]{0}', space=vmem, size = 0x400, scoped, tag = 'input window, operand 1, single buffered']
    #allocation8 [shape = 's32[1]{0}', space=sflag, size = 0x4, scoped, tag = 'scoped memory for tpu_custom_call.1']
    #allocation9 [shape = 'u8[512]{0}', space=vmem, size = 0x400, scoped, tag = 'input window, operand 2, single buffered']
    #allocation10 [shape = 'u8[1024]{0}', space=vmem, size = 0x400, scoped, tag = 'input window, operand 3, single buffered']
    #allocation11 [shape = 's32[1]{0}', space=sflag, size = 0x4, scoped, tag = 'scoped memory for tpu_custom_call.1']
    #allocation12 [shape = 'u8[512]{0}', space=vmem, size = 0x400, scoped, tag = 'input window, operand 4, single buffered']
    #allocation13 [shape = 'u8[10240]{0}', space=vmem, size = 0x2800, scoped, tag = 'input window, operand 5, single buffered']
    #allocation14 [shape = 's32[1]{0}', space=sflag, size = 0x4, scoped, tag = 'scoped memory for tpu_custom_call.1']
    #allocation15 [shape = 'u8[512]{0}', space=vmem, size = 0x400, scoped, tag = 'input window, operand 6, single buffered']
    #allocation16 [shape = 'u8[65536]{0}', space=vmem, size = 0x10000, scoped, tag = 'output window, operand 0']
    #allocation17 [shape = 'u8[65536]{0}', space=vmem, size = 0x10000, scoped, tag = 'output window, operand 1']
    #allocation18 [shape = 's32[2]{0}', space=sflag, size = 0x8, scoped, tag = 'scoped memory for tpu_custom_call.1']
    %14 = vsyncpa [#allocation5], 0
    %s15 = scalar_lea.sflag [#allocation5], 1
    %16 = vsyncpa %s15, 0
    %17 = vsyncpa [#allocation8], 0
    %18 = vsyncpa [#allocation11], 0
    %19 = vsyncpa [#allocation14], 0
    %20 = vsyncpa [#allocation6], 0
    %s21 = scalar_lea.sflag [#allocation6], 1
    %22 = vsyncpa %s21, 0
    %23 = vsyncpa [#allocation18], 0
    %s24 = scalar_lea.sflag [#allocation18], 1
    %25 = vsyncpa %s24, 0
    loop: start=0, step=1, limit=4
    $region2: #{tpu_custom_call.1} parent=1 // loop_pre_header
      _
    $region3: #{tpu_custom_call.1} parent=1 // loop_header
      %s27 = sphi 0, %s31
      %p28 = scmp.ge.s32.totalorder %s27, 4
      %s37 = sphi 0, %s39
      %s40 = sphi 0, %s37
      %s41 = sphi 0, %s40
      %s57 = sphi 0, %s41
      %s61 = sphi 0, %s61
      %s63 = sphi 0, %s61
      %s64 = sphi 0, %s63
      %s78 = sphi 0, %s64
      %s82 = sphi 0, %s82
      %s84 = sphi 0, %s82
      %s85 = sphi 0, %s84
      %s99 = sphi 0, %s85
      %s103 = sphi 0, %s103
      %s105 = sphi 0, %s103
      %s106 = sphi 0, %s105
      %s120 = sphi 0, %s106
      %s124 = sphi 0, %s124
      %s126 = sphi 0, %s124
      %s127 = sphi 0, %s126
      %s141 = sphi 0, %s127
      %s145 = sphi 0, %s145
      %s147 = sphi 0, %s145
      %s148 = sphi 0, %s147
      %s162 = sphi 0, %s148
      %s166 = sphi 0, %s166
      %s168 = sphi 0, %s166
      %s169 = sphi 0, %s168
      %s183 = sphi 0, %s169
      %s189 = sphi 0, %s191
      %s192 = sphi 0, %s189
      %s193 = sphi 0, %s192
      %s209 = sphi 0, %s193
      %s215 = sphi 0, %s217
      %s218 = sphi 0, %s215
      %s219 = sphi 0, %s218
      %s235 = sphi 0, %s219
    $region4: #{tpu_custom_call.1} parent=1 // loop_header_branch
      %30 = sbr.rel (%p28) target = $region8
    $region5: #{tpu_custom_call.1} parent=1 // loop_body
      %s32 = ssub.s32 %s27, 1
      %s33 = ssub.s32 %s27, 2
      %s34 = sadd.s32 %s27, 1
      %s35 = ssub.s32 %s27, %s34
      %p36 = scmp.eq.s32.totalorder %s35, 0
      %s38 = sadd.s32 %s37, 1
      %s39 = scalar_select %p36, %s37, %s38
      %p42 = pneg %p36
      %p43 = scmp.eq.s32.totalorder %s27, 1
      %p44 = por %p42, %p43
      %p45 = scmp.ne.s32.totalorder %s37, %s40
      %p46 = scmp.eq.s32.totalorder %s27, 0
      %p47 = por %p45, %p46
      %p48 = scmp.ne.s32.totalorder %s37, %s40
      %p49 = scmp.eq.s32.totalorder %s32, 1
      %p50 = por %p48, %p49
      %p51 = scmp.ne.s32.totalorder %s40, %s41
      %p52 = scmp.eq.s32.totalorder %s32, 0
      %p53 = por %p51, %p52
      %p54 = scmp.ne.s32.totalorder %s40, %s41
      %p55 = scmp.eq.s32.totalorder %s33, 1
      %p56 = por %p54, %p55
      %p58 = scmp.ne.s32.totalorder %s41, %s57
      %p59 = scmp.eq.s32.totalorder %s33, 0
      %p60 = por %p58, %p59
      %s62 = sadd.s32 %s61, 1
      %p65 = scmp.eq.s32.totalorder %s27, 1
      %p66 = scmp.ne.s32.totalorder %s61, %s63
      %p67 = scmp.eq.s32.totalorder %s27, 0
      %p68 = por %p66, %p67
      %p69 = scmp.ne.s32.totalorder %s61, %s63
      %p70 = scmp.eq.s32.totalorder %s32, 1
      %p71 = por %p69, %p70
      %p72 = scmp.ne.s32.totalorder %s63, %s64
      %p73 = scmp.eq.s32.totalorder %s32, 0
      %p74 = por %p72, %p73
      %p75 = scmp.ne.s32.totalorder %s63, %s64
      %p76 = scmp.eq.s32.totalorder %s33, 1
      %p77 = por %p75, %p76
      %p79 = scmp.ne.s32.totalorder %s64, %s78
      %p80 = scmp.eq.s32.totalorder %s33, 0
      %p81 = por %p79, %p80
      %s83 = sadd.s32 %s82, 1
      %p86 = scmp.eq.s32.totalorder %s27, 1
      %p87 = scmp.ne.s32.totalorder %s82, %s84
      %p88 = scmp.eq.s32.totalorder %s27, 0
      %p89 = por %p87, %p88
      %p90 = scmp.ne.s32.totalorder %s82, %s84
      %p91 = scmp.eq.s32.totalorder %s32, 1
      %p92 = por %p90, %p91
      %p93 = scmp.ne.s32.totalorder %s84, %s85
      %p94 = scmp.eq.s32.totalorder %s32, 0
      %p95 = por %p93, %p94
      %p96 = scmp.ne.s32.totalorder %s84, %s85
      %p97 = scmp.eq.s32.totalorder %s33, 1
      %p98 = por %p96, %p97
      %p100 = scmp.ne.s32.totalorder %s85, %s99
      %p101 = scmp.eq.s32.totalorder %s33, 0
      %p102 = por %p100, %p101
      %s104 = sadd.s32 %s103, 1
      %p107 = scmp.eq.s32.totalorder %s27, 1
      %p108 = scmp.ne.s32.totalorder %s103, %s105
      %p109 = scmp.eq.s32.totalorder %s27, 0
      %p110 = por %p108, %p109
      %p111 = scmp.ne.s32.totalorder %s103, %s105
      %p112 = scmp.eq.s32.totalorder %s32, 1
      %p113 = por %p111, %p112
      %p114 = scmp.ne.s32.totalorder %s105, %s106
      %p115 = scmp.eq.s32.totalorder %s32, 0
      %p116 = por %p114, %p115
      %p117 = scmp.ne.s32.totalorder %s105, %s106
      %p118 = scmp.eq.s32.totalorder %s33, 1
      %p119 = por %p117, %p118
      %p121 = scmp.ne.s32.totalorder %s106, %s120
      %p122 = scmp.eq.s32.totalorder %s33, 0
      %p123 = por %p121, %p122
      %s125 = sadd.s32 %s124, 1
      %p128 = scmp.eq.s32.totalorder %s27, 1
      %p129 = scmp.ne.s32.totalorder %s124, %s126
      %p130 = scmp.eq.s32.totalorder %s27, 0
      %p131 = por %p129, %p130
      %p132 = scmp.ne.s32.totalorder %s124, %s126
      %p133 = scmp.eq.s32.totalorder %s32, 1
      %p134 = por %p132, %p133
      %p135 = scmp.ne.s32.totalorder %s126, %s127
      %p136 = scmp.eq.s32.totalorder %s32, 0
      %p137 = por %p135, %p136
      %p138 = scmp.ne.s32.totalorder %s126, %s127
      %p139 = scmp.eq.s32.totalorder %s33, 1
      %p140 = por %p138, %p139
      %p142 = scmp.ne.s32.totalorder %s127, %s141
      %p143 = scmp.eq.s32.totalorder %s33, 0
      %p144 = por %p142, %p143
      %s146 = sadd.s32 %s145, 1
      %p149 = scmp.eq.s32.totalorder %s27, 1
      %p150 = scmp.ne.s32.totalorder %s145, %s147
      %p151 = scmp.eq.s32.totalorder %s27, 0
      %p152 = por %p150, %p151
      %p153 = scmp.ne.s32.totalorder %s145, %s147
      %p154 = scmp.eq.s32.totalorder %s32, 1
      %p155 = por %p153, %p154
      %p156 = scmp.ne.s32.totalorder %s147, %s148
      %p157 = scmp.eq.s32.totalorder %s32, 0
      %p158 = por %p156, %p157
      %p159 = scmp.ne.s32.totalorder %s147, %s148
      %p160 = scmp.eq.s32.totalorder %s33, 1
      %p161 = por %p159, %p160
      %p163 = scmp.ne.s32.totalorder %s148, %s162
      %p164 = scmp.eq.s32.totalorder %s33, 0
      %p165 = por %p163, %p164
      %s167 = sadd.s32 %s166, 1
      %p170 = scmp.eq.s32.totalorder %s27, 1
      %p171 = scmp.ne.s32.totalorder %s166, %s168
      %p172 = scmp.eq.s32.totalorder %s27, 0
      %p173 = por %p171, %p172
      %p174 = scmp.ne.s32.totalorder %s166, %s168
      %p175 = scmp.eq.s32.totalorder %s32, 1
      %p176 = por %p174, %p175
      %p177 = scmp.ne.s32.totalorder %s168, %s169
      %p178 = scmp.eq.s32.totalorder %s32, 0
      %p179 = por %p177, %p178
      %p180 = scmp.ne.s32.totalorder %s168, %s169
      %p181 = scmp.eq.s32.totalorder %s33, 1
      %p182 = por %p180, %p181
      %p184 = scmp.ne.s32.totalorder %s169, %s183
      %p185 = scmp.eq.s32.totalorder %s33, 0
      %p186 = por %p184, %p185
      %s187 = ssub.s32 %s27, %s34
      %p188 = scmp.eq.s32.totalorder %s187, 0
      %s190 = sadd.s32 %s189, 1
      %s191 = scalar_select %p188, %s189, %s190
      %p194 = pneg %p188
      %p195 = scmp.eq.s32.totalorder %s27, 1
      %p196 = por %p194, %p195
      %p197 = scmp.ne.s32.totalorder %s189, %s192
      %p198 = scmp.eq.s32.totalorder %s27, 0
      %p199 = por %p197, %p198
      %p200 = scmp.ne.s32.totalorder %s189, %s192
      %p201 = scmp.eq.s32.totalorder %s32, 1
      %p202 = por %p200, %p201
      %p203 = scmp.ne.s32.totalorder %s192, %s193
      %p204 = scmp.eq.s32.totalorder %s32, 0
      %p205 = por %p203, %p204
      %p206 = scmp.ne.s32.totalorder %s192, %s193
      %p207 = scmp.eq.s32.totalorder %s33, 1
      %p208 = por %p206, %p207
      %p210 = scmp.ne.s32.totalorder %s193, %s209
      %p211 = scmp.eq.s32.totalorder %s33, 0
      %p212 = por %p210, %p211
      %s213 = ssub.s32 %s27, %s34
      %p214 = scmp.eq.s32.totalorder %s213, 0
      %s216 = sadd.s32 %s215, 1
      %s217 = scalar_select %p214, %s215, %s216
      %p220 = pneg %p214
      %p221 = scmp.eq.s32.totalorder %s27, 1
      %p222 = por %p220, %p221
      %p223 = scmp.ne.s32.totalorder %s215, %s218
      %p224 = scmp.eq.s32.totalorder %s27, 0
      %p225 = por %p223, %p224
      %p226 = scmp.ne.s32.totalorder %s215, %s218
      %p227 = scmp.eq.s32.totalorder %s32, 1
      %p228 = por %p226, %p227
      %p229 = scmp.ne.s32.totalorder %s218, %s219
      %p230 = scmp.eq.s32.totalorder %s32, 0
      %p231 = por %p229, %p230
      %p232 = scmp.ne.s32.totalorder %s218, %s219
      %p233 = scmp.eq.s32.totalorder %s33, 1
      %p234 = por %p232, %p233
      %p236 = scmp.ne.s32.totalorder %s219, %s235
      %p237 = scmp.eq.s32.totalorder %s33, 0
      %p238 = por %p236, %p237
      %p239 = scmp.le.s32.totalorder 1, %s27
      %p240 = scmp.lt.s32.totalorder %s27, 3
      %p241 = pnand %p239, %p240
      %p242 = pneg %p241
      // Predicated region
      $region9: #{tpu_custom_call.1} parent=5 // pred_check
        _
      $region10: #{tpu_custom_call.1} parent=5 // pred_check_branch
        %244 = sbr.rel (%p241) target = $region12
      $region11: #{tpu_custom_call.1} parent=5 // pred_region
        %s245 = ssub.s32 %s27, 1
        // Predicated region
        $region13: #{tpu_custom_call.1} parent=11 // pred_check
          %p246 = pneg %p74
        $region14: #{tpu_custom_call.1} parent=11 // pred_check_branch
          %248 = sbr.rel (%p246) target = $region16
        $region15: #{tpu_custom_call.1} parent=11 // pred_region
          %s250 = ssub.s32 32, 32
          %251 = vsyncadd [#allocation8], %s250
          %s253 = sshll.u32 [#allocation7], 4
          %s254 = int_to_ptr.vmem [resolvable:$true] %s253
          %256 = dma.hbm_to_vmem [thread:$0]  %s1, 32, %s254, [#allocation8]
        $region16: #{tpu_custom_call.1} parent=11 // pred_fallthru
          _
        // Predicated region
        $region17: #{tpu_custom_call.1} parent=11 // pred_check
          %p257 = pneg %p95
        $region18: #{tpu_custom_call.1} parent=11 // pred_check_branch
          %259 = sbr.rel (%p257) target = $region20
        $region19: #{tpu_custom_call.1} parent=11 // pred_region
          %s261 = ssub.s32 16, 16
          %262 = vsyncadd [#allocation8], %s261
          %s264 = sshll.u32 [#allocation9], 4
          %s265 = int_to_ptr.vmem [resolvable:$true] %s264
          %267 = dma.hbm_to_vmem [thread:$0]  %s2, 16, %s265, [#allocation8]
        $region20: #{tpu_custom_call.1} parent=11 // pred_fallthru
          _
        // Predicated region
        $region21: #{tpu_custom_call.1} parent=11 // pred_check
          %p268 = pneg %p116
        $region22: #{tpu_custom_call.1} parent=11 // pred_check_branch
          %270 = sbr.rel (%p268) target = $region24
        $region23: #{tpu_custom_call.1} parent=11 // pred_region
          %s272 = ssub.s32 32, 32
          %273 = vsyncadd [#allocation11], %s272
          %s275 = sshll.u32 [#allocation10], 4
          %s276 = int_to_ptr.vmem [resolvable:$true] %s275
          %278 = dma.hbm_to_vmem [thread:$0]  %s3, 32, %s276, [#allocation11]
        $region24: #{tpu_custom_call.1} parent=11 // pred_fallthru
          _
        // Predicated region
        $region25: #{tpu_custom_call.1} parent=11 // pred_check
          %p279 = pneg %p137
        $region26: #{tpu_custom_call.1} parent=11 // pred_check_branch
          %281 = sbr.rel (%p279) target = $region28
        $region27: #{tpu_custom_call.1} parent=11 // pred_region
          %s283 = ssub.s32 16, 16
          %284 = vsyncadd [#allocation11], %s283
          %s286 = sshll.u32 [#allocation12], 4
          %s287 = int_to_ptr.vmem [resolvable:$true] %s286
          %289 = dma.hbm_to_vmem [thread:$0]  %s4, 16, %s287, [#allocation11]
        $region28: #{tpu_custom_call.1} parent=11 // pred_fallthru
          _
        // Predicated region
        $region29: #{tpu_custom_call.1} parent=11 // pred_check
          %p290 = pneg %p158
        $region30: #{tpu_custom_call.1} parent=11 // pred_check_branch
          %292 = sbr.rel (%p290) target = $region32
        $region31: #{tpu_custom_call.1} parent=11 // pred_region
          %s294 = ssub.s32 320, 320
          %295 = vsyncadd [#allocation14], %s294
          %s296 = sshll.u32 [#allocation13], 4
          %s297 = int_to_ptr.vmem [resolvable:$true] %s296
          %302 = dma.hbm_to_vmem [thread:$0]  %s5, 320, %s297, [#allocation14], 64, 64, 4
        $region32: #{tpu_custom_call.1} parent=11 // pred_fallthru
          _
        // Predicated region
        $region33: #{tpu_custom_call.1} parent=11 // pred_check
          %p303 = pneg %p179
        $region34: #{tpu_custom_call.1} parent=11 // pred_check_branch
          %305 = sbr.rel (%p303) target = $region36
        $region35: #{tpu_custom_call.1} parent=11 // pred_region
          %s307 = ssub.s32 16, 16
          %308 = vsyncadd [#allocation14], %s307
          %s310 = sshll.u32 [#allocation15], 4
          %s311 = int_to_ptr.vmem [resolvable:$true] %s310
          %313 = dma.hbm_to_vmem [thread:$0]  %s6, 16, %s311, [#allocation14]
        $region36: #{tpu_custom_call.1} parent=11 // pred_fallthru
          _
      $region12: #{tpu_custom_call.1} parent=5 // pred_fallthru
        _
      %p314 = scmp.lt.s32.totalorder %s27, 2
      // Predicated region
      $region37: #{tpu_custom_call.1} parent=5 // pred_check
        %p315 = pneg %p314
      $region38: #{tpu_custom_call.1} parent=5 // pred_check_branch
        %317 = sbr.rel (%p315) target = $region40
      $region39: #{tpu_custom_call.1} parent=5 // pred_region
        // Predicated region
        $region41: #{tpu_custom_call.1} parent=39 // pred_check
          %p318 = pneg %p47
        $region42: #{tpu_custom_call.1} parent=39 // pred_check_branch
          %320 = sbr.rel (%p318) target = $region44
        $region43: #{tpu_custom_call.1} parent=39 // pred_region
          %s321 = sand.u32 %s37, 1
          %s322 = scalar_lea.sflag [#allocation5], %s321
          %s323 = sand.u32 %s37, 1
          %s324 = smul.addr %s323, 256
          %s325 = scalar_lea.vmem [#allocation4], %s324
          %s327 = ssub.s32 4096, 4096
          %328 = vsyncadd %s322, %s327
          %s329 = smul.addr %s27, 32
          %s330 = smul.addr %s329, 128
          %s331 = scalar_lea.hbm %s0, %s330
          %s332 = sshll.u32 %s325, 4
          %s333 = int_to_ptr.vmem [resolvable:$true] %s332
          %338 = dma.hbm_to_vmem [thread:$0]  %s331, 4096, %s333, %s322, 128, 128, 8
        $region44: #{tpu_custom_call.1} parent=39 // pred_fallthru
          _
      $region40: #{tpu_custom_call.1} parent=5 // pred_fallthru
        _
      %p339 = scmp.le.s32.totalorder 1, %s27
      %p340 = scmp.lt.s32.totalorder %s27, 3
      %p341 = pnand %p339, %p340
      %p342 = pneg %p341
      // Predicated region
      $region45: #{tpu_custom_call.1} parent=5 // pred_check
        _
      $region46: #{tpu_custom_call.1} parent=5 // pred_check_branch
        %344 = sbr.rel (%p341) target = $region48
      $region47: #{tpu_custom_call.1} parent=5 // pred_region
        %s345 = ssub.s32 %s27, 1
        %s346 = sand.u32 %s40, 1
        %s347 = scalar_lea.sflag [#allocation5], %s346
        %s348 = sand.u32 %s40, 1
        %s349 = smul.addr %s348, 256
        %s350 = scalar_lea.vmem [#allocation4], %s349
        // Predicated region
        $region49: #{tpu_custom_call.1} parent=47 // pred_check
          %p351 = pneg %p53
        $region50: #{tpu_custom_call.1} parent=47 // pred_check_branch
          %353 = sbr.rel (%p351) target = $region52
        $region51: #{tpu_custom_call.1} parent=47 // pred_region
          %354 = dma.done %s347, 4096
        $region52: #{tpu_custom_call.1} parent=47 // pred_fallthru
          _
        // Predicated region
        $region53: #{tpu_custom_call.1} parent=47 // pred_check
          %p355 = pneg %p74
        $region54: #{tpu_custom_call.1} parent=47 // pred_check_branch
          %357 = sbr.rel (%p355) target = $region56
        $region55: #{tpu_custom_call.1} parent=47 // pred_region
          %358 = dma.done [#allocation8], 32
        $region56: #{tpu_custom_call.1} parent=47 // pred_fallthru
          _
        // Predicated region
        $region57: #{tpu_custom_call.1} parent=47 // pred_check
          %p359 = pneg %p95
        $region58: #{tpu_custom_call.1} parent=47 // pred_check_branch
          %361 = sbr.rel (%p359) target = $region60
        $region59: #{tpu_custom_call.1} parent=47 // pred_region
          %362 = dma.done [#allocation8], 16
        $region60: #{tpu_custom_call.1} parent=47 // pred_fallthru
          _
        // Predicated region
        $region61: #{tpu_custom_call.1} parent=47 // pred_check
          %p363 = pneg %p116
        $region62: #{tpu_custom_call.1} parent=47 // pred_check_branch
          %365 = sbr.rel (%p363) target = $region64
        $region63: #{tpu_custom_call.1} parent=47 // pred_region
          %366 = dma.done [#allocation11], 32
        $region64: #{tpu_custom_call.1} parent=47 // pred_fallthru
          _
        // Predicated region
        $region65: #{tpu_custom_call.1} parent=47 // pred_check
          %p367 = pneg %p137
        $region66: #{tpu_custom_call.1} parent=47 // pred_check_branch
          %369 = sbr.rel (%p367) target = $region68
        $region67: #{tpu_custom_call.1} parent=47 // pred_region
          %370 = dma.done [#allocation11], 16
        $region68: #{tpu_custom_call.1} parent=47 // pred_fallthru
          _
        // Predicated region
        $region69: #{tpu_custom_call.1} parent=47 // pred_check
          %p371 = pneg %p158
        $region70: #{tpu_custom_call.1} parent=47 // pred_check_branch
          %373 = sbr.rel (%p371) target = $region72
        $region71: #{tpu_custom_call.1} parent=47 // pred_region
          %374 = dma.done [#allocation14], 320
        $region72: #{tpu_custom_call.1} parent=47 // pred_fallthru
          _
        // Predicated region
        $region73: #{tpu_custom_call.1} parent=47 // pred_check
          %p375 = pneg %p179
        $region74: #{tpu_custom_call.1} parent=47 // pred_check_branch
          %377 = sbr.rel (%p375) target = $region76
        $region75: #{tpu_custom_call.1} parent=47 // pred_region
          %378 = dma.done [#allocation14], 16
        $region76: #{tpu_custom_call.1} parent=47 // pred_fallthru
          _
        %s379 = sand.u32 %s40, 1
        %s380 = scalar_lea.sflag [#allocation5], %s379
        %s381 = sand.u32 %s40, 1
        %s382 = smul.addr %s381, 256
        %s383 = scalar_lea.vmem [#allocation4], %s382
        %p384 = pneg %p53
        %p385 = pneg %p50
        %p386 = pneg %p74
        %p387 = pneg %p71
        %p388 = pneg %p95
        %p389 = pneg %p92
        %p390 = pneg %p116
        %p391 = pneg %p113
        %p392 = pneg %p137
        %p393 = pneg %p134
        %p394 = pneg %p158
        %p395 = pneg %p155
        %p396 = pneg %p179
        %p397 = pneg %p176
        %p398 = pneg %p205
        %p399 = pneg %p202
        %s400 = sand.u32 %s192, 1
        %s401 = scalar_lea.sflag [#allocation6], %s400
        %s402 = sand.u32 %s192, 1
        %s403 = smul.addr %s402, 64
        %s404 = scalar_lea.vmem [#allocation16], %s403
        %p405 = pneg %p231
        %p406 = pneg %p228
        %s407 = sand.u32 %s218, 1
        %s408 = scalar_lea.sflag [#allocation18], %s407
        %s409 = sand.u32 %s218, 1
        %s410 = smul.addr %s409, 64
        %s411 = scalar_lea.vmem [#allocation17], %s410
        %s413 = scalar_lea.vmem [#allocation2], 144
        %vm414 = vcmask 31744
        %415 = vst.msk [vmem:[%s413] sm:$0xff] %vm414, 0
        %s416 = scalar_lea.vmem [#allocation2], 216
        %417 = vst.msk [vmem:[%s416] sm:$0xff] %vm414, 0
        %s418 = scalar_lea.vmem [#allocation2], 72
        %vm419 = vcmask 27648
        %420 = vst.msk [vmem:[%s418] sm:$0xf] %vm419, 0
        %421 = vst.msk [vmem:[%s418 + $0x8] sm:$0xf] %vm419, 0
        %422 = vst.msk [vmem:[%s418 + $0x10] sm:$0xf] %vm419, 0
        %423 = vst.msk [vmem:[%s418 + $0x18] sm:$0xf] %vm419, 0
        %424 = vst.msk [vmem:[%s418 + $0x20] sm:$0xf] %vm419, 0
        %425 = vst.msk [vmem:[%s418 + $0x28] sm:$0xf] %vm419, 0
        %426 = vst.msk [vmem:[%s418 + $0x30] sm:$0xf] %vm419, 0
        %427 = vst.msk [vmem:[%s418 + $0x38] sm:$0xf] %vm419, 0
        %428 = vst.msk [vmem:[%s418 + $0x40] sm:$0xf] %vm419, 0
        %429 = vst.msk [vmem:[%s416] sm:$0xf] %vm419, 0
        %430 = vst.msk [vmem:[%s416 + $0x8] sm:$0xf] %vm419, 0
        %431 = vst.msk [vmem:[%s416 + $0x10] sm:$0xf] %vm419, 0
        %432 = vst.msk [vmem:[%s416 + $0x18] sm:$0xf] %vm419, 0
        %433 = vst.msk [vmem:[%s416 + $0x20] sm:$0xf] %vm419, 0
        %434 = vst.msk [vmem:[%s416 + $0x28] sm:$0xf] %vm419, 0
        %435 = vst.msk [vmem:[%s416 + $0x30] sm:$0xf] %vm419, 0
        %436 = vst.msk [vmem:[%s416 + $0x38] sm:$0xf] %vm419, 0
        %437 = vst.msk [vmem:[%s416 + $0x40] sm:$0xf] %vm419, 0
        %v438 = vld [vmem:[%s350] sm:$0xff]
        %v439 = vld [vmem:[%s350 + $0x8] sm:$0xff]
        %v440 = vld [vmem:[%s350 + $0x10] sm:$0xff]
        %v441 = vld [vmem:[%s350 + $0x18] sm:$0xff]
        %v442 = vld [vmem:[%s350 + $0x20] sm:$0xff]
        %v443 = vld [vmem:[%s350 + $0x28] sm:$0xff]
        %v444 = vld [vmem:[%s350 + $0x30] sm:$0xff]
        %v445 = vld [vmem:[%s350 + $0x38] sm:$0xff]
        %v446 = vld [vmem:[%s350 + $0x40] sm:$0xff]
        %v447 = vld [vmem:[%s350 + $0x48] sm:$0xff]
        %v448 = vld [vmem:[%s350 + $0x50] sm:$0xff]
        %v449 = vld [vmem:[%s350 + $0x58] sm:$0xff]
        %v450 = vld [vmem:[%s350 + $0x60] sm:$0xff]
        %v451 = vld [vmem:[%s350 + $0x68] sm:$0xff]
        %v452 = vld [vmem:[%s350 + $0x70] sm:$0xff]
        %v453 = vld [vmem:[%s350 + $0x78] sm:$0xff]
        %v454 = vld [vmem:[%s350 + $0x80] sm:$0xff]
        %v455 = vld [vmem:[%s350 + $0x88] sm:$0xff]
        %v456 = vld [vmem:[%s350 + $0x90] sm:$0xff]
        %v457 = vld [vmem:[%s350 + $0x98] sm:$0xff]
        %v458 = vld [vmem:[%s350 + $0xa0] sm:$0xff]
        %v459 = vld [vmem:[%s350 + $0xa8] sm:$0xff]
        %v460 = vld [vmem:[%s350 + $0xb0] sm:$0xff]
        %v461 = vld [vmem:[%s350 + $0xb8] sm:$0xff]
        %v462 = vld [vmem:[%s350 + $0xc0] sm:$0xff]
        %v463 = vld [vmem:[%s350 + $0xc8] sm:$0xff]
        %v464 = vld [vmem:[%s350 + $0xd0] sm:$0xff]
        %v465 = vld [vmem:[%s350 + $0xd8] sm:$0xff]
        %v466 = vld [vmem:[%s350 + $0xe0] sm:$0xff]
        %v467 = vld [vmem:[%s350 + $0xe8] sm:$0xff]
        %v468 = vld [vmem:[%s350 + $0xf0] sm:$0xff]
        %v469 = vld [vmem:[%s350 + $0xf8] sm:$0xff]
        %v502 = vcombine.high %v438, %v438
        %v504 = vunpack.c.l.s4 1983009808
        %v505 = vunpack.c.0.s8 %v504
        %v506 = vlaneseq
        %v507 = vshrl.u32 %v506, 7
        %v508 = vsub.s32 %v505, %v507
        %v509 = vrot.slane %v438, %v508
        %v511 = vunpack.c.l.s4 1983009808
        %v512 = vunpack.c.0.s8 %v511
        %v513 = vlaneseq
        %v514 = vshrl.u32 %v513, 7
        %v515 = vsub.s32 %v512, %v514
        %v516 = vrot.slane %v502, %v515
        %v517 = vcombine.high %v509, %v509
        %v518 = vcombine.high %v516, %v516
        %v519 = vcombine.high %v439, %v439
        %v521 = vunpack.c.l.s4 1983009808
        %v522 = vunpack.c.0.s8 %v521
        %v523 = vlaneseq
        %v524 = vshrl.u32 %v523, 7
        %v525 = vsub.s32 %v522, %v524
        %v526 = vrot.slane %v439, %v525
        %v528 = vunpack.c.l.s4 1983009808
        %v529 = vunpack.c.0.s8 %v528
        %v530 = vlaneseq
        %v531 = vshrl.u32 %v530, 7
        %v532 = vsub.s32 %v529, %v531
        %v533 = vrot.slane %v519, %v532
        %v534 = vcombine.high %v526, %v526
        %v535 = vcombine.high %v533, %v533
        %v536 = vcombine.high %v440, %v440
        %v538 = vunpack.c.l.s4 1983009808
        %v539 = vunpack.c.0.s8 %v538
        %v540 = vlaneseq
        %v541 = vshrl.u32 %v540, 7
        %v542 = vsub.s32 %v539, %v541
        %v543 = vrot.slane %v440, %v542
        %v545 = vunpack.c.l.s4 1983009808
        %v546 = vunpack.c.0.s8 %v545
        %v547 = vlaneseq
        %v548 = vshrl.u32 %v547, 7
        %v549 = vsub.s32 %v546, %v548
        %v550 = vrot.slane %v536, %v549
        %v551 = vcombine.high %v543, %v543
        %v552 = vcombine.high %v550, %v550
        %v553 = vcombine.high %v441, %v441
        %v555 = vunpack.c.l.s4 1983009808
        %v556 = vunpack.c.0.s8 %v555
        %v557 = vlaneseq
        %v558 = vshrl.u32 %v557, 7
        %v559 = vsub.s32 %v556, %v558
        %v560 = vrot.slane %v441, %v559
        %v562 = vunpack.c.l.s4 1983009808
        %v563 = vunpack.c.0.s8 %v562
        %v564 = vlaneseq
        %v565 = vshrl.u32 %v564, 7
        %v566 = vsub.s32 %v563, %v565
        %v567 = vrot.slane %v553, %v566
        %v568 = vcombine.high %v560, %v560
        %v569 = vcombine.high %v567, %v567
        %v570 = vcombine.high %v442, %v442
        %v572 = vunpack.c.l.s4 1983009808
        %v573 = vunpack.c.0.s8 %v572
        %v574 = vlaneseq
        %v575 = vshrl.u32 %v574, 7
        %v576 = vsub.s32 %v573, %v575
        %v577 = vrot.slane %v442, %v576
        %v579 = vunpack.c.l.s4 1983009808
        %v580 = vunpack.c.0.s8 %v579
        %v581 = vlaneseq
        %v582 = vshrl.u32 %v581, 7
        %v583 = vsub.s32 %v580, %v582
        %v584 = vrot.slane %v570, %v583
        %v585 = vcombine.high %v577, %v577
        %v586 = vcombine.high %v584, %v584
        %v587 = vcombine.high %v443, %v443
        %v589 = vunpack.c.l.s4 1983009808
        %v590 = vunpack.c.0.s8 %v589
        %v591 = vlaneseq
        %v592 = vshrl.u32 %v591, 7
        %v593 = vsub.s32 %v590, %v592
        %v594 = vrot.slane %v443, %v593
        %v596 = vunpack.c.l.s4 1983009808
        %v597 = vunpack.c.0.s8 %v596
        %v598 = vlaneseq
        %v599 = vshrl.u32 %v598, 7
        %v600 = vsub.s32 %v597, %v599
        %v601 = vrot.slane %v587, %v600
        %v602 = vcombine.high %v594, %v594
        %v603 = vcombine.high %v601, %v601
        %v604 = vcombine.high %v444, %v444
        %v606 = vunpack.c.l.s4 1983009808
        %v607 = vunpack.c.0.s8 %v606
        %v608 = vlaneseq
        %v609 = vshrl.u32 %v608, 7
        %v610 = vsub.s32 %v607, %v609
        %v611 = vrot.slane %v444, %v610
        %v613 = vunpack.c.l.s4 1983009808
        %v614 = vunpack.c.0.s8 %v613
        %v615 = vlaneseq
        %v616 = vshrl.u32 %v615, 7
        %v617 = vsub.s32 %v614, %v616
        %v618 = vrot.slane %v604, %v617
        %v619 = vcombine.high %v611, %v611
        %v620 = vcombine.high %v618, %v618
        %v621 = vcombine.high %v445, %v445
        %v623 = vunpack.c.l.s4 1983009808
        %v624 = vunpack.c.0.s8 %v623
        %v625 = vlaneseq
        %v626 = vshrl.u32 %v625, 7
        %v627 = vsub.s32 %v624, %v626
        %v628 = vrot.slane %v445, %v627
        %v630 = vunpack.c.l.s4 1983009808
        %v631 = vunpack.c.0.s8 %v630
        %v632 = vlaneseq
        %v633 = vshrl.u32 %v632, 7
        %v634 = vsub.s32 %v631, %v633
        %v635 = vrot.slane %v621, %v634
        %v636 = vcombine.high %v628, %v628
        %v637 = vcombine.high %v635, %v635
        %v638 = vcombine.high %v446, %v446
        %v640 = vunpack.c.l.s4 1983009808
        %v641 = vunpack.c.0.s8 %v640
        %v642 = vlaneseq
        %v643 = vshrl.u32 %v642, 7
        %v644 = vsub.s32 %v641, %v643
        %v645 = vrot.slane %v446, %v644
        %v647 = vunpack.c.l.s4 1983009808
        %v648 = vunpack.c.0.s8 %v647
        %v649 = vlaneseq
        %v650 = vshrl.u32 %v649, 7
        %v651 = vsub.s32 %v648, %v650
        %v652 = vrot.slane %v638, %v651
        %v653 = vcombine.high %v645, %v645
        %v654 = vcombine.high %v652, %v652
        %v655 = vcombine.high %v447, %v447
        %v657 = vunpack.c.l.s4 1983009808
        %v658 = vunpack.c.0.s8 %v657
        %v659 = vlaneseq
        %v660 = vshrl.u32 %v659, 7
        %v661 = vsub.s32 %v658, %v660
        %v662 = vrot.slane %v447, %v661
        %v664 = vunpack.c.l.s4 1983009808
        %v665 = vunpack.c.0.s8 %v664
        %v666 = vlaneseq
        %v667 = vshrl.u32 %v666, 7
        %v668 = vsub.s32 %v665, %v667
        %v669 = vrot.slane %v655, %v668
        %v670 = vcombine.high %v662, %v662
        %v671 = vcombine.high %v669, %v669
        %v672 = vcombine.high %v448, %v448
        %v674 = vunpack.c.l.s4 1983009808
        %v675 = vunpack.c.0.s8 %v674
        %v676 = vlaneseq
        %v677 = vshrl.u32 %v676, 7
        %v678 = vsub.s32 %v675, %v677
        %v679 = vrot.slane %v448, %v678
        %v681 = vunpack.c.l.s4 1983009808
        %v682 = vunpack.c.0.s8 %v681
        %v683 = vlaneseq
        %v684 = vshrl.u32 %v683, 7
        %v685 = vsub.s32 %v682, %v684
        %v686 = vrot.slane %v672, %v685
        %v687 = vcombine.high %v679, %v679
        %v688 = vcombine.high %v686, %v686
        %v689 = vcombine.high %v449, %v449
        %v691 = vunpack.c.l.s4 1983009808
        %v692 = vunpack.c.0.s8 %v691
        %v693 = vlaneseq
        %v694 = vshrl.u32 %v693, 7
        %v695 = vsub.s32 %v692, %v694
        %v696 = vrot.slane %v449, %v695
        %v698 = vunpack.c.l.s4 1983009808
        %v699 = vunpack.c.0.s8 %v698
        %v700 = vlaneseq
        %v701 = vshrl.u32 %v700, 7
        %v702 = vsub.s32 %v699, %v701
        %v703 = vrot.slane %v689, %v702
        %v704 = vcombine.high %v696, %v696
        %v705 = vcombine.high %v703, %v703
        %v706 = vcombine.high %v450, %v450
        %v708 = vunpack.c.l.s4 1983009808
        %v709 = vunpack.c.0.s8 %v708
        %v710 = vlaneseq
        %v711 = vshrl.u32 %v710, 7
        %v712 = vsub.s32 %v709, %v711
        %v713 = vrot.slane %v450, %v712
        %v715 = vunpack.c.l.s4 1983009808
        %v716 = vunpack.c.0.s8 %v715
        %v717 = vlaneseq
        %v718 = vshrl.u32 %v717, 7
        %v719 = vsub.s32 %v716, %v718
        %v720 = vrot.slane %v706, %v719
        %v721 = vcombine.high %v713, %v713
        %v722 = vcombine.high %v720, %v720
        %v723 = vcombine.high %v451, %v451
        %v725 = vunpack.c.l.s4 1983009808
        %v726 = vunpack.c.0.s8 %v725
        %v727 = vlaneseq
        %v728 = vshrl.u32 %v727, 7
        %v729 = vsub.s32 %v726, %v728
        %v730 = vrot.slane %v451, %v729
        %v732 = vunpack.c.l.s4 1983009808
        %v733 = vunpack.c.0.s8 %v732
        %v734 = vlaneseq
        %v735 = vshrl.u32 %v734, 7
        %v736 = vsub.s32 %v733, %v735
        %v737 = vrot.slane %v723, %v736
        %v738 = vcombine.high %v730, %v730
        %v739 = vcombine.high %v737, %v737
        %v740 = vcombine.high %v452, %v452
        %v742 = vunpack.c.l.s4 1983009808
        %v743 = vunpack.c.0.s8 %v742
        %v744 = vlaneseq
        %v745 = vshrl.u32 %v744, 7
        %v746 = vsub.s32 %v743, %v745
        %v747 = vrot.slane %v452, %v746
        %v749 = vunpack.c.l.s4 1983009808
        %v750 = vunpack.c.0.s8 %v749
        %v751 = vlaneseq
        %v752 = vshrl.u32 %v751, 7
        %v753 = vsub.s32 %v750, %v752
        %v754 = vrot.slane %v740, %v753
        %v755 = vcombine.high %v747, %v747
        %v756 = vcombine.high %v754, %v754
        %v757 = vcombine.high %v453, %v453
        %v759 = vunpack.c.l.s4 1983009808
        %v760 = vunpack.c.0.s8 %v759
        %v761 = vlaneseq
        %v762 = vshrl.u32 %v761, 7
        %v763 = vsub.s32 %v760, %v762
        %v764 = vrot.slane %v453, %v763
        %v766 = vunpack.c.l.s4 1983009808
        %v767 = vunpack.c.0.s8 %v766
        %v768 = vlaneseq
        %v769 = vshrl.u32 %v768, 7
        %v770 = vsub.s32 %v767, %v769
        %v771 = vrot.slane %v757, %v770
        %v772 = vcombine.high %v764, %v764
        %v773 = vcombine.high %v771, %v771
        %v774 = vcombine.high %v454, %v454
        %v776 = vunpack.c.l.s4 1983009808
        %v777 = vunpack.c.0.s8 %v776
        %v778 = vlaneseq
        %v779 = vshrl.u32 %v778, 7
        %v780 = vsub.s32 %v777, %v779
        %v781 = vrot.slane %v454, %v780
        %v783 = vunpack.c.l.s4 1983009808
        %v784 = vunpack.c.0.s8 %v783
        %v785 = vlaneseq
        %v786 = vshrl.u32 %v785, 7
        %v787 = vsub.s32 %v784, %v786
        %v788 = vrot.slane %v774, %v787
        %v789 = vcombine.high %v781, %v781
        %v790 = vcombine.high %v788, %v788
        %v791 = vcombine.high %v455, %v455
        %v793 = vunpack.c.l.s4 1983009808
        %v794 = vunpack.c.0.s8 %v793
        %v795 = vlaneseq
        %v796 = vshrl.u32 %v795, 7
        %v797 = vsub.s32 %v794, %v796
        %v798 = vrot.slane %v455, %v797
        %v800 = vunpack.c.l.s4 1983009808
        %v801 = vunpack.c.0.s8 %v800
        %v802 = vlaneseq
        %v803 = vshrl.u32 %v802, 7
        %v804 = vsub.s32 %v801, %v803
        %v805 = vrot.slane %v791, %v804
        %v806 = vcombine.high %v798, %v798
        %v807 = vcombine.high %v805, %v805
        %v808 = vcombine.high %v456, %v456
        %v810 = vunpack.c.l.s4 1983009808
        %v811 = vunpack.c.0.s8 %v810
        %v812 = vlaneseq
        %v813 = vshrl.u32 %v812, 7
        %v814 = vsub.s32 %v811, %v813
        %v815 = vrot.slane %v456, %v814
        %v817 = vunpack.c.l.s4 1983009808
        %v818 = vunpack.c.0.s8 %v817
        %v819 = vlaneseq
        %v820 = vshrl.u32 %v819, 7
        %v821 = vsub.s32 %v818, %v820
        %v822 = vrot.slane %v808, %v821
        %v823 = vcombine.high %v815, %v815
        %v824 = vcombine.high %v822, %v822
        %v825 = vcombine.high %v457, %v457
        %v827 = vunpack.c.l.s4 1983009808
        %v828 = vunpack.c.0.s8 %v827
        %v829 = vlaneseq
        %v830 = vshrl.u32 %v829, 7
        %v831 = vsub.s32 %v828, %v830
        %v832 = vrot.slane %v457, %v831
        %v834 = vunpack.c.l.s4 1983009808
        %v835 = vunpack.c.0.s8 %v834
        %v836 = vlaneseq
        %v837 = vshrl.u32 %v836, 7
        %v838 = vsub.s32 %v835, %v837
        %v839 = vrot.slane %v825, %v838
        %v840 = vcombine.high %v832, %v832
        %v841 = vcombine.high %v839, %v839
        %v842 = vcombine.high %v458, %v458
        %v844 = vunpack.c.l.s4 1983009808
        %v845 = vunpack.c.0.s8 %v844
        %v846 = vlaneseq
        %v847 = vshrl.u32 %v846, 7
        %v848 = vsub.s32 %v845, %v847
        %v849 = vrot.slane %v458, %v848
        %v851 = vunpack.c.l.s4 1983009808
        %v852 = vunpack.c.0.s8 %v851
        %v853 = vlaneseq
        %v854 = vshrl.u32 %v853, 7
        %v855 = vsub.s32 %v852, %v854
        %v856 = vrot.slane %v842, %v855
        %v857 = vcombine.high %v849, %v849
        %v858 = vcombine.high %v856, %v856
        %v859 = vcombine.high %v459, %v459
        %v861 = vunpack.c.l.s4 1983009808
        %v862 = vunpack.c.0.s8 %v861
        %v863 = vlaneseq
        %v864 = vshrl.u32 %v863, 7
        %v865 = vsub.s32 %v862, %v864
        %v866 = vrot.slane %v459, %v865
        %v868 = vunpack.c.l.s4 1983009808
        %v869 = vunpack.c.0.s8 %v868
        %v870 = vlaneseq
        %v871 = vshrl.u32 %v870, 7
        %v872 = vsub.s32 %v869, %v871
        %v873 = vrot.slane %v859, %v872
        %v874 = vcombine.high %v866, %v866
        %v875 = vcombine.high %v873, %v873
        %v876 = vcombine.high %v460, %v460
        %v878 = vunpack.c.l.s4 1983009808
        %v879 = vunpack.c.0.s8 %v878
        %v880 = vlaneseq
        %v881 = vshrl.u32 %v880, 7
        %v882 = vsub.s32 %v879, %v881
        %v883 = vrot.slane %v460, %v882
        %v885 = vunpack.c.l.s4 1983009808
        %v886 = vunpack.c.0.s8 %v885
        %v887 = vlaneseq
        %v888 = vshrl.u32 %v887, 7
        %v889 = vsub.s32 %v886, %v888
        %v890 = vrot.slane %v876, %v889
        %v891 = vcombine.high %v883, %v883
        %v892 = vcombine.high %v890, %v890
        %v893 = vcombine.high %v461, %v461
        %v895 = vunpack.c.l.s4 1983009808
        %v896 = vunpack.c.0.s8 %v895
        %v897 = vlaneseq
        %v898 = vshrl.u32 %v897, 7
        %v899 = vsub.s32 %v896, %v898
        %v900 = vrot.slane %v461, %v899
        %v902 = vunpack.c.l.s4 1983009808
        %v903 = vunpack.c.0.s8 %v902
        %v904 = vlaneseq
        %v905 = vshrl.u32 %v904, 7
        %v906 = vsub.s32 %v903, %v905
        %v907 = vrot.slane %v893, %v906
        %v908 = vcombine.high %v900, %v900
        %v909 = vcombine.high %v907, %v907
        %v910 = vcombine.high %v462, %v462
        %v912 = vunpack.c.l.s4 1983009808
        %v913 = vunpack.c.0.s8 %v912
        %v914 = vlaneseq
        %v915 = vshrl.u32 %v914, 7
        %v916 = vsub.s32 %v913, %v915
        %v917 = vrot.slane %v462, %v916
        %v919 = vunpack.c.l.s4 1983009808
        %v920 = vunpack.c.0.s8 %v919
        %v921 = vlaneseq
        %v922 = vshrl.u32 %v921, 7
        %v923 = vsub.s32 %v920, %v922
        %v924 = vrot.slane %v910, %v923
        %v925 = vcombine.high %v917, %v917
        %v926 = vcombine.high %v924, %v924
        %v927 = vcombine.high %v463, %v463
        %v929 = vunpack.c.l.s4 1983009808
        %v930 = vunpack.c.0.s8 %v929
        %v931 = vlaneseq
        %v932 = vshrl.u32 %v931, 7
        %v933 = vsub.s32 %v930, %v932
        %v934 = vrot.slane %v463, %v933
        %v936 = vunpack.c.l.s4 1983009808
        %v937 = vunpack.c.0.s8 %v936
        %v938 = vlaneseq
        %v939 = vshrl.u32 %v938, 7
        %v940 = vsub.s32 %v937, %v939
        %v941 = vrot.slane %v927, %v940
        %v942 = vcombine.high %v934, %v934
        %v943 = vcombine.high %v941, %v941
        %v944 = vcombine.high %v464, %v464
        %v946 = vunpack.c.l.s4 1983009808
        %v947 = vunpack.c.0.s8 %v946
        %v948 = vlaneseq
        %v949 = vshrl.u32 %v948, 7
        %v950 = vsub.s32 %v947, %v949
        %v951 = vrot.slane %v464, %v950
        %v953 = vunpack.c.l.s4 1983009808
        %v954 = vunpack.c.0.s8 %v953
        %v955 = vlaneseq
        %v956 = vshrl.u32 %v955, 7
        %v957 = vsub.s32 %v954, %v956
        %v958 = vrot.slane %v944, %v957
        %v959 = vcombine.high %v951, %v951
        %v960 = vcombine.high %v958, %v958
        %v961 = vcombine.high %v465, %v465
        %v963 = vunpack.c.l.s4 1983009808
        %v964 = vunpack.c.0.s8 %v963
        %v965 = vlaneseq
        %v966 = vshrl.u32 %v965, 7
        %v967 = vsub.s32 %v964, %v966
        %v968 = vrot.slane %v465, %v967
        %v970 = vunpack.c.l.s4 1983009808
        %v971 = vunpack.c.0.s8 %v970
        %v972 = vlaneseq
        %v973 = vshrl.u32 %v972, 7
        %v974 = vsub.s32 %v971, %v973
        %v975 = vrot.slane %v961, %v974
        %v976 = vcombine.high %v968, %v968
        %v977 = vcombine.high %v975, %v975
        %v978 = vcombine.high %v466, %v466
        %v980 = vunpack.c.l.s4 1983009808
        %v981 = vunpack.c.0.s8 %v980
        %v982 = vlaneseq
        %v983 = vshrl.u32 %v982, 7
        %v984 = vsub.s32 %v981, %v983
        %v985 = vrot.slane %v466, %v984
        %v987 = vunpack.c.l.s4 1983009808
        %v988 = vunpack.c.0.s8 %v987
        %v989 = vlaneseq
        %v990 = vshrl.u32 %v989, 7
        %v991 = vsub.s32 %v988, %v990
        %v992 = vrot.slane %v978, %v991
        %v993 = vcombine.high %v985, %v985
        %v994 = vcombine.high %v992, %v992
        %v995 = vcombine.high %v467, %v467
        %v997 = vunpack.c.l.s4 1983009808
        %v998 = vunpack.c.0.s8 %v997
        %v999 = vlaneseq
        %v1000 = vshrl.u32 %v999, 7
        %v1001 = vsub.s32 %v998, %v1000
        %v1002 = vrot.slane %v467, %v1001
        %v1004 = vunpack.c.l.s4 1983009808
        %v1005 = vunpack.c.0.s8 %v1004
        %v1006 = vlaneseq
        %v1007 = vshrl.u32 %v1006, 7
        %v1008 = vsub.s32 %v1005, %v1007
        %v1009 = vrot.slane %v995, %v1008
        %v1010 = vcombine.high %v1002, %v1002
        %v1011 = vcombine.high %v1009, %v1009
        %v1012 = vcombine.high %v468, %v468
        %v1014 = vunpack.c.l.s4 1983009808
        %v1015 = vunpack.c.0.s8 %v1014
        %v1016 = vlaneseq
        %v1017 = vshrl.u32 %v1016, 7
        %v1018 = vsub.s32 %v1015, %v1017
        %v1019 = vrot.slane %v468, %v1018
        %v1021 = vunpack.c.l.s4 1983009808
        %v1022 = vunpack.c.0.s8 %v1021
        %v1023 = vlaneseq
        %v1024 = vshrl.u32 %v1023, 7
        %v1025 = vsub.s32 %v1022, %v1024
        %v1026 = vrot.slane %v1012, %v1025
        %v1027 = vcombine.high %v1019, %v1019
        %v1028 = vcombine.high %v1026, %v1026
        %v1029 = vcombine.high %v469, %v469
        %v1031 = vunpack.c.l.s4 1983009808
        %v1032 = vunpack.c.0.s8 %v1031
        %v1033 = vlaneseq
        %v1034 = vshrl.u32 %v1033, 7
        %v1035 = vsub.s32 %v1032, %v1034
        %v1036 = vrot.slane %v469, %v1035
        %v1038 = vunpack.c.l.s4 1983009808
        %v1039 = vunpack.c.0.s8 %v1038
        %v1040 = vlaneseq
        %v1041 = vshrl.u32 %v1040, 7
        %v1042 = vsub.s32 %v1039, %v1041
        %v1043 = vrot.slane %v1029, %v1042
        %v1044 = vcombine.high %v1036, %v1036
        %v1045 = vcombine.high %v1043, %v1043
        %v1174 = vrot.slane %v509, 7
        %v1175 = vrot.slane %v1174, 2
        %v1176 = vrot.slane %v517, 7
        %v1177 = vrot.slane %v1176, 2
        %v1178 = vrot.slane %v516, 7
        %v1179 = vrot.slane %v1178, 2
        %v1180 = vrot.slane %v518, 7
        %v1181 = vrot.slane %v1180, 2
        %v1182 = vrot.slane %v526, 7
        %v1183 = vrot.slane %v1182, 2
        %v1184 = vrot.slane %v534, 7
        %v1185 = vrot.slane %v1184, 2
        %v1186 = vrot.slane %v533, 7
        %v1187 = vrot.slane %v1186, 2
        %v1188 = vrot.slane %v535, 7
        %v1189 = vrot.slane %v1188, 2
        %v1190 = vrot.slane %v577, 7
        %v1191 = vrot.slane %v1190, 2
        %v1192 = vrot.slane %v585, 7
        %v1193 = vrot.slane %v1192, 2
        %v1194 = vrot.slane %v584, 7
        %v1195 = vrot.slane %v1194, 2
        %v1196 = vrot.slane %v586, 7
        %v1197 = vrot.slane %v1196, 2
        %v1198 = vrot.slane %v594, 7
        %v1199 = vrot.slane %v1198, 2
        %v1200 = vrot.slane %v602, 7
        %v1201 = vrot.slane %v1200, 2
        %v1202 = vrot.slane %v601, 7
        %v1203 = vrot.slane %v1202, 2
        %v1204 = vrot.slane %v603, 7
        %v1205 = vrot.slane %v1204, 2
        %v1206 = vrot.slane %v645, 7
        %v1207 = vrot.slane %v1206, 2
        %v1208 = vrot.slane %v653, 7
        %v1209 = vrot.slane %v1208, 2
        %v1210 = vrot.slane %v652, 7
        %v1211 = vrot.slane %v1210, 2
        %v1212 = vrot.slane %v654, 7
        %v1213 = vrot.slane %v1212, 2
        %v1214 = vrot.slane %v662, 7
        %v1215 = vrot.slane %v1214, 2
        %v1216 = vrot.slane %v670, 7
        %v1217 = vrot.slane %v1216, 2
        %v1218 = vrot.slane %v669, 7
        %v1219 = vrot.slane %v1218, 2
        %v1220 = vrot.slane %v671, 7
        %v1221 = vrot.slane %v1220, 2
        %v1222 = vrot.slane %v713, 7
        %v1223 = vrot.slane %v1222, 2
        %v1224 = vrot.slane %v721, 7
        %v1225 = vrot.slane %v1224, 2
        %v1226 = vrot.slane %v720, 7
        %v1227 = vrot.slane %v1226, 2
        %v1228 = vrot.slane %v722, 7
        %v1229 = vrot.slane %v1228, 2
        %v1230 = vrot.slane %v730, 7
        %v1231 = vrot.slane %v1230, 2
        %v1232 = vrot.slane %v738, 7
        %v1233 = vrot.slane %v1232, 2
        %v1234 = vrot.slane %v737, 7
        %v1235 = vrot.slane %v1234, 2
        %v1236 = vrot.slane %v739, 7
        %v1237 = vrot.slane %v1236, 2
        %v1238 = vrot.slane %v781, 7
        %v1239 = vrot.slane %v1238, 2
        %v1240 = vrot.slane %v789, 7
        %v1241 = vrot.slane %v1240, 2
        %v1242 = vrot.slane %v788, 7
        %v1243 = vrot.slane %v1242, 2
        %v1244 = vrot.slane %v790, 7
        %v1245 = vrot.slane %v1244, 2
        %v1246 = vrot.slane %v798, 7
        %v1247 = vrot.slane %v1246, 2
        %v1248 = vrot.slane %v806, 7
        %v1249 = vrot.slane %v1248, 2
        %v1250 = vrot.slane %v805, 7
        %v1251 = vrot.slane %v1250, 2
        %v1252 = vrot.slane %v807, 7
        %v1253 = vrot.slane %v1252, 2
        %v1254 = vrot.slane %v849, 7
        %v1255 = vrot.slane %v1254, 2
        %v1256 = vrot.slane %v857, 7
        %v1257 = vrot.slane %v1256, 2
        %v1258 = vrot.slane %v856, 7
        %v1259 = vrot.slane %v1258, 2
        %v1260 = vrot.slane %v858, 7
        %v1261 = vrot.slane %v1260, 2
        %v1262 = vrot.slane %v866, 7
        %v1263 = vrot.slane %v1262, 2
        %v1264 = vrot.slane %v874, 7
        %v1265 = vrot.slane %v1264, 2
        %v1266 = vrot.slane %v873, 7
        %v1267 = vrot.slane %v1266, 2
        %v1268 = vrot.slane %v875, 7
        %v1269 = vrot.slane %v1268, 2
        %v1270 = vrot.slane %v917, 7
        %v1271 = vrot.slane %v1270, 2
        %v1272 = vrot.slane %v925, 7
        %v1273 = vrot.slane %v1272, 2
        %v1274 = vrot.slane %v924, 7
        %v1275 = vrot.slane %v1274, 2
        %v1276 = vrot.slane %v926, 7
        %v1277 = vrot.slane %v1276, 2
        %v1278 = vrot.slane %v934, 7
        %v1279 = vrot.slane %v1278, 2
        %v1280 = vrot.slane %v942, 7
        %v1281 = vrot.slane %v1280, 2
        %v1282 = vrot.slane %v941, 7
        %v1283 = vrot.slane %v1282, 2
        %v1284 = vrot.slane %v943, 7
        %v1285 = vrot.slane %v1284, 2
        %v1286 = vrot.slane %v985, 7
        %v1287 = vrot.slane %v1286, 2
        %v1288 = vrot.slane %v993, 7
        %v1289 = vrot.slane %v1288, 2
        %v1290 = vrot.slane %v992, 7
        %v1291 = vrot.slane %v1290, 2
        %v1292 = vrot.slane %v994, 7
        %v1293 = vrot.slane %v1292, 2
        %v1294 = vrot.slane %v1002, 7
        %v1295 = vrot.slane %v1294, 2
        %v1296 = vrot.slane %v1010, 7
        %v1297 = vrot.slane %v1296, 2
        %v1298 = vrot.slane %v1009, 7
        %v1299 = vrot.slane %v1298, 2
        %v1300 = vrot.slane %v1011, 7
        %v1301 = vrot.slane %v1300, 2
        %v1366 = vmax.f32 %v509, %v1175
        %v1367 = vmax.f32 %v517, %v1177
        %v1368 = vmax.f32 %v516, %v1179
        %v1369 = vmax.f32 %v518, %v1181
        %v1370 = vmax.f32 %v526, %v1183
        %v1371 = vmax.f32 %v534, %v1185
        %v1372 = vmax.f32 %v533, %v1187
        %v1373 = vmax.f32 %v535, %v1189
        %v1374 = vmax.f32 %v577, %v1191
        %v1375 = vmax.f32 %v585, %v1193
        %v1376 = vmax.f32 %v584, %v1195
        %v1377 = vmax.f32 %v586, %v1197
        %v1378 = vmax.f32 %v594, %v1199
        %v1379 = vmax.f32 %v602, %v1201
        %v1380 = vmax.f32 %v601, %v1203
        %v1381 = vmax.f32 %v603, %v1205
        %v1382 = vmax.f32 %v645, %v1207
        %v1383 = vmax.f32 %v653, %v1209
        %v1384 = vmax.f32 %v652, %v1211
        %v1385 = vmax.f32 %v654, %v1213
        %v1386 = vmax.f32 %v662, %v1215
        %v1387 = vmax.f32 %v670, %v1217
        %v1388 = vmax.f32 %v669, %v1219
        %v1389 = vmax.f32 %v671, %v1221
        %v1390 = vmax.f32 %v713, %v1223
        %v1391 = vmax.f32 %v721, %v1225
        %v1392 = vmax.f32 %v720, %v1227
        %v1393 = vmax.f32 %v722, %v1229
        %v1394 = vmax.f32 %v730, %v1231
        %v1395 = vmax.f32 %v738, %v1233
        %v1396 = vmax.f32 %v737, %v1235
        %v1397 = vmax.f32 %v739, %v1237
        %v1398 = vmax.f32 %v781, %v1239
        %v1399 = vmax.f32 %v789, %v1241
        %v1400 = vmax.f32 %v788, %v1243
        %v1401 = vmax.f32 %v790, %v1245
        %v1402 = vmax.f32 %v798, %v1247
        %v1403 = vmax.f32 %v806, %v1249
        %v1404 = vmax.f32 %v805, %v1251
        %v1405 = vmax.f32 %v807, %v1253
        %v1406 = vmax.f32 %v849, %v1255
        %v1407 = vmax.f32 %v857, %v1257
        %v1408 = vmax.f32 %v856, %v1259
        %v1409 = vmax.f32 %v858, %v1261
        %v1410 = vmax.f32 %v866, %v1263
        %v1411 = vmax.f32 %v874, %v1265
        %v1412 = vmax.f32 %v873, %v1267
        %v1413 = vmax.f32 %v875, %v1269
        %v1414 = vmax.f32 %v917, %v1271
        %v1415 = vmax.f32 %v925, %v1273
        %v1416 = vmax.f32 %v924, %v1275
        %v1417 = vmax.f32 %v926, %v1277
        %v1418 = vmax.f32 %v934, %v1279
        %v1419 = vmax.f32 %v942, %v1281
        %v1420 = vmax.f32 %v941, %v1283
        %v1421 = vmax.f32 %v943, %v1285
        %v1422 = vmax.f32 %v985, %v1287
        %v1423 = vmax.f32 %v993, %v1289
        %v1424 = vmax.f32 %v992, %v1291
        %v1425 = vmax.f32 %v994, %v1293
        %v1426 = vmax.f32 %v1002, %v1295
        %v1427 = vmax.f32 %v1010, %v1297
        %v1428 = vmax.f32 %v1009, %v1299
        %v1429 = vmax.f32 %v1011, %v1301
        %v1430 = vrot.slane %v543, 7
        %v1431 = vrot.slane %v1430, 2
        %v1432 = vrot.slane %v551, 7
        %v1433 = vrot.slane %v1432, 2
        %v1434 = vrot.slane %v550, 7
        %v1435 = vrot.slane %v1434, 2
        %v1436 = vrot.slane %v552, 7
        %v1437 = vrot.slane %v1436, 2
        %v1438 = vrot.slane %v560, 7
        %v1439 = vrot.slane %v1438, 2
        %v1440 = vrot.slane %v568, 7
        %v1441 = vrot.slane %v1440, 2
        %v1442 = vrot.slane %v567, 7
        %v1443 = vrot.slane %v1442, 2
        %v1444 = vrot.slane %v569, 7
        %v1445 = vrot.slane %v1444, 2
        %v1446 = vrot.slane %v611, 7
        %v1447 = vrot.slane %v1446, 2
        %v1448 = vrot.slane %v619, 7
        %v1449 = vrot.slane %v1448, 2
        %v1450 = vrot.slane %v618, 7
        %v1451 = vrot.slane %v1450, 2
        %v1452 = vrot.slane %v620, 7
        %v1453 = vrot.slane %v1452, 2
        %v1454 = vrot.slane %v628, 7
        %v1455 = vrot.slane %v1454, 2
        %v1456 = vrot.slane %v636, 7
        %v1457 = vrot.slane %v1456, 2
        %v1458 = vrot.slane %v635, 7
        %v1459 = vrot.slane %v1458, 2
        %v1460 = vrot.slane %v637, 7
        %v1461 = vrot.slane %v1460, 2
        %v1462 = vrot.slane %v679, 7
        %v1463 = vrot.slane %v1462, 2
        %v1464 = vrot.slane %v687, 7
        %v1465 = vrot.slane %v1464, 2
        %v1466 = vrot.slane %v686, 7
        %v1467 = vrot.slane %v1466, 2
        %v1468 = vrot.slane %v688, 7
        %v1469 = vrot.slane %v1468, 2
        %v1470 = vrot.slane %v696, 7
        %v1471 = vrot.slane %v1470, 2
        %v1472 = vrot.slane %v704, 7
        %v1473 = vrot.slane %v1472, 2
        %v1474 = vrot.slane %v703, 7
        %v1475 = vrot.slane %v1474, 2
        %v1476 = vrot.slane %v705, 7
        %v1477 = vrot.slane %v1476, 2
        %v1478 = vrot.slane %v747, 7
        %v1479 = vrot.slane %v1478, 2
        %v1480 = vrot.slane %v755, 7
        %v1481 = vrot.slane %v1480, 2
        %v1482 = vrot.slane %v754, 7
        %v1483 = vrot.slane %v1482, 2
        %v1484 = vrot.slane %v756, 7
        %v1485 = vrot.slane %v1484, 2
        %v1486 = vrot.slane %v764, 7
        %v1487 = vrot.slane %v1486, 2
        %v1488 = vrot.slane %v772, 7
        %v1489 = vrot.slane %v1488, 2
        %v1490 = vrot.slane %v771, 7
        %v1491 = vrot.slane %v1490, 2
        %v1492 = vrot.slane %v773, 7
        %v1493 = vrot.slane %v1492, 2
        %v1494 = vrot.slane %v815, 7
        %v1495 = vrot.slane %v1494, 2
        %v1496 = vrot.slane %v823, 7
        %v1497 = vrot.slane %v1496, 2
        %v1498 = vrot.slane %v822, 7
        %v1499 = vrot.slane %v1498, 2
        %v1500 = vrot.slane %v824, 7
        %v1501 = vrot.slane %v1500, 2
        %v1502 = vrot.slane %v832, 7
        %v1503 = vrot.slane %v1502, 2
        %v1504 = vrot.slane %v840, 7
        %v1505 = vrot.slane %v1504, 2
        %v1506 = vrot.slane %v839, 7
        %v1507 = vrot.slane %v1506, 2
        %v1508 = vrot.slane %v841, 7
        %v1509 = vrot.slane %v1508, 2
        %v1510 = vrot.slane %v883, 7
        %v1511 = vrot.slane %v1510, 2
        %v1512 = vrot.slane %v891, 7
        %v1513 = vrot.slane %v1512, 2
        %v1514 = vrot.slane %v890, 7
        %v1515 = vrot.slane %v1514, 2
        %v1516 = vrot.slane %v892, 7
        %v1517 = vrot.slane %v1516, 2
        %v1518 = vrot.slane %v900, 7
        %v1519 = vrot.slane %v1518, 2
        %v1520 = vrot.slane %v908, 7
        %v1521 = vrot.slane %v1520, 2
        %v1522 = vrot.slane %v907, 7
        %v1523 = vrot.slane %v1522, 2
        %v1524 = vrot.slane %v909, 7
        %v1525 = vrot.slane %v1524, 2
        %v1526 = vrot.slane %v951, 7
        %v1527 = vrot.slane %v1526, 2
        %v1528 = vrot.slane %v959, 7
        %v1529 = vrot.slane %v1528, 2
        %v1530 = vrot.slane %v958, 7
        %v1531 = vrot.slane %v1530, 2
        %v1532 = vrot.slane %v960, 7
        %v1533 = vrot.slane %v1532, 2
        %v1534 = vrot.slane %v968, 7
        %v1535 = vrot.slane %v1534, 2
        %v1536 = vrot.slane %v976, 7
        %v1537 = vrot.slane %v1536, 2
        %v1538 = vrot.slane %v975, 7
        %v1539 = vrot.slane %v1538, 2
        %v1540 = vrot.slane %v977, 7
        %v1541 = vrot.slane %v1540, 2
        %v1542 = vrot.slane %v1019, 7
        %v1543 = vrot.slane %v1542, 2
        %v1544 = vrot.slane %v1027, 7
        %v1545 = vrot.slane %v1544, 2
        %v1546 = vrot.slane %v1026, 7
        %v1547 = vrot.slane %v1546, 2
        %v1548 = vrot.slane %v1028, 7
        %v1549 = vrot.slane %v1548, 2
        %v1550 = vrot.slane %v1036, 7
        %v1551 = vrot.slane %v1550, 2
        %v1552 = vrot.slane %v1044, 7
        %v1553 = vrot.slane %v1552, 2
        %v1554 = vrot.slane %v1043, 7
        %v1555 = vrot.slane %v1554, 2
        %v1556 = vrot.slane %v1045, 7
        %v1557 = vrot.slane %v1556, 2
        %v1622 = vmax.f32 %v543, %v1431
        %v1623 = vmax.f32 %v551, %v1433
        %v1624 = vmax.f32 %v550, %v1435
        %v1625 = vmax.f32 %v552, %v1437
        %v1626 = vmax.f32 %v560, %v1439
        %v1627 = vmax.f32 %v568, %v1441
        %v1628 = vmax.f32 %v567, %v1443
        %v1629 = vmax.f32 %v569, %v1445
        %v1630 = vmax.f32 %v611, %v1447
        %v1631 = vmax.f32 %v619, %v1449
        %v1632 = vmax.f32 %v618, %v1451
        %v1633 = vmax.f32 %v620, %v1453
        %v1634 = vmax.f32 %v628, %v1455
        %v1635 = vmax.f32 %v636, %v1457
        %v1636 = vmax.f32 %v635, %v1459
        %v1637 = vmax.f32 %v637, %v1461
        %v1638 = vmax.f32 %v679, %v1463
        %v1639 = vmax.f32 %v687, %v1465
        %v1640 = vmax.f32 %v686, %v1467
        %v1641 = vmax.f32 %v688, %v1469
        %v1642 = vmax.f32 %v696, %v1471
        %v1643 = vmax.f32 %v704, %v1473
        %v1644 = vmax.f32 %v703, %v1475
        %v1645 = vmax.f32 %v705, %v1477
        %v1646 = vmax.f32 %v747, %v1479
        %v1647 = vmax.f32 %v755, %v1481
        %v1648 = vmax.f32 %v754, %v1483
        %v1649 = vmax.f32 %v756, %v1485
        %v1650 = vmax.f32 %v764, %v1487
        %v1651 = vmax.f32 %v772, %v1489
        %v1652 = vmax.f32 %v771, %v1491
        %v1653 = vmax.f32 %v773, %v1493
        %v1654 = vmax.f32 %v815, %v1495
        %v1655 = vmax.f32 %v823, %v1497
        %v1656 = vmax.f32 %v822, %v1499
        %v1657 = vmax.f32 %v824, %v1501
        %v1658 = vmax.f32 %v832, %v1503
        %v1659 = vmax.f32 %v840, %v1505
        %v1660 = vmax.f32 %v839, %v1507
        %v1661 = vmax.f32 %v841, %v1509
        %v1662 = vmax.f32 %v883, %v1511
        %v1663 = vmax.f32 %v891, %v1513
        %v1664 = vmax.f32 %v890, %v1515
        %v1665 = vmax.f32 %v892, %v1517
        %v1666 = vmax.f32 %v900, %v1519
        %v1667 = vmax.f32 %v908, %v1521
        %v1668 = vmax.f32 %v907, %v1523
        %v1669 = vmax.f32 %v909, %v1525
        %v1670 = vmax.f32 %v951, %v1527
        %v1671 = vmax.f32 %v959, %v1529
        %v1672 = vmax.f32 %v958, %v1531
        %v1673 = vmax.f32 %v960, %v1533
        %v1674 = vmax.f32 %v968, %v1535
        %v1675 = vmax.f32 %v976, %v1537
        %v1676 = vmax.f32 %v975, %v1539
        %v1677 = vmax.f32 %v977, %v1541
        %v1678 = vmax.f32 %v1019, %v1543
        %v1679 = vmax.f32 %v1027, %v1545
        %v1680 = vmax.f32 %v1026, %v1547
        %v1681 = vmax.f32 %v1028, %v1549
        %v1682 = vmax.f32 %v1036, %v1551
        %v1683 = vmax.f32 %v1044, %v1553
        %v1684 = vmax.f32 %v1043, %v1555
        %v1685 = vmax.f32 %v1045, %v1557
        %v1686 = vmax.f32 %v1366, %v1622
        %v1687 = vmax.f32 %v1367, %v1623
        %v1688 = vmax.f32 %v1368, %v1624
        %v1689 = vmax.f32 %v1369, %v1625
        %v1690 = vmax.f32 %v1370, %v1626
        %v1691 = vmax.f32 %v1371, %v1627
        %v1692 = vmax.f32 %v1372, %v1628
        %v1693 = vmax.f32 %v1373, %v1629
        %v1694 = vmax.f32 %v1374, %v1630
        %v1695 = vmax.f32 %v1375, %v1631
        %v1696 = vmax.f32 %v1376, %v1632
        %v1697 = vmax.f32 %v1377, %v1633
        %v1698 = vmax.f32 %v1378, %v1634
        %v1699 = vmax.f32 %v1379, %v1635
        %v1700 = vmax.f32 %v1380, %v1636
        %v1701 = vmax.f32 %v1381, %v1637
        %v1702 = vmax.f32 %v1382, %v1638
        %v1703 = vmax.f32 %v1383, %v1639
        %v1704 = vmax.f32 %v1384, %v1640
        %v1705 = vmax.f32 %v1385, %v1641
        %v1706 = vmax.f32 %v1386, %v1642
        %v1707 = vmax.f32 %v1387, %v1643
        %v1708 = vmax.f32 %v1388, %v1644
        %v1709 = vmax.f32 %v1389, %v1645
        %v1710 = vmax.f32 %v1390, %v1646
        %v1711 = vmax.f32 %v1391, %v1647
        %v1712 = vmax.f32 %v1392, %v1648
        %v1713 = vmax.f32 %v1393, %v1649
        %v1714 = vmax.f32 %v1394, %v1650
        %v1715 = vmax.f32 %v1395, %v1651
        %v1716 = vmax.f32 %v1396, %v1652
        %v1717 = vmax.f32 %v1397, %v1653
        %v1718 = vmax.f32 %v1398, %v1654
        %v1719 = vmax.f32 %v1399, %v1655
        %v1720 = vmax.f32 %v1400, %v1656
        %v1721 = vmax.f32 %v1401, %v1657
        %v1722 = vmax.f32 %v1402, %v1658
        %v1723 = vmax.f32 %v1403, %v1659
        %v1724 = vmax.f32 %v1404, %v1660
        %v1725 = vmax.f32 %v1405, %v1661
        %v1726 = vmax.f32 %v1406, %v1662
        %v1727 = vmax.f32 %v1407, %v1663
        %v1728 = vmax.f32 %v1408, %v1664
        %v1729 = vmax.f32 %v1409, %v1665
        %v1730 = vmax.f32 %v1410, %v1666
        %v1731 = vmax.f32 %v1411, %v1667
        %v1732 = vmax.f32 %v1412, %v1668
        %v1733 = vmax.f32 %v1413, %v1669
        %v1734 = vmax.f32 %v1414, %v1670
        %v1735 = vmax.f32 %v1415, %v1671
        %v1736 = vmax.f32 %v1416, %v1672
        %v1737 = vmax.f32 %v1417, %v1673
        %v1738 = vmax.f32 %v1418, %v1674
        %v1739 = vmax.f32 %v1419, %v1675
        %v1740 = vmax.f32 %v1420, %v1676
        %v1741 = vmax.f32 %v1421, %v1677
        %v1742 = vmax.f32 %v1422, %v1678
        %v1743 = vmax.f32 %v1423, %v1679
        %v1744 = vmax.f32 %v1424, %v1680
        %v1745 = vmax.f32 %v1425, %v1681
        %v1746 = vmax.f32 %v1426, %v1682
        %v1747 = vmax.f32 %v1427, %v1683
        %v1748 = vmax.f32 %v1428, %v1684
        %v1749 = vmax.f32 %v1429, %v1685
        %v1750 = vpack.c.bf16 %v1686, %v1686
        %v1751 = vpack.c.bf16 %v1687, %v1687
        %v1752 = vpack.c.bf16 %v1688, %v1688
        %v1753 = vpack.c.bf16 %v1689, %v1689
        %v1754 = vpack.c.bf16 %v1690, %v1690
        %v1755 = vpack.c.bf16 %v1691, %v1691
        %v1756 = vpack.c.bf16 %v1692, %v1692
        %v1757 = vpack.c.bf16 %v1693, %v1693
        %v1758 = vpack.c.bf16 %v1694, %v1694
        %v1759 = vpack.c.bf16 %v1695, %v1695
        %v1760 = vpack.c.bf16 %v1696, %v1696
        %v1761 = vpack.c.bf16 %v1697, %v1697
        %v1762 = vpack.c.bf16 %v1698, %v1698
        %v1763 = vpack.c.bf16 %v1699, %v1699
        %v1764 = vpack.c.bf16 %v1700, %v1700
        %v1765 = vpack.c.bf16 %v1701, %v1701
        %v1766 = vpack.c.bf16 %v1702, %v1702
        %v1767 = vpack.c.bf16 %v1703, %v1703
        %v1768 = vpack.c.bf16 %v1704, %v1704
        %v1769 = vpack.c.bf16 %v1705, %v1705
        %v1770 = vpack.c.bf16 %v1706, %v1706
        %v1771 = vpack.c.bf16 %v1707, %v1707
        %v1772 = vpack.c.bf16 %v1708, %v1708
        %v1773 = vpack.c.bf16 %v1709, %v1709
        %v1774 = vpack.c.bf16 %v1710, %v1710
        %v1775 = vpack.c.bf16 %v1711, %v1711
        %v1776 = vpack.c.bf16 %v1712, %v1712
        %v1777 = vpack.c.bf16 %v1713, %v1713
        %v1778 = vpack.c.bf16 %v1714, %v1714
        %v1779 = vpack.c.bf16 %v1715, %v1715
        %v1780 = vpack.c.bf16 %v1716, %v1716
        %v1781 = vpack.c.bf16 %v1717, %v1717
        %v1782 = vpack.c.bf16 %v1718, %v1718
        %v1783 = vpack.c.bf16 %v1719, %v1719
        %v1784 = vpack.c.bf16 %v1720, %v1720
        %v1785 = vpack.c.bf16 %v1721, %v1721
        %v1786 = vpack.c.bf16 %v1722, %v1722
        %v1787 = vpack.c.bf16 %v1723, %v1723
        %v1788 = vpack.c.bf16 %v1724, %v1724
        %v1789 = vpack.c.bf16 %v1725, %v1725
        %v1790 = vpack.c.bf16 %v1726, %v1726
        %v1791 = vpack.c.bf16 %v1727, %v1727
        %v1792 = vpack.c.bf16 %v1728, %v1728
        %v1793 = vpack.c.bf16 %v1729, %v1729
        %v1794 = vpack.c.bf16 %v1730, %v1730
        %v1795 = vpack.c.bf16 %v1731, %v1731
        %v1796 = vpack.c.bf16 %v1732, %v1732
        %v1797 = vpack.c.bf16 %v1733, %v1733
        %v1798 = vpack.c.bf16 %v1734, %v1734
        %v1799 = vpack.c.bf16 %v1735, %v1735
        %v1800 = vpack.c.bf16 %v1736, %v1736
        %v1801 = vpack.c.bf16 %v1737, %v1737
        %v1802 = vpack.c.bf16 %v1738, %v1738
        %v1803 = vpack.c.bf16 %v1739, %v1739
        %v1804 = vpack.c.bf16 %v1740, %v1740
        %v1805 = vpack.c.bf16 %v1741, %v1741
        %v1806 = vpack.c.bf16 %v1742, %v1742
        %v1807 = vpack.c.bf16 %v1743, %v1743
        %v1808 = vpack.c.bf16 %v1744, %v1744
        %v1809 = vpack.c.bf16 %v1745, %v1745
        %v1810 = vpack.c.bf16 %v1746, %v1746
        %v1811 = vpack.c.bf16 %v1747, %v1747
        %v1812 = vpack.c.bf16 %v1748, %v1748
        %v1813 = vpack.c.bf16 %v1749, %v1749
        %v1814 = vld [vmem:[#allocation7] sm:$0x3]
        %v1815 = vld [vmem:[#allocation9] sm:$0x1]
        %v1817 = vlaneseq
        %v1818 = vshrl.u32 %v1817, 7
        %v1819 = vsub.s32 0, %v1818
        %v1820 = vrot.slane %v1815, %v1819
        %v1886 = vunpack.c.l.b16 %v1750
        %v1887 = vunpack.c.l.b16 %v1751
        %v1888 = vunpack.c.l.b16 %v1752
        %v1889 = vunpack.c.l.b16 %v1753
        %v1890 = vunpack.c.l.b16 %v1754
        %v1891 = vunpack.c.l.b16 %v1755
        %v1892 = vunpack.c.l.b16 %v1756
        %v1893 = vunpack.c.l.b16 %v1757
        %v1894 = vunpack.c.l.b16 %v1758
        %v1895 = vunpack.c.l.b16 %v1759
        %v1896 = vunpack.c.l.b16 %v1760
        %v1897 = vunpack.c.l.b16 %v1761
        %v1898 = vunpack.c.l.b16 %v1762
        %v1899 = vunpack.c.l.b16 %v1763
        %v1900 = vunpack.c.l.b16 %v1764
        %v1901 = vunpack.c.l.b16 %v1765
        %v1902 = vunpack.c.l.b16 %v1766
        %v1903 = vunpack.c.l.b16 %v1767
        %v1904 = vunpack.c.l.b16 %v1768
        %v1905 = vunpack.c.l.b16 %v1769
        %v1906 = vunpack.c.l.b16 %v1770
        %v1907 = vunpack.c.l.b16 %v1771
        %v1908 = vunpack.c.l.b16 %v1772
        %v1909 = vunpack.c.l.b16 %v1773
        %v1910 = vunpack.c.l.b16 %v1774
        %v1911 = vunpack.c.l.b16 %v1775
        %v1912 = vunpack.c.l.b16 %v1776
        %v1913 = vunpack.c.l.b16 %v1777
        %v1914 = vunpack.c.l.b16 %v1778
        %v1915 = vunpack.c.l.b16 %v1779
        %v1916 = vunpack.c.l.b16 %v1780
        %v1917 = vunpack.c.l.b16 %v1781
        %v1918 = vunpack.c.l.b16 %v1782
        %v1919 = vunpack.c.l.b16 %v1783
        %v1920 = vunpack.c.l.b16 %v1784
        %v1921 = vunpack.c.l.b16 %v1785
        %v1922 = vunpack.c.l.b16 %v1786
        %v1923 = vunpack.c.l.b16 %v1787
        %v1924 = vunpack.c.l.b16 %v1788
        %v1925 = vunpack.c.l.b16 %v1789
        %v1926 = vunpack.c.l.b16 %v1790
        %v1927 = vunpack.c.l.b16 %v1791
        %v1928 = vunpack.c.l.b16 %v1792
        %v1929 = vunpack.c.l.b16 %v1793
        %v1930 = vunpack.c.l.b16 %v1794
        %v1931 = vunpack.c.l.b16 %v1795
        %v1932 = vunpack.c.l.b16 %v1796
        %v1933 = vunpack.c.l.b16 %v1797
        %v1934 = vunpack.c.l.b16 %v1798
        %v1935 = vunpack.c.l.b16 %v1799
        %v1936 = vunpack.c.l.b16 %v1800
        %v1937 = vunpack.c.l.b16 %v1801
        %v1938 = vunpack.c.l.b16 %v1802
        %v1939 = vunpack.c.l.b16 %v1803
        %v1940 = vunpack.c.l.b16 %v1804
        %v1941 = vunpack.c.l.b16 %v1805
        %v1942 = vunpack.c.l.b16 %v1806
        %v1943 = vunpack.c.l.b16 %v1807
        %v1944 = vunpack.c.l.b16 %v1808
        %v1945 = vunpack.c.l.b16 %v1809
        %v1946 = vunpack.c.l.b16 %v1810
        %v1947 = vunpack.c.l.b16 %v1811
        %v1948 = vunpack.c.l.b16 %v1812
        %v1949 = vunpack.c.l.b16 %v1813
        %v1950 = vrot.slane %v1887, 7
        %vm1951 = vcmask 1041409
        %v1952 = vsel %vm1951, %v1950, %v1886
        %v1953 = vrot.slane %v1888, 6
        %vm1954 = vcmask 1042434
        %v1955 = vsel %vm1954, %v1953, %v1952
        %v1956 = vrot.slane %v1889, 5
        %vm1957 = vcmask 1043459
        %v1958 = vsel %vm1957, %v1956, %v1955
        %v1959 = vrot.slane %v1890, 4
        %vm1960 = vcmask 1044484
        %v1961 = vsel %vm1960, %v1959, %v1958
        %v1962 = vrot.slane %v1891, 3
        %vm1963 = vcmask 1045509
        %v1964 = vsel %vm1963, %v1962, %v1961
        %v1965 = vrot.slane %v1892, 2
        %vm1966 = vcmask 1046534
        %v1967 = vsel %vm1966, %v1965, %v1964
        %v1968 = vrot.slane %v1893, 1
        %vm1969 = vcmask 1047559
        %v1970 = vsel %vm1969, %v1968, %v1967
        %v1971 = vrot.slane %v1895, 7
        %v1972 = vsel %vm1951, %v1971, %v1894
        %v1973 = vrot.slane %v1896, 6
        %v1974 = vsel %vm1954, %v1973, %v1972
        %v1975 = vrot.slane %v1897, 5
        %v1976 = vsel %vm1957, %v1975, %v1974
        %v1977 = vrot.slane %v1898, 4
        %v1978 = vsel %vm1960, %v1977, %v1976
        %v1979 = vrot.slane %v1899, 3
        %v1980 = vsel %vm1963, %v1979, %v1978
        %v1981 = vrot.slane %v1900, 2
        %v1982 = vsel %vm1966, %v1981, %v1980
        %v1983 = vrot.slane %v1901, 1
        %v1984 = vsel %vm1969, %v1983, %v1982
        %v1985 = vrot.slane %v1903, 7
        %v1986 = vsel %vm1951, %v1985, %v1902
        %v1987 = vrot.slane %v1904, 6
        %v1988 = vsel %vm1954, %v1987, %v1986
        %v1989 = vrot.slane %v1905, 5
        %v1990 = vsel %vm1957, %v1989, %v1988
        %v1991 = vrot.slane %v1906, 4
        %v1992 = vsel %vm1960, %v1991, %v1990
        %v1993 = vrot.slane %v1907, 3
        %v1994 = vsel %vm1963, %v1993, %v1992
        %v1995 = vrot.slane %v1908, 2
        %v1996 = vsel %vm1966, %v1995, %v1994
        %v1997 = vrot.slane %v1909, 1
        %v1998 = vsel %vm1969, %v1997, %v1996
        %v1999 = vrot.slane %v1911, 7
        %v2000 = vsel %vm1951, %v1999, %v1910
        %v2001 = vrot.slane %v1912, 6
        %v2002 = vsel %vm1954, %v2001, %v2000
        %v2003 = vrot.slane %v1913, 5
        %v2004 = vsel %vm1957, %v2003, %v2002
        %v2005 = vrot.slane %v1914, 4
        %v2006 = vsel %vm1960, %v2005, %v2004
        %v2007 = vrot.slane %v1915, 3
        %v2008 = vsel %vm1963, %v2007, %v2006
        %v2009 = vrot.slane %v1916, 2
        %v2010 = vsel %vm1966, %v2009, %v2008
        %v2011 = vrot.slane %v1917, 1
        %v2012 = vsel %vm1969, %v2011, %v2010
        %v2013 = vrot.slane %v1919, 7
        %v2014 = vsel %vm1951, %v2013, %v1918
        %v2015 = vrot.slane %v1920, 6
        %v2016 = vsel %vm1954, %v2015, %v2014
        %v2017 = vrot.slane %v1921, 5
        %v2018 = vsel %vm1957, %v2017, %v2016
        %v2019 = vrot.slane %v1922, 4
        %v2020 = vsel %vm1960, %v2019, %v2018
        %v2021 = vrot.slane %v1923, 3
        %v2022 = vsel %vm1963, %v2021, %v2020
        %v2023 = vrot.slane %v1924, 2
        %v2024 = vsel %vm1966, %v2023, %v2022
        %v2025 = vrot.slane %v1925, 1
        %v2026 = vsel %vm1969, %v2025, %v2024
        %v2027 = vrot.slane %v1927, 7
        %v2028 = vsel %vm1951, %v2027, %v1926
        %v2029 = vrot.slane %v1928, 6
        %v2030 = vsel %vm1954, %v2029, %v2028
        %v2031 = vrot.slane %v1929, 5
        %v2032 = vsel %vm1957, %v2031, %v2030
        %v2033 = vrot.slane %v1930, 4
        %v2034 = vsel %vm1960, %v2033, %v2032
        %v2035 = vrot.slane %v1931, 3
        %v2036 = vsel %vm1963, %v2035, %v2034
        %v2037 = vrot.slane %v1932, 2
        %v2038 = vsel %vm1966, %v2037, %v2036
        %v2039 = vrot.slane %v1933, 1
        %v2040 = vsel %vm1969, %v2039, %v2038
        %v2041 = vrot.slane %v1935, 7
        %v2042 = vsel %vm1951, %v2041, %v1934
        %v2043 = vrot.slane %v1936, 6
        %v2044 = vsel %vm1954, %v2043, %v2042
        %v2045 = vrot.slane %v1937, 5
        %v2046 = vsel %vm1957, %v2045, %v2044
        %v2047 = vrot.slane %v1938, 4
        %v2048 = vsel %vm1960, %v2047, %v2046
        %v2049 = vrot.slane %v1939, 3
        %v2050 = vsel %vm1963, %v2049, %v2048
        %v2051 = vrot.slane %v1940, 2
        %v2052 = vsel %vm1966, %v2051, %v2050
        %v2053 = vrot.slane %v1941, 1
        %v2054 = vsel %vm1969, %v2053, %v2052
        %v2055 = vrot.slane %v1943, 7
        %v2056 = vsel %vm1951, %v2055, %v1942
        %v2057 = vrot.slane %v1944, 6
        %v2058 = vsel %vm1954, %v2057, %v2056
        %v2059 = vrot.slane %v1945, 5
        %v2060 = vsel %vm1957, %v2059, %v2058
        %v2061 = vrot.slane %v1946, 4
        %v2062 = vsel %vm1960, %v2061, %v2060
        %v2063 = vrot.slane %v1947, 3
        %v2064 = vsel %vm1963, %v2063, %v2062
        %v2065 = vrot.slane %v1948, 2
        %v2066 = vsel %vm1966, %v2065, %v2064
        %v2067 = vrot.slane %v1949, 1
        %v2068 = vsel %vm1969, %v2067, %v2066
        %v2069 = vpack.c.b16 %v1984, %v1970
        %v2070 = vpack.c.b16 %v2012, %v1998
        %v2071 = vpack.c.b16 %v2040, %v2026
        %v2072 = vpack.c.b16 %v2068, %v2054
        %v2074 = vsel %vm414, %v2069, 0
        %v2077 = vsel %vm414, %v2070, 0
        %v2080 = vsel %vm414, %v2071, 0
        %v2083 = vsel %vm414, %v2072, 0
        %vm2085 = vcmask 1041408
        %v2087 = vsel %vm2085, %v1814, 0
        %2089 = vmatprep.subr.bf16.mxu0 0
        %2090 = vmatpush1.bf16.msra.mxu0 %v2087
        %2091 = vmatprep.subr.bf16.mxu0 0
        %2092 = vmatpush1.bf16.msra.mxu0 0
        %2093 = vmatprep.subr.bf16.mxu0 0
        %2094 = vmatpush1.bf16.msra.mxu0 0
        %2095 = vmatprep.subr.bf16.mxu0 0
        %2096 = vmatpush1.bf16.msra.mxu0 0
        %2097 = vmatprep.subr.bf16.mxu0 0
        %2098 = vmatpush1.bf16.msra.mxu0 0
        %2099 = vmatprep.subr.bf16.mxu0 0
        %2100 = vmatpush1.bf16.msra.mxu0 0
        %2101 = vmatprep.subr.bf16.mxu0 0
        %2102 = vmatpush1.bf16.msra.mxu0 0
        %2103 = vmatprep.subr.bf16.mxu0 0
        %2104 = vmatpush1.bf16.msra.mxu0 0
        %2105 = vmatprep.subr.bf16.mxu0 0
        %2106 = vmatpush1.bf16.msra.mxu0 0
        %2107 = vmatprep.subr.bf16.mxu0 0
        %2108 = vmatpush1.bf16.msra.mxu0 0
        %2109 = vmatprep.subr.bf16.mxu0 0
        %2110 = vmatpush1.bf16.msra.mxu0 0
        %2111 = vmatprep.subr.bf16.mxu0 0
        %2112 = vmatpush1.bf16.msra.mxu0 0
        %2113 = vmatprep.subr.bf16.mxu0 0
        %2114 = vmatpush1.bf16.msra.mxu0 0
        %2115 = vmatprep.subr.bf16.mxu0 0
        %2116 = vmatpush1.bf16.msra.mxu0 0
        %2117 = vmatprep.subr.bf16.mxu0 0
        %2118 = vmatpush1.bf16.msra.mxu0 0
        %2119 = vmatprep.subr.bf16.mxu0 0
        %2120 = vmatpush1.bf16.msra.mxu0 0
        %2121 = vmatprep.mubr.bf16.mxu0 0
        %2122 = vmatmul.mubr.bf16.gmra.mrb[0].mxu0 %v2074
        %v2123 = vpop.f32.mrb[0].mxu0
        %v2124 = vadd.f32 %v1820, %v2123
        %v2125 = vpop.f32.mrb[0].mxu0
        %v2126 = vpop.f32.mrb[0].mxu0
        %v2127 = vadd.f32 %v1820, %v2126
        %v2128 = vpop.f32.mrb[0].mxu0
        %2129 = vmatprep.mubr.bf16.mxu0 0
        %2130 = vmatmul.mubr.bf16.gmra.mrb[0].mxu0 %v2077
        %v2131 = vpop.f32.mrb[0].mxu0
        %v2132 = vadd.f32 %v1820, %v2131
        %v2133 = vpop.f32.mrb[0].mxu0
        %v2134 = vpop.f32.mrb[0].mxu0
        %v2135 = vadd.f32 %v1820, %v2134
        %v2136 = vpop.f32.mrb[0].mxu0
        %2137 = vmatprep.mubr.bf16.mxu0 0
        %2138 = vmatmul.mubr.bf16.gmra.mrb[0].mxu0 %v2080
        %v2139 = vpop.f32.mrb[0].mxu0
        %v2140 = vadd.f32 %v1820, %v2139
        %v2141 = vpop.f32.mrb[0].mxu0
        %v2142 = vpop.f32.mrb[0].mxu0
        %v2143 = vadd.f32 %v1820, %v2142
        %v2144 = vpop.f32.mrb[0].mxu0
        %2145 = vmatprep.mubr.bf16.mxu0 0
        %2146 = vmatmul.mubr.bf16.gmra.mrb[0].mxu0 %v2083
        %v2147 = vpop.f32.mrb[0].mxu0
        %v2148 = vadd.f32 %v1820, %v2147
        %v2149 = vpop.f32.mrb[0].mxu0
        %v2150 = vpop.f32.mrb[0].mxu0
        %v2151 = vadd.f32 %v1820, %v2150
        %v2152 = vpop.f32.mrb[0].mxu0
        %2153 = vdwg.mxu0
        %v2154 = vxor.u32 %v2124, 2147483648
        %v2155 = vxor.u32 %v2127, 2147483648
        %v2156 = vxor.u32 %v2132, 2147483648
        %v2157 = vxor.u32 %v2135, 2147483648
        %v2158 = vxor.u32 %v2140, 2147483648
        %v2159 = vxor.u32 %v2143, 2147483648
        %v2160 = vxor.u32 %v2148, 2147483648
        %v2161 = vxor.u32 %v2151, 2147483648
        %v2162 = vmul.f32 %v2154, 1.442695
        %v2163 = vpow.pop %v2162
        %v2164 = vmul.f32 %v2155, 1.442695
        %v2165 = vpow.pop %v2164
        %v2166 = vmul.f32 %v2156, 1.442695
        %v2167 = vpow.pop %v2166
        %v2168 = vmul.f32 %v2157, 1.442695
        %v2169 = vpow.pop %v2168
        %v2170 = vmul.f32 %v2158, 1.442695
        %v2171 = vpow.pop %v2170
        %v2172 = vmul.f32 %v2159, 1.442695
        %v2173 = vpow.pop %v2172
        %v2174 = vmul.f32 %v2160, 1.442695
        %v2175 = vpow.pop %v2174
        %v2176 = vmul.f32 %v2161, 1.442695
        %v2177 = vpow.pop %v2176
        %v2178 = vadd.f32 %v2163, 1.0
        %v2179 = vadd.f32 %v2165, 1.0
        %v2180 = vadd.f32 %v2167, 1.0
        %v2181 = vadd.f32 %v2169, 1.0
        %v2182 = vadd.f32 %v2171, 1.0
        %v2183 = vadd.f32 %v2173, 1.0
        %v2184 = vadd.f32 %v2175, 1.0
        %v2185 = vadd.f32 %v2177, 1.0
        %v2186 = vrcp.pop %v2178
        %v2187 = vmul.f32 1.0, %v2186
        %v2188 = vrcp.pop %v2179
        %v2189 = vmul.f32 1.0, %v2188
        %v2190 = vrcp.pop %v2180
        %v2191 = vmul.f32 1.0, %v2190
        %v2192 = vrcp.pop %v2181
        %v2193 = vmul.f32 1.0, %v2192
        %v2194 = vrcp.pop %v2182
        %v2195 = vmul.f32 1.0, %v2194
        %v2196 = vrcp.pop %v2183
        %v2197 = vmul.f32 1.0, %v2196
        %v2198 = vrcp.pop %v2184
        %v2199 = vmul.f32 1.0, %v2198
        %v2200 = vrcp.pop %v2185
        %v2201 = vmul.f32 1.0, %v2200
        %v2202 = vmul.f32 %v2124, %v2187
        %v2203 = vmul.f32 %v2127, %v2189
        %v2204 = vmul.f32 %v2132, %v2191
        %v2205 = vmul.f32 %v2135, %v2193
        %v2206 = vmul.f32 %v2140, %v2195
        %v2207 = vmul.f32 %v2143, %v2197
        %v2208 = vmul.f32 %v2148, %v2199
        %v2209 = vmul.f32 %v2151, %v2201
        %v2210 = vpack.c.bf16 %v509, %v509
        %v2211 = vpack.c.bf16 %v517, %v517
        %v2212 = vpack.c.bf16 %v516, %v516
        %v2213 = vpack.c.bf16 %v518, %v518
        %v2214 = vpack.c.bf16 %v526, %v526
        %v2215 = vpack.c.bf16 %v534, %v534
        %v2216 = vpack.c.bf16 %v533, %v533
        %v2217 = vpack.c.bf16 %v535, %v535
        %v2218 = vpack.c.bf16 %v577, %v577
        %v2219 = vpack.c.bf16 %v585, %v585
        %v2220 = vpack.c.bf16 %v584, %v584
        %v2221 = vpack.c.bf16 %v586, %v586
        %v2222 = vpack.c.bf16 %v594, %v594
        %v2223 = vpack.c.bf16 %v602, %v602
        %v2224 = vpack.c.bf16 %v601, %v601
        %v2225 = vpack.c.bf16 %v603, %v603
        %v2226 = vpack.c.bf16 %v645, %v645
        %v2227 = vpack.c.bf16 %v653, %v653
        %v2228 = vpack.c.bf16 %v652, %v652
        %v2229 = vpack.c.bf16 %v654, %v654
        %v2230 = vpack.c.bf16 %v662, %v662
        %v2231 = vpack.c.bf16 %v670, %v670
        %v2232 = vpack.c.bf16 %v669, %v669
        %v2233 = vpack.c.bf16 %v671, %v671
        %v2234 = vpack.c.bf16 %v713, %v713
        %v2235 = vpack.c.bf16 %v721, %v721
        %v2236 = vpack.c.bf16 %v720, %v720
        %v2237 = vpack.c.bf16 %v722, %v722
        %v2238 = vpack.c.bf16 %v730, %v730
        %v2239 = vpack.c.bf16 %v738, %v738
        %v2240 = vpack.c.bf16 %v737, %v737
        %v2241 = vpack.c.bf16 %v739, %v739
        %v2242 = vpack.c.bf16 %v781, %v781
        %v2243 = vpack.c.bf16 %v789, %v789
        %v2244 = vpack.c.bf16 %v788, %v788
        %v2245 = vpack.c.bf16 %v790, %v790
        %v2246 = vpack.c.bf16 %v798, %v798
        %v2247 = vpack.c.bf16 %v806, %v806
        %v2248 = vpack.c.bf16 %v805, %v805
        %v2249 = vpack.c.bf16 %v807, %v807
        %v2250 = vpack.c.bf16 %v849, %v849
        %v2251 = vpack.c.bf16 %v857, %v857
        %v2252 = vpack.c.bf16 %v856, %v856
        %v2253 = vpack.c.bf16 %v858, %v858
        %v2254 = vpack.c.bf16 %v866, %v866
        %v2255 = vpack.c.bf16 %v874, %v874
        %v2256 = vpack.c.bf16 %v873, %v873
        %v2257 = vpack.c.bf16 %v875, %v875
        %v2258 = vpack.c.bf16 %v917, %v917
        %v2259 = vpack.c.bf16 %v925, %v925
        %v2260 = vpack.c.bf16 %v924, %v924
        %v2261 = vpack.c.bf16 %v926, %v926
        %v2262 = vpack.c.bf16 %v934, %v934
        %v2263 = vpack.c.bf16 %v942, %v942
        %v2264 = vpack.c.bf16 %v941, %v941
        %v2265 = vpack.c.bf16 %v943, %v943
        %v2266 = vpack.c.bf16 %v985, %v985
        %v2267 = vpack.c.bf16 %v993, %v993
        %v2268 = vpack.c.bf16 %v992, %v992
        %v2269 = vpack.c.bf16 %v994, %v994
        %v2270 = vpack.c.bf16 %v1002, %v1002
        %v2271 = vpack.c.bf16 %v1010, %v1010
        %v2272 = vpack.c.bf16 %v1009, %v1009
        %v2273 = vpack.c.bf16 %v1011, %v1011
        %v2274 = vld [vmem:[#allocation10] sm:$0x3]
        %v2275 = vld [vmem:[#allocation12] sm:$0x1]
        %v2277 = vlaneseq
        %v2278 = vshrl.u32 %v2277, 7
        %v2279 = vsub.s32 0, %v2278
        %v2280 = vrot.slane %v2275, %v2279
        %v2346 = vunpack.c.l.b16 %v2210
        %v2347 = vunpack.c.l.b16 %v2211
        %v2348 = vunpack.c.l.b16 %v2212
        %v2349 = vunpack.c.l.b16 %v2213
        %v2350 = vunpack.c.l.b16 %v2214
        %v2351 = vunpack.c.l.b16 %v2215
        %v2352 = vunpack.c.l.b16 %v2216
        %v2353 = vunpack.c.l.b16 %v2217
        %v2354 = vunpack.c.l.b16 %v2218
        %v2355 = vunpack.c.l.b16 %v2219
        %v2356 = vunpack.c.l.b16 %v2220
        %v2357 = vunpack.c.l.b16 %v2221
        %v2358 = vunpack.c.l.b16 %v2222
        %v2359 = vunpack.c.l.b16 %v2223
        %v2360 = vunpack.c.l.b16 %v2224
        %v2361 = vunpack.c.l.b16 %v2225
        %v2362 = vunpack.c.l.b16 %v2226
        %v2363 = vunpack.c.l.b16 %v2227
        %v2364 = vunpack.c.l.b16 %v2228
        %v2365 = vunpack.c.l.b16 %v2229
        %v2366 = vunpack.c.l.b16 %v2230
        %v2367 = vunpack.c.l.b16 %v2231
        %v2368 = vunpack.c.l.b16 %v2232
        %v2369 = vunpack.c.l.b16 %v2233
        %v2370 = vunpack.c.l.b16 %v2234
        %v2371 = vunpack.c.l.b16 %v2235
        %v2372 = vunpack.c.l.b16 %v2236
        %v2373 = vunpack.c.l.b16 %v2237
        %v2374 = vunpack.c.l.b16 %v2238
        %v2375 = vunpack.c.l.b16 %v2239
        %v2376 = vunpack.c.l.b16 %v2240
        %v2377 = vunpack.c.l.b16 %v2241
        %v2378 = vunpack.c.l.b16 %v2242
        %v2379 = vunpack.c.l.b16 %v2243
        %v2380 = vunpack.c.l.b16 %v2244
        %v2381 = vunpack.c.l.b16 %v2245
        %v2382 = vunpack.c.l.b16 %v2246
        %v2383 = vunpack.c.l.b16 %v2247
        %v2384 = vunpack.c.l.b16 %v2248
        %v2385 = vunpack.c.l.b16 %v2249
        %v2386 = vunpack.c.l.b16 %v2250
        %v2387 = vunpack.c.l.b16 %v2251
        %v2388 = vunpack.c.l.b16 %v2252
        %v2389 = vunpack.c.l.b16 %v2253
        %v2390 = vunpack.c.l.b16 %v2254
        %v2391 = vunpack.c.l.b16 %v2255
        %v2392 = vunpack.c.l.b16 %v2256
        %v2393 = vunpack.c.l.b16 %v2257
        %v2394 = vunpack.c.l.b16 %v2258
        %v2395 = vunpack.c.l.b16 %v2259
        %v2396 = vunpack.c.l.b16 %v2260
        %v2397 = vunpack.c.l.b16 %v2261
        %v2398 = vunpack.c.l.b16 %v2262
        %v2399 = vunpack.c.l.b16 %v2263
        %v2400 = vunpack.c.l.b16 %v2264
        %v2401 = vunpack.c.l.b16 %v2265
        %v2402 = vunpack.c.l.b16 %v2266
        %v2403 = vunpack.c.l.b16 %v2267
        %v2404 = vunpack.c.l.b16 %v2268
        %v2405 = vunpack.c.l.b16 %v2269
        %v2406 = vunpack.c.l.b16 %v2270
        %v2407 = vunpack.c.l.b16 %v2271
        %v2408 = vunpack.c.l.b16 %v2272
        %v2409 = vunpack.c.l.b16 %v2273
        %v2410 = vrot.slane %v2347, 7
        %v2411 = vsel %vm1951, %v2410, %v2346
        %v2412 = vrot.slane %v2348, 6
        %v2413 = vsel %vm1954, %v2412, %v2411
        %v2414 = vrot.slane %v2349, 5
        %v2415 = vsel %vm1957, %v2414, %v2413
        %v2416 = vrot.slane %v2350, 4
        %v2417 = vsel %vm1960, %v2416, %v2415
        %v2418 = vrot.slane %v2351, 3
        %v2419 = vsel %vm1963, %v2418, %v2417
        %v2420 = vrot.slane %v2352, 2
        %v2421 = vsel %vm1966, %v2420, %v2419
        %v2422 = vrot.slane %v2353, 1
        %v2423 = vsel %vm1969, %v2422, %v2421
        %v2424 = vrot.slane %v2355, 7
        %v2425 = vsel %vm1951, %v2424, %v2354
        %v2426 = vrot.slane %v2356, 6
        %v2427 = vsel %vm1954, %v2426, %v2425
        %v2428 = vrot.slane %v2357, 5
        %v2429 = vsel %vm1957, %v2428, %v2427
        %v2430 = vrot.slane %v2358, 4
        %v2431 = vsel %vm1960, %v2430, %v2429
        %v2432 = vrot.slane %v2359, 3
        %v2433 = vsel %vm1963, %v2432, %v2431
        %v2434 = vrot.slane %v2360, 2
        %v2435 = vsel %vm1966, %v2434, %v2433
        %v2436 = vrot.slane %v2361, 1
        %v2437 = vsel %vm1969, %v2436, %v2435
        %v2438 = vrot.slane %v2363, 7
        %v2439 = vsel %vm1951, %v2438, %v2362
        %v2440 = vrot.slane %v2364, 6
        %v2441 = vsel %vm1954, %v2440, %v2439
        %v2442 = vrot.slane %v2365, 5
        %v2443 = vsel %vm1957, %v2442, %v2441
        %v2444 = vrot.slane %v2366, 4
        %v2445 = vsel %vm1960, %v2444, %v2443
        %v2446 = vrot.slane %v2367, 3
        %v2447 = vsel %vm1963, %v2446, %v2445
        %v2448 = vrot.slane %v2368, 2
        %v2449 = vsel %vm1966, %v2448, %v2447
        %v2450 = vrot.slane %v2369, 1
        %v2451 = vsel %vm1969, %v2450, %v2449
        %v2452 = vrot.slane %v2371, 7
        %v2453 = vsel %vm1951, %v2452, %v2370
        %v2454 = vrot.slane %v2372, 6
        %v2455 = vsel %vm1954, %v2454, %v2453
        %v2456 = vrot.slane %v2373, 5
        %v2457 = vsel %vm1957, %v2456, %v2455
        %v2458 = vrot.slane %v2374, 4
        %v2459 = vsel %vm1960, %v2458, %v2457
        %v2460 = vrot.slane %v2375, 3
        %v2461 = vsel %vm1963, %v2460, %v2459
        %v2462 = vrot.slane %v2376, 2
        %v2463 = vsel %vm1966, %v2462, %v2461
        %v2464 = vrot.slane %v2377, 1
        %v2465 = vsel %vm1969, %v2464, %v2463
        %v2466 = vrot.slane %v2379, 7
        %v2467 = vsel %vm1951, %v2466, %v2378
        %v2468 = vrot.slane %v2380, 6
        %v2469 = vsel %vm1954, %v2468, %v2467
        %v2470 = vrot.slane %v2381, 5
        %v2471 = vsel %vm1957, %v2470, %v2469
        %v2472 = vrot.slane %v2382, 4
        %v2473 = vsel %vm1960, %v2472, %v2471
        %v2474 = vrot.slane %v2383, 3
        %v2475 = vsel %vm1963, %v2474, %v2473
        %v2476 = vrot.slane %v2384, 2
        %v2477 = vsel %vm1966, %v2476, %v2475
        %v2478 = vrot.slane %v2385, 1
        %v2479 = vsel %vm1969, %v2478, %v2477
        %v2480 = vrot.slane %v2387, 7
        %v2481 = vsel %vm1951, %v2480, %v2386
        %v2482 = vrot.slane %v2388, 6
        %v2483 = vsel %vm1954, %v2482, %v2481
        %v2484 = vrot.slane %v2389, 5
        %v2485 = vsel %vm1957, %v2484, %v2483
        %v2486 = vrot.slane %v2390, 4
        %v2487 = vsel %vm1960, %v2486, %v2485
        %v2488 = vrot.slane %v2391, 3
        %v2489 = vsel %vm1963, %v2488, %v2487
        %v2490 = vrot.slane %v2392, 2
        %v2491 = vsel %vm1966, %v2490, %v2489
        %v2492 = vrot.slane %v2393, 1
        %v2493 = vsel %vm1969, %v2492, %v2491
        %v2494 = vrot.slane %v2395, 7
        %v2495 = vsel %vm1951, %v2494, %v2394
        %v2496 = vrot.slane %v2396, 6
        %v2497 = vsel %vm1954, %v2496, %v2495
        %v2498 = vrot.slane %v2397, 5
        %v2499 = vsel %vm1957, %v2498, %v2497
        %v2500 = vrot.slane %v2398, 4
        %v2501 = vsel %vm1960, %v2500, %v2499
        %v2502 = vrot.slane %v2399, 3
        %v2503 = vsel %vm1963, %v2502, %v2501
        %v2504 = vrot.slane %v2400, 2
        %v2505 = vsel %vm1966, %v2504, %v2503
        %v2506 = vrot.slane %v2401, 1
        %v2507 = vsel %vm1969, %v2506, %v2505
        %v2508 = vrot.slane %v2403, 7
        %v2509 = vsel %vm1951, %v2508, %v2402
        %v2510 = vrot.slane %v2404, 6
        %v2511 = vsel %vm1954, %v2510, %v2509
        %v2512 = vrot.slane %v2405, 5
        %v2513 = vsel %vm1957, %v2512, %v2511
        %v2514 = vrot.slane %v2406, 4
        %v2515 = vsel %vm1960, %v2514, %v2513
        %v2516 = vrot.slane %v2407, 3
        %v2517 = vsel %vm1963, %v2516, %v2515
        %v2518 = vrot.slane %v2408, 2
        %v2519 = vsel %vm1966, %v2518, %v2517
        %v2520 = vrot.slane %v2409, 1
        %v2521 = vsel %vm1969, %v2520, %v2519
        %v2522 = vpack.c.b16 %v2437, %v2423
        %v2523 = vpack.c.b16 %v2465, %v2451
        %v2524 = vpack.c.b16 %v2493, %v2479
        %v2525 = vpack.c.b16 %v2521, %v2507
        %v2527 = vsel %vm414, %v2522, 0
        %v2530 = vsel %vm414, %v2523, 0
        %v2533 = vsel %vm414, %v2524, 0
        %v2536 = vsel %vm414, %v2525, 0
        %v2539 = vsel %vm2085, %v2274, 0
        %2541 = vmatprep.subr.bf16.mxu0 0
        %2542 = vmatpush1.bf16.msra.mxu0 %v2539
        %2543 = vmatprep.subr.bf16.mxu0 0
        %2544 = vmatpush1.bf16.msra.mxu0 0
        %2545 = vmatprep.subr.bf16.mxu0 0
        %2546 = vmatpush1.bf16.msra.mxu0 0
        %2547 = vmatprep.subr.bf16.mxu0 0
        %2548 = vmatpush1.bf16.msra.mxu0 0
        %2549 = vmatprep.subr.bf16.mxu0 0
        %2550 = vmatpush1.bf16.msra.mxu0 0
        %2551 = vmatprep.subr.bf16.mxu0 0
        %2552 = vmatpush1.bf16.msra.mxu0 0
        %2553 = vmatprep.subr.bf16.mxu0 0
        %2554 = vmatpush1.bf16.msra.mxu0 0
        %2555 = vmatprep.subr.bf16.mxu0 0
        %2556 = vmatpush1.bf16.msra.mxu0 0
        %2557 = vmatprep.subr.bf16.mxu0 0
        %2558 = vmatpush1.bf16.msra.mxu0 0
        %2559 = vmatprep.subr.bf16.mxu0 0
        %2560 = vmatpush1.bf16.msra.mxu0 0
        %2561 = vmatprep.subr.bf16.mxu0 0
        %2562 = vmatpush1.bf16.msra.mxu0 0
        %2563 = vmatprep.subr.bf16.mxu0 0
        %2564 = vmatpush1.bf16.msra.mxu0 0
        %2565 = vmatprep.subr.bf16.mxu0 0
        %2566 = vmatpush1.bf16.msra.mxu0 0
        %2567 = vmatprep.subr.bf16.mxu0 0
        %2568 = vmatpush1.bf16.msra.mxu0 0
        %2569 = vmatprep.subr.bf16.mxu0 0
        %2570 = vmatpush1.bf16.msra.mxu0 0
        %2571 = vmatprep.subr.bf16.mxu0 0
        %2572 = vmatpush1.bf16.msra.mxu0 0
        %2573 = vmatprep.mubr.bf16.mxu0 0
        %2574 = vmatmul.mubr.bf16.gmra.mrb[0].mxu0 %v2527
        %v2575 = vpop.f32.mrb[0].mxu0
        %v2576 = vadd.f32 %v2280, %v2575
        %v2577 = vpop.f32.mrb[0].mxu0
        %v2578 = vpop.f32.mrb[0].mxu0
        %v2579 = vadd.f32 %v2280, %v2578
        %v2580 = vpop.f32.mrb[0].mxu0
        %2581 = vmatprep.mubr.bf16.mxu0 0
        %2582 = vmatmul.mubr.bf16.gmra.mrb[0].mxu0 %v2530
        %v2583 = vpop.f32.mrb[0].mxu0
        %v2584 = vadd.f32 %v2280, %v2583
        %v2585 = vpop.f32.mrb[0].mxu0
        %v2586 = vpop.f32.mrb[0].mxu0
        %v2587 = vadd.f32 %v2280, %v2586
        %v2588 = vpop.f32.mrb[0].mxu0
        %2589 = vmatprep.mubr.bf16.mxu0 0
        %2590 = vmatmul.mubr.bf16.gmra.mrb[0].mxu0 %v2533
        %v2591 = vpop.f32.mrb[0].mxu0
        %v2592 = vadd.f32 %v2280, %v2591
        %v2593 = vpop.f32.mrb[0].mxu0
        %v2594 = vpop.f32.mrb[0].mxu0
        %v2595 = vadd.f32 %v2280, %v2594
        %v2596 = vpop.f32.mrb[0].mxu0
        %2597 = vmatprep.mubr.bf16.mxu0 0
        %2598 = vmatmul.mubr.bf16.gmra.mrb[0].mxu0 %v2536
        %v2599 = vpop.f32.mrb[0].mxu0
        %v2600 = vadd.f32 %v2280, %v2599
        %v2601 = vpop.f32.mrb[0].mxu0
        %v2602 = vpop.f32.mrb[0].mxu0
        %v2603 = vadd.f32 %v2280, %v2602
        %v2604 = vpop.f32.mrb[0].mxu0
        %2605 = vdwg.mxu0
        %v2606 = vxor.u32 %v2576, 2147483648
        %v2607 = vxor.u32 %v2579, 2147483648
        %v2608 = vxor.u32 %v2584, 2147483648
        %v2609 = vxor.u32 %v2587, 2147483648
        %v2610 = vxor.u32 %v2592, 2147483648
        %v2611 = vxor.u32 %v2595, 2147483648
        %v2612 = vxor.u32 %v2600, 2147483648
        %v2613 = vxor.u32 %v2603, 2147483648
        %v2614 = vmul.f32 %v2606, 1.442695
        %v2615 = vpow.pop %v2614
        %v2616 = vmul.f32 %v2607, 1.442695
        %v2617 = vpow.pop %v2616
        %v2618 = vmul.f32 %v2608, 1.442695
        %v2619 = vpow.pop %v2618
        %v2620 = vmul.f32 %v2609, 1.442695
        %v2621 = vpow.pop %v2620
        %v2622 = vmul.f32 %v2610, 1.442695
        %v2623 = vpow.pop %v2622
        %v2624 = vmul.f32 %v2611, 1.442695
        %v2625 = vpow.pop %v2624
        %v2626 = vmul.f32 %v2612, 1.442695
        %v2627 = vpow.pop %v2626
        %v2628 = vmul.f32 %v2613, 1.442695
        %v2629 = vpow.pop %v2628
        %v2630 = vadd.f32 %v2615, 1.0
        %v2631 = vadd.f32 %v2617, 1.0
        %v2632 = vadd.f32 %v2619, 1.0
        %v2633 = vadd.f32 %v2621, 1.0
        %v2634 = vadd.f32 %v2623, 1.0
        %v2635 = vadd.f32 %v2625, 1.0
        %v2636 = vadd.f32 %v2627, 1.0
        %v2637 = vadd.f32 %v2629, 1.0
        %v2638 = vrcp.pop %v2630
        %v2639 = vmul.f32 1.0, %v2638
        %v2640 = vrcp.pop %v2631
        %v2641 = vmul.f32 1.0, %v2640
        %v2642 = vrcp.pop %v2632
        %v2643 = vmul.f32 1.0, %v2642
        %v2644 = vrcp.pop %v2633
        %v2645 = vmul.f32 1.0, %v2644
        %v2646 = vrcp.pop %v2634
        %v2647 = vmul.f32 1.0, %v2646
        %v2648 = vrcp.pop %v2635
        %v2649 = vmul.f32 1.0, %v2648
        %v2650 = vrcp.pop %v2636
        %v2651 = vmul.f32 1.0, %v2650
        %v2652 = vrcp.pop %v2637
        %v2653 = vmul.f32 1.0, %v2652
        %v2654 = vmul.f32 %v2576, %v2639
        %v2655 = vmul.f32 %v2579, %v2641
        %v2656 = vmul.f32 %v2584, %v2643
        %v2657 = vmul.f32 %v2587, %v2645
        %v2658 = vmul.f32 %v2592, %v2647
        %v2659 = vmul.f32 %v2595, %v2649
        %v2660 = vmul.f32 %v2600, %v2651
        %v2661 = vmul.f32 %v2603, %v2653
        %v2662 = vpack.c.bf16 %v2654, %v2654
        %v2663 = vpack.c.bf16 %v2655, %v2655
        %v2664 = vpack.c.bf16 %v2656, %v2656
        %v2665 = vpack.c.bf16 %v2657, %v2657
        %v2666 = vpack.c.bf16 %v2658, %v2658
        %v2667 = vpack.c.bf16 %v2659, %v2659
        %v2668 = vpack.c.bf16 %v2660, %v2660
        %v2669 = vpack.c.bf16 %v2661, %v2661
        %v2678 = vrot.slane %v2662, 4
        %v2679 = vrot.slane %v2663, 4
        %v2680 = vrot.slane %v2664, 4
        %v2681 = vrot.slane %v2665, 4
        %v2682 = vrot.slane %v2666, 4
        %v2683 = vrot.slane %v2667, 4
        %v2684 = vrot.slane %v2668, 4
        %v2685 = vrot.slane %v2669, 4
        %vm2694 = vcmask 31748
        %2695 = vst.msk [vmem:[#allocation2] sm:$0xf0] %vm2694, %v2678
        %2696 = vst.msk [vmem:[#allocation2 + $0x8] sm:$0xf0] %vm2694, %v2679
        %2697 = vst.msk [vmem:[#allocation2 + $0x10] sm:$0xf0] %vm2694, %v2680
        %2698 = vst.msk [vmem:[#allocation2 + $0x18] sm:$0xf0] %vm2694, %v2681
        %2699 = vst.msk [vmem:[#allocation2 + $0x20] sm:$0xf0] %vm2694, %v2682
        %2700 = vst.msk [vmem:[#allocation2 + $0x28] sm:$0xf0] %vm2694, %v2683
        %2701 = vst.msk [vmem:[#allocation2 + $0x30] sm:$0xf0] %vm2694, %v2684
        %2702 = vst.msk [vmem:[#allocation2 + $0x38] sm:$0xf0] %vm2694, %v2685
        %v2703 = vld [vmem:[#allocation10] sm:$0x3]
        %v2704 = vld [vmem:[#allocation12] sm:$0x1]
        %v2706 = vlaneseq
        %v2707 = vshrl.u32 %v2706, 7
        %v2708 = vsub.s32 0, %v2707
        %v2709 = vrot.slane %v2704, %v2708
        %v2711 = vrot.slane %v2346, 1
        %v2712 = vsel %vm1951, %v2347, %v2711
        %v2713 = vrot.slane %v2348, 7
        %v2714 = vsel %vm1954, %v2713, %v2712
        %v2715 = vrot.slane %v2349, 6
        %v2716 = vsel %vm1957, %v2715, %v2714
        %v2717 = vrot.slane %v2350, 5
        %v2718 = vsel %vm1960, %v2717, %v2716
        %v2719 = vrot.slane %v2351, 4
        %v2720 = vsel %vm1963, %v2719, %v2718
        %v2721 = vrot.slane %v2352, 3
        %v2722 = vsel %vm1966, %v2721, %v2720
        %v2723 = vrot.slane %v2353, 2
        %v2724 = vsel %vm1969, %v2723, %v2722
        %v2725 = vrot.slane %v2354, 1
        %v2726 = vsel %vm1951, %v2355, %v2725
        %v2727 = vrot.slane %v2356, 7
        %v2728 = vsel %vm1954, %v2727, %v2726
        %v2729 = vrot.slane %v2357, 6
        %v2730 = vsel %vm1957, %v2729, %v2728
        %v2731 = vrot.slane %v2358, 5
        %v2732 = vsel %vm1960, %v2731, %v2730
        %v2733 = vrot.slane %v2359, 4
        %v2734 = vsel %vm1963, %v2733, %v2732
        %v2735 = vrot.slane %v2360, 3
        %v2736 = vsel %vm1966, %v2735, %v2734
        %v2737 = vrot.slane %v2361, 2
        %v2738 = vsel %vm1969, %v2737, %v2736
        %v2739 = vrot.slane %v2362, 1
        %v2740 = vsel %vm1951, %v2363, %v2739
        %v2741 = vrot.slane %v2364, 7
        %v2742 = vsel %vm1954, %v2741, %v2740
        %v2743 = vrot.slane %v2365, 6
        %v2744 = vsel %vm1957, %v2743, %v2742
        %v2745 = vrot.slane %v2366, 5
        %v2746 = vsel %vm1960, %v2745, %v2744
        %v2747 = vrot.slane %v2367, 4
        %v2748 = vsel %vm1963, %v2747, %v2746
        %v2749 = vrot.slane %v2368, 3
        %v2750 = vsel %vm1966, %v2749, %v2748
        %v2751 = vrot.slane %v2369, 2
        %v2752 = vsel %vm1969, %v2751, %v2750
        %v2753 = vrot.slane %v2370, 1
        %v2754 = vsel %vm1951, %v2371, %v2753
        %v2755 = vrot.slane %v2372, 7
        %v2756 = vsel %vm1954, %v2755, %v2754
        %v2757 = vrot.slane %v2373, 6
        %v2758 = vsel %vm1957, %v2757, %v2756
        %v2759 = vrot.slane %v2374, 5
        %v2760 = vsel %vm1960, %v2759, %v2758
        %v2761 = vrot.slane %v2375, 4
        %v2762 = vsel %vm1963, %v2761, %v2760
        %v2763 = vrot.slane %v2376, 3
        %v2764 = vsel %vm1966, %v2763, %v2762
        %v2765 = vrot.slane %v2377, 2
        %v2766 = vsel %vm1969, %v2765, %v2764
        %v2767 = vrot.slane %v2378, 1
        %v2768 = vsel %vm1951, %v2379, %v2767
        %v2769 = vrot.slane %v2380, 7
        %v2770 = vsel %vm1954, %v2769, %v2768
        %v2771 = vrot.slane %v2381, 6
        %v2772 = vsel %vm1957, %v2771, %v2770
        %v2773 = vrot.slane %v2382, 5
        %v2774 = vsel %vm1960, %v2773, %v2772
        %v2775 = vrot.slane %v2383, 4
        %v2776 = vsel %vm1963, %v2775, %v2774
        %v2777 = vrot.slane %v2384, 3
        %v2778 = vsel %vm1966, %v2777, %v2776
        %v2779 = vrot.slane %v2385, 2
        %v2780 = vsel %vm1969, %v2779, %v2778
        %v2781 = vrot.slane %v2386, 1
        %v2782 = vsel %vm1951, %v2387, %v2781
        %v2783 = vrot.slane %v2388, 7
        %v2784 = vsel %vm1954, %v2783, %v2782
        %v2785 = vrot.slane %v2389, 6
        %v2786 = vsel %vm1957, %v2785, %v2784
        %v2787 = vrot.slane %v2390, 5
        %v2788 = vsel %vm1960, %v2787, %v2786
        %v2789 = vrot.slane %v2391, 4
        %v2790 = vsel %vm1963, %v2789, %v2788
        %v2791 = vrot.slane %v2392, 3
        %v2792 = vsel %vm1966, %v2791, %v2790
        %v2793 = vrot.slane %v2393, 2
        %v2794 = vsel %vm1969, %v2793, %v2792
        %v2795 = vrot.slane %v2394, 1
        %v2796 = vsel %vm1951, %v2395, %v2795
        %v2797 = vrot.slane %v2396, 7
        %v2798 = vsel %vm1954, %v2797, %v2796
        %v2799 = vrot.slane %v2397, 6
        %v2800 = vsel %vm1957, %v2799, %v2798
        %v2801 = vrot.slane %v2398, 5
        %v2802 = vsel %vm1960, %v2801, %v2800
        %v2803 = vrot.slane %v2399, 4
        %v2804 = vsel %vm1963, %v2803, %v2802
        %v2805 = vrot.slane %v2400, 3
        %v2806 = vsel %vm1966, %v2805, %v2804
        %v2807 = vrot.slane %v2401, 2
        %v2808 = vsel %vm1969, %v2807, %v2806
        %v2809 = vrot.slane %v2402, 1
        %v2810 = vsel %vm1951, %v2403, %v2809
        %v2811 = vrot.slane %v2404, 7
        %v2812 = vsel %vm1954, %v2811, %v2810
        %v2813 = vrot.slane %v2405, 6
        %v2814 = vsel %vm1957, %v2813, %v2812
        %v2815 = vrot.slane %v2406, 5
        %v2816 = vsel %vm1960, %v2815, %v2814
        %v2817 = vrot.slane %v2407, 4
        %v2818 = vsel %vm1963, %v2817, %v2816
        %v2819 = vrot.slane %v2408, 3
        %v2820 = vsel %vm1966, %v2819, %v2818
        %v2821 = vrot.slane %v2409, 2
        %v2822 = vsel %vm1969, %v2821, %v2820
        %v2823 = vpack.c.b16 %v2738, %v2724
        %v2824 = vpack.c.b16 %v2766, %v2752
        %v2825 = vpack.c.b16 %v2794, %v2780
        %v2826 = vpack.c.b16 %v2822, %v2808
        %v2828 = vsel %vm414, %v2823, 0
        %v2831 = vsel %vm414, %v2824, 0
        %v2834 = vsel %vm414, %v2825, 0
        %v2837 = vsel %vm414, %v2826, 0
        %v2840 = vsel %vm2085, %v2703, 0
        %2842 = vmatprep.subr.bf16.mxu0 0
        %2843 = vmatpush1.bf16.msra.mxu0 %v2840
        %2844 = vmatprep.subr.bf16.mxu0 0
        %2845 = vmatpush1.bf16.msra.mxu0 0
        %2846 = vmatprep.subr.bf16.mxu0 0
        %2847 = vmatpush1.bf16.msra.mxu0 0
        %2848 = vmatprep.subr.bf16.mxu0 0
        %2849 = vmatpush1.bf16.msra.mxu0 0
        %2850 = vmatprep.subr.bf16.mxu0 0
        %2851 = vmatpush1.bf16.msra.mxu0 0
        %2852 = vmatprep.subr.bf16.mxu0 0
        %2853 = vmatpush1.bf16.msra.mxu0 0
        %2854 = vmatprep.subr.bf16.mxu0 0
        %2855 = vmatpush1.bf16.msra.mxu0 0
        %2856 = vmatprep.subr.bf16.mxu0 0
        %2857 = vmatpush1.bf16.msra.mxu0 0
        %2858 = vmatprep.subr.bf16.mxu0 0
        %2859 = vmatpush1.bf16.msra.mxu0 0
        %2860 = vmatprep.subr.bf16.mxu0 0
        %2861 = vmatpush1.bf16.msra.mxu0 0
        %2862 = vmatprep.subr.bf16.mxu0 0
        %2863 = vmatpush1.bf16.msra.mxu0 0
        %2864 = vmatprep.subr.bf16.mxu0 0
        %2865 = vmatpush1.bf16.msra.mxu0 0
        %2866 = vmatprep.subr.bf16.mxu0 0
        %2867 = vmatpush1.bf16.msra.mxu0 0
        %2868 = vmatprep.subr.bf16.mxu0 0
        %2869 = vmatpush1.bf16.msra.mxu0 0
        %2870 = vmatprep.subr.bf16.mxu0 0
        %2871 = vmatpush1.bf16.msra.mxu0 0
        %2872 = vmatprep.subr.bf16.mxu0 0
        %2873 = vmatpush1.bf16.msra.mxu0 0
        %2874 = vmatprep.mubr.bf16.mxu0 0
        %2875 = vmatmul.mubr.bf16.gmra.mrb[0].mxu0 %v2828
        %v2876 = vpop.f32.mrb[0].mxu0
        %v2877 = vadd.f32 %v2709, %v2876
        %v2878 = vpop.f32.mrb[0].mxu0
        %v2879 = vpop.f32.mrb[0].mxu0
        %v2880 = vadd.f32 %v2709, %v2879
        %v2881 = vpop.f32.mrb[0].mxu0
        %2882 = vmatprep.mubr.bf16.mxu0 0
        %2883 = vmatmul.mubr.bf16.gmra.mrb[0].mxu0 %v2831
        %v2884 = vpop.f32.mrb[0].mxu0
        %v2885 = vadd.f32 %v2709, %v2884
        %v2886 = vpop.f32.mrb[0].mxu0
        %v2887 = vpop.f32.mrb[0].mxu0
        %v2888 = vadd.f32 %v2709, %v2887
        %v2889 = vpop.f32.mrb[0].mxu0
        %2890 = vmatprep.mubr.bf16.mxu0 0
        %2891 = vmatmul.mubr.bf16.gmra.mrb[0].mxu0 %v2834
        %v2892 = vpop.f32.mrb[0].mxu0
        %v2893 = vadd.f32 %v2709, %v2892
        %v2894 = vpop.f32.mrb[0].mxu0
        %v2895 = vpop.f32.mrb[0].mxu0
        %v2896 = vadd.f32 %v2709, %v2895
        %v2897 = vpop.f32.mrb[0].mxu0
        %2898 = vmatprep.mubr.bf16.mxu0 0
        %2899 = vmatmul.mubr.bf16.gmra.mrb[0].mxu0 %v2837
        %v2900 = vpop.f32.mrb[0].mxu0
        %v2901 = vadd.f32 %v2709, %v2900
        %v2902 = vpop.f32.mrb[0].mxu0
        %v2903 = vpop.f32.mrb[0].mxu0
        %v2904 = vadd.f32 %v2709, %v2903
        %v2905 = vpop.f32.mrb[0].mxu0
        %2906 = vdwg.mxu0
        %v2907 = vxor.u32 %v2877, 2147483648
        %v2908 = vxor.u32 %v2880, 2147483648
        %v2909 = vxor.u32 %v2885, 2147483648
        %v2910 = vxor.u32 %v2888, 2147483648
        %v2911 = vxor.u32 %v2893, 2147483648
        %v2912 = vxor.u32 %v2896, 2147483648
        %v2913 = vxor.u32 %v2901, 2147483648
        %v2914 = vxor.u32 %v2904, 2147483648
        %v2915 = vmul.f32 %v2907, 1.442695
        %v2916 = vpow.pop %v2915
        %v2917 = vmul.f32 %v2908, 1.442695
        %v2918 = vpow.pop %v2917
        %v2919 = vmul.f32 %v2909, 1.442695
        %v2920 = vpow.pop %v2919
        %v2921 = vmul.f32 %v2910, 1.442695
        %v2922 = vpow.pop %v2921
        %v2923 = vmul.f32 %v2911, 1.442695
        %v2924 = vpow.pop %v2923
        %v2925 = vmul.f32 %v2912, 1.442695
        %v2926 = vpow.pop %v2925
        %v2927 = vmul.f32 %v2913, 1.442695
        %v2928 = vpow.pop %v2927
        %v2929 = vmul.f32 %v2914, 1.442695
        %v2930 = vpow.pop %v2929
        %v2931 = vadd.f32 %v2916, 1.0
        %v2932 = vadd.f32 %v2918, 1.0
        %v2933 = vadd.f32 %v2920, 1.0
        %v2934 = vadd.f32 %v2922, 1.0
        %v2935 = vadd.f32 %v2924, 1.0
        %v2936 = vadd.f32 %v2926, 1.0
        %v2937 = vadd.f32 %v2928, 1.0
        %v2938 = vadd.f32 %v2930, 1.0
        %v2939 = vrcp.pop %v2931
        %v2940 = vmul.f32 1.0, %v2939
        %v2941 = vrcp.pop %v2932
        %v2942 = vmul.f32 1.0, %v2941
        %v2943 = vrcp.pop %v2933
        %v2944 = vmul.f32 1.0, %v2943
        %v2945 = vrcp.pop %v2934
        %v2946 = vmul.f32 1.0, %v2945
        %v2947 = vrcp.pop %v2935
        %v2948 = vmul.f32 1.0, %v2947
        %v2949 = vrcp.pop %v2936
        %v2950 = vmul.f32 1.0, %v2949
        %v2951 = vrcp.pop %v2937
        %v2952 = vmul.f32 1.0, %v2951
        %v2953 = vrcp.pop %v2938
        %v2954 = vmul.f32 1.0, %v2953
        %v2955 = vmul.f32 %v2877, %v2940
        %v2956 = vmul.f32 %v2880, %v2942
        %v2957 = vmul.f32 %v2885, %v2944
        %v2958 = vmul.f32 %v2888, %v2946
        %v2959 = vmul.f32 %v2893, %v2948
        %v2960 = vmul.f32 %v2896, %v2950
        %v2961 = vmul.f32 %v2901, %v2952
        %v2962 = vmul.f32 %v2904, %v2954
        %v2963 = vpack.c.bf16 %v2955, %v2955
        %v2964 = vpack.c.bf16 %v2956, %v2956
        %v2965 = vpack.c.bf16 %v2957, %v2957
        %v2966 = vpack.c.bf16 %v2958, %v2958
        %v2967 = vpack.c.bf16 %v2959, %v2959
        %v2968 = vpack.c.bf16 %v2960, %v2960
        %v2969 = vpack.c.bf16 %v2961, %v2961
        %v2970 = vpack.c.bf16 %v2962, %v2962
        %v2979 = vrot.slane %v2963, 4
        %v2980 = vrot.slane %v2964, 4
        %v2981 = vrot.slane %v2965, 4
        %v2982 = vrot.slane %v2966, 4
        %v2983 = vrot.slane %v2967, 4
        %v2984 = vrot.slane %v2968, 4
        %v2985 = vrot.slane %v2969, 4
        %v2986 = vrot.slane %v2970, 4
        %2995 = vst.msk [vmem:[%s418] sm:$0xf0] %vm2694, %v2979
        %2996 = vst.msk [vmem:[%s418 + $0x8] sm:$0xf0] %vm2694, %v2980
        %2997 = vst.msk [vmem:[%s418 + $0x10] sm:$0xf0] %vm2694, %v2981
        %2998 = vst.msk [vmem:[%s418 + $0x18] sm:$0xf0] %vm2694, %v2982
        %2999 = vst.msk [vmem:[%s418 + $0x20] sm:$0xf0] %vm2694, %v2983
        %3000 = vst.msk [vmem:[%s418 + $0x28] sm:$0xf0] %vm2694, %v2984
        %3001 = vst.msk [vmem:[%s418 + $0x30] sm:$0xf0] %vm2694, %v2985
        %3002 = vst.msk [vmem:[%s418 + $0x38] sm:$0xf0] %vm2694, %v2986
        %v3003 = vpack.c.bf16 %v543, %v543
        %v3004 = vpack.c.bf16 %v551, %v551
        %v3005 = vpack.c.bf16 %v550, %v550
        %v3006 = vpack.c.bf16 %v552, %v552
        %v3007 = vpack.c.bf16 %v560, %v560
        %v3008 = vpack.c.bf16 %v568, %v568
        %v3009 = vpack.c.bf16 %v567, %v567
        %v3010 = vpack.c.bf16 %v569, %v569
        %v3011 = vpack.c.bf16 %v611, %v611
        %v3012 = vpack.c.bf16 %v619, %v619
        %v3013 = vpack.c.bf16 %v618, %v618
        %v3014 = vpack.c.bf16 %v620, %v620
        %v3015 = vpack.c.bf16 %v628, %v628
        %v3016 = vpack.c.bf16 %v636, %v636
        %v3017 = vpack.c.bf16 %v635, %v635
        %v3018 = vpack.c.bf16 %v637, %v637
        %v3019 = vpack.c.bf16 %v679, %v679
        %v3020 = vpack.c.bf16 %v687, %v687
        %v3021 = vpack.c.bf16 %v686, %v686
        %v3022 = vpack.c.bf16 %v688, %v688
        %v3023 = vpack.c.bf16 %v696, %v696
        %v3024 = vpack.c.bf16 %v704, %v704
        %v3025 = vpack.c.bf16 %v703, %v703
        %v3026 = vpack.c.bf16 %v705, %v705
        %v3027 = vpack.c.bf16 %v747, %v747
        %v3028 = vpack.c.bf16 %v755, %v755
        %v3029 = vpack.c.bf16 %v754, %v754
        %v3030 = vpack.c.bf16 %v756, %v756
        %v3031 = vpack.c.bf16 %v764, %v764
        %v3032 = vpack.c.bf16 %v772, %v772
        %v3033 = vpack.c.bf16 %v771, %v771
        %v3034 = vpack.c.bf16 %v773, %v773
        %v3035 = vpack.c.bf16 %v815, %v815
        %v3036 = vpack.c.bf16 %v823, %v823
        %v3037 = vpack.c.bf16 %v822, %v822
        %v3038 = vpack.c.bf16 %v824, %v824
        %v3039 = vpack.c.bf16 %v832, %v832
        %v3040 = vpack.c.bf16 %v840, %v840
        %v3041 = vpack.c.bf16 %v839, %v839
        %v3042 = vpack.c.bf16 %v841, %v841
        %v3043 = vpack.c.bf16 %v883, %v883
        %v3044 = vpack.c.bf16 %v891, %v891
        %v3045 = vpack.c.bf16 %v890, %v890
        %v3046 = vpack.c.bf16 %v892, %v892
        %v3047 = vpack.c.bf16 %v900, %v900
        %v3048 = vpack.c.bf16 %v908, %v908
        %v3049 = vpack.c.bf16 %v907, %v907
        %v3050 = vpack.c.bf16 %v909, %v909
        %v3051 = vpack.c.bf16 %v951, %v951
        %v3052 = vpack.c.bf16 %v959, %v959
        %v3053 = vpack.c.bf16 %v958, %v958
        %v3054 = vpack.c.bf16 %v960, %v960
        %v3055 = vpack.c.bf16 %v968, %v968
        %v3056 = vpack.c.bf16 %v976, %v976
        %v3057 = vpack.c.bf16 %v975, %v975
        %v3058 = vpack.c.bf16 %v977, %v977
        %v3059 = vpack.c.bf16 %v1019, %v1019
        %v3060 = vpack.c.bf16 %v1027, %v1027
        %v3061 = vpack.c.bf16 %v1026, %v1026
        %v3062 = vpack.c.bf16 %v1028, %v1028
        %v3063 = vpack.c.bf16 %v1036, %v1036
        %v3064 = vpack.c.bf16 %v1044, %v1044
        %v3065 = vpack.c.bf16 %v1043, %v1043
        %v3066 = vpack.c.bf16 %v1045, %v1045
        %v3067 = vld [vmem:[#allocation10] sm:$0x3]
        %v3068 = vld [vmem:[#allocation12] sm:$0x1]
        %v3070 = vlaneseq
        %v3071 = vshrl.u32 %v3070, 7
        %v3072 = vsub.s32 0, %v3071
        %v3073 = vrot.slane %v3068, %v3072
        %v3139 = vunpack.c.l.b16 %v3003
        %v3140 = vunpack.c.l.b16 %v3004
        %v3141 = vunpack.c.l.b16 %v3005
        %v3142 = vunpack.c.l.b16 %v3006
        %v3143 = vunpack.c.l.b16 %v3007
        %v3144 = vunpack.c.l.b16 %v3008
        %v3145 = vunpack.c.l.b16 %v3009
        %v3146 = vunpack.c.l.b16 %v3010
        %v3147 = vunpack.c.l.b16 %v3011
        %v3148 = vunpack.c.l.b16 %v3012
        %v3149 = vunpack.c.l.b16 %v3013
        %v3150 = vunpack.c.l.b16 %v3014
        %v3151 = vunpack.c.l.b16 %v3015
        %v3152 = vunpack.c.l.b16 %v3016
        %v3153 = vunpack.c.l.b16 %v3017
        %v3154 = vunpack.c.l.b16 %v3018
        %v3155 = vunpack.c.l.b16 %v3019
        %v3156 = vunpack.c.l.b16 %v3020
        %v3157 = vunpack.c.l.b16 %v3021
        %v3158 = vunpack.c.l.b16 %v3022
        %v3159 = vunpack.c.l.b16 %v3023
        %v3160 = vunpack.c.l.b16 %v3024
        %v3161 = vunpack.c.l.b16 %v3025
        %v3162 = vunpack.c.l.b16 %v3026
        %v3163 = vunpack.c.l.b16 %v3027
        %v3164 = vunpack.c.l.b16 %v3028
        %v3165 = vunpack.c.l.b16 %v3029
        %v3166 = vunpack.c.l.b16 %v3030
        %v3167 = vunpack.c.l.b16 %v3031
        %v3168 = vunpack.c.l.b16 %v3032
        %v3169 = vunpack.c.l.b16 %v3033
        %v3170 = vunpack.c.l.b16 %v3034
        %v3171 = vunpack.c.l.b16 %v3035
        %v3172 = vunpack.c.l.b16 %v3036
        %v3173 = vunpack.c.l.b16 %v3037
        %v3174 = vunpack.c.l.b16 %v3038
        %v3175 = vunpack.c.l.b16 %v3039
        %v3176 = vunpack.c.l.b16 %v3040
        %v3177 = vunpack.c.l.b16 %v3041
        %v3178 = vunpack.c.l.b16 %v3042
        %v3179 = vunpack.c.l.b16 %v3043
        %v3180 = vunpack.c.l.b16 %v3044
        %v3181 = vunpack.c.l.b16 %v3045
        %v3182 = vunpack.c.l.b16 %v3046
        %v3183 = vunpack.c.l.b16 %v3047
        %v3184 = vunpack.c.l.b16 %v3048
        %v3185 = vunpack.c.l.b16 %v3049
        %v3186 = vunpack.c.l.b16 %v3050
        %v3187 = vunpack.c.l.b16 %v3051
        %v3188 = vunpack.c.l.b16 %v3052
        %v3189 = vunpack.c.l.b16 %v3053
        %v3190 = vunpack.c.l.b16 %v3054
        %v3191 = vunpack.c.l.b16 %v3055
        %v3192 = vunpack.c.l.b16 %v3056
        %v3193 = vunpack.c.l.b16 %v3057
        %v3194 = vunpack.c.l.b16 %v3058
        %v3195 = vunpack.c.l.b16 %v3059
        %v3196 = vunpack.c.l.b16 %v3060
        %v3197 = vunpack.c.l.b16 %v3061
        %v3198 = vunpack.c.l.b16 %v3062
        %v3199 = vunpack.c.l.b16 %v3063
        %v3200 = vunpack.c.l.b16 %v3064
        %v3201 = vunpack.c.l.b16 %v3065
        %v3202 = vunpack.c.l.b16 %v3066
        %v3203 = vrot.slane %v3140, 7
        %v3204 = vsel %vm1951, %v3203, %v3139
        %v3205 = vrot.slane %v3141, 6
        %v3206 = vsel %vm1954, %v3205, %v3204
        %v3207 = vrot.slane %v3142, 5
        %v3208 = vsel %vm1957, %v3207, %v3206
        %v3209 = vrot.slane %v3143, 4
        %v3210 = vsel %vm1960, %v3209, %v3208
        %v3211 = vrot.slane %v3144, 3
        %v3212 = vsel %vm1963, %v3211, %v3210
        %v3213 = vrot.slane %v3145, 2
        %v3214 = vsel %vm1966, %v3213, %v3212
        %v3215 = vrot.slane %v3146, 1
        %v3216 = vsel %vm1969, %v3215, %v3214
        %v3217 = vrot.slane %v3148, 7
        %v3218 = vsel %vm1951, %v3217, %v3147
        %v3219 = vrot.slane %v3149, 6
        %v3220 = vsel %vm1954, %v3219, %v3218
        %v3221 = vrot.slane %v3150, 5
        %v3222 = vsel %vm1957, %v3221, %v3220
        %v3223 = vrot.slane %v3151, 4
        %v3224 = vsel %vm1960, %v3223, %v3222
        %v3225 = vrot.slane %v3152, 3
        %v3226 = vsel %vm1963, %v3225, %v3224
        %v3227 = vrot.slane %v3153, 2
        %v3228 = vsel %vm1966, %v3227, %v3226
        %v3229 = vrot.slane %v3154, 1
        %v3230 = vsel %vm1969, %v3229, %v3228
        %v3231 = vrot.slane %v3156, 7
        %v3232 = vsel %vm1951, %v3231, %v3155
        %v3233 = vrot.slane %v3157, 6
        %v3234 = vsel %vm1954, %v3233, %v3232
        %v3235 = vrot.slane %v3158, 5
        %v3236 = vsel %vm1957, %v3235, %v3234
        %v3237 = vrot.slane %v3159, 4
        %v3238 = vsel %vm1960, %v3237, %v3236
        %v3239 = vrot.slane %v3160, 3
        %v3240 = vsel %vm1963, %v3239, %v3238
        %v3241 = vrot.slane %v3161, 2
        %v3242 = vsel %vm1966, %v3241, %v3240
        %v3243 = vrot.slane %v3162, 1
        %v3244 = vsel %vm1969, %v3243, %v3242
        %v3245 = vrot.slane %v3164, 7
        %v3246 = vsel %vm1951, %v3245, %v3163
        %v3247 = vrot.slane %v3165, 6
        %v3248 = vsel %vm1954, %v3247, %v3246
        %v3249 = vrot.slane %v3166, 5
        %v3250 = vsel %vm1957, %v3249, %v3248
        %v3251 = vrot.slane %v3167, 4
        %v3252 = vsel %vm1960, %v3251, %v3250
        %v3253 = vrot.slane %v3168, 3
        %v3254 = vsel %vm1963, %v3253, %v3252
        %v3255 = vrot.slane %v3169, 2
        %v3256 = vsel %vm1966, %v3255, %v3254
        %v3257 = vrot.slane %v3170, 1
        %v3258 = vsel %vm1969, %v3257, %v3256
        %v3259 = vrot.slane %v3172, 7
        %v3260 = vsel %vm1951, %v3259, %v3171
        %v3261 = vrot.slane %v3173, 6
        %v3262 = vsel %vm1954, %v3261, %v3260
        %v3263 = vrot.slane %v3174, 5
        %v3264 = vsel %vm1957, %v3263, %v3262
        %v3265 = vrot.slane %v3175, 4
        %v3266 = vsel %vm1960, %v3265, %v3264
        %v3267 = vrot.slane %v3176, 3
        %v3268 = vsel %vm1963, %v3267, %v3266
        %v3269 = vrot.slane %v3177, 2
        %v3270 = vsel %vm1966, %v3269, %v3268
        %v3271 = vrot.slane %v3178, 1
        %v3272 = vsel %vm1969, %v3271, %v3270
        %v3273 = vrot.slane %v3180, 7
        %v3274 = vsel %vm1951, %v3273, %v3179
        %v3275 = vrot.slane %v3181, 6
        %v3276 = vsel %vm1954, %v3275, %v3274
        %v3277 = vrot.slane %v3182, 5
        %v3278 = vsel %vm1957, %v3277, %v3276
        %v3279 = vrot.slane %v3183, 4
        %v3280 = vsel %vm1960, %v3279, %v3278
        %v3281 = vrot.slane %v3184, 3
        %v3282 = vsel %vm1963, %v3281, %v3280
        %v3283 = vrot.slane %v3185, 2
        %v3284 = vsel %vm1966, %v3283, %v3282
        %v3285 = vrot.slane %v3186, 1
        %v3286 = vsel %vm1969, %v3285, %v3284
        %v3287 = vrot.slane %v3188, 7
        %v3288 = vsel %vm1951, %v3287, %v3187
        %v3289 = vrot.slane %v3189, 6
        %v3290 = vsel %vm1954, %v3289, %v3288
        %v3291 = vrot.slane %v3190, 5
        %v3292 = vsel %vm1957, %v3291, %v3290
        %v3293 = vrot.slane %v3191, 4
        %v3294 = vsel %vm1960, %v3293, %v3292
        %v3295 = vrot.slane %v3192, 3
        %v3296 = vsel %vm1963, %v3295, %v3294
        %v3297 = vrot.slane %v3193, 2
        %v3298 = vsel %vm1966, %v3297, %v3296
        %v3299 = vrot.slane %v3194, 1
        %v3300 = vsel %vm1969, %v3299, %v3298
        %v3301 = vrot.slane %v3196, 7
        %v3302 = vsel %vm1951, %v3301, %v3195
        %v3303 = vrot.slane %v3197, 6
        %v3304 = vsel %vm1954, %v3303, %v3302
        %v3305 = vrot.slane %v3198, 5
        %v3306 = vsel %vm1957, %v3305, %v3304
        %v3307 = vrot.slane %v3199, 4
        %v3308 = vsel %vm1960, %v3307, %v3306
        %v3309 = vrot.slane %v3200, 3
        %v3310 = vsel %vm1963, %v3309, %v3308
        %v3311 = vrot.slane %v3201, 2
        %v3312 = vsel %vm1966, %v3311, %v3310
        %v3313 = vrot.slane %v3202, 1
        %v3314 = vsel %vm1969, %v3313, %v3312
        %v3315 = vpack.c.b16 %v3230, %v3216
        %v3316 = vpack.c.b16 %v3258, %v3244
        %v3317 = vpack.c.b16 %v3286, %v3272
        %v3318 = vpack.c.b16 %v3314, %v3300
        %v3320 = vsel %vm414, %v3315, 0
        %v3323 = vsel %vm414, %v3316, 0
        %v3326 = vsel %vm414, %v3317, 0
        %v3329 = vsel %vm414, %v3318, 0
        %v3332 = vsel %vm2085, %v3067, 0
        %3334 = vmatprep.subr.bf16.mxu0 0
        %3335 = vmatpush1.bf16.msra.mxu0 %v3332
        %3336 = vmatprep.subr.bf16.mxu0 0
        %3337 = vmatpush1.bf16.msra.mxu0 0
        %3338 = vmatprep.subr.bf16.mxu0 0
        %3339 = vmatpush1.bf16.msra.mxu0 0
        %3340 = vmatprep.subr.bf16.mxu0 0
        %3341 = vmatpush1.bf16.msra.mxu0 0
        %3342 = vmatprep.subr.bf16.mxu0 0
        %3343 = vmatpush1.bf16.msra.mxu0 0
        %3344 = vmatprep.subr.bf16.mxu0 0
        %3345 = vmatpush1.bf16.msra.mxu0 0
        %3346 = vmatprep.subr.bf16.mxu0 0
        %3347 = vmatpush1.bf16.msra.mxu0 0
        %3348 = vmatprep.subr.bf16.mxu0 0
        %3349 = vmatpush1.bf16.msra.mxu0 0
        %3350 = vmatprep.subr.bf16.mxu0 0
        %3351 = vmatpush1.bf16.msra.mxu0 0
        %3352 = vmatprep.subr.bf16.mxu0 0
        %3353 = vmatpush1.bf16.msra.mxu0 0
        %3354 = vmatprep.subr.bf16.mxu0 0
        %3355 = vmatpush1.bf16.msra.mxu0 0
        %3356 = vmatprep.subr.bf16.mxu0 0
        %3357 = vmatpush1.bf16.msra.mxu0 0
        %3358 = vmatprep.subr.bf16.mxu0 0
        %3359 = vmatpush1.bf16.msra.mxu0 0
        %3360 = vmatprep.subr.bf16.mxu0 0
        %3361 = vmatpush1.bf16.msra.mxu0 0
        %3362 = vmatprep.subr.bf16.mxu0 0
        %3363 = vmatpush1.bf16.msra.mxu0 0
        %3364 = vmatprep.subr.bf16.mxu0 0
        %3365 = vmatpush1.bf16.msra.mxu0 0
        %3366 = vmatprep.mubr.bf16.mxu0 0
        %3367 = vmatmul.mubr.bf16.gmra.mrb[0].mxu0 %v3320
        %v3368 = vpop.f32.mrb[0].mxu0
        %v3369 = vadd.f32 %v3073, %v3368
        %v3370 = vpop.f32.mrb[0].mxu0
        %v3371 = vpop.f32.mrb[0].mxu0
        %v3372 = vadd.f32 %v3073, %v3371
        %v3373 = vpop.f32.mrb[0].mxu0
        %3374 = vmatprep.mubr.bf16.mxu0 0
        %3375 = vmatmul.mubr.bf16.gmra.mrb[0].mxu0 %v3323
        %v3376 = vpop.f32.mrb[0].mxu0
        %v3377 = vadd.f32 %v3073, %v3376
        %v3378 = vpop.f32.mrb[0].mxu0
        %v3379 = vpop.f32.mrb[0].mxu0
        %v3380 = vadd.f32 %v3073, %v3379
        %v3381 = vpop.f32.mrb[0].mxu0
        %3382 = vmatprep.mubr.bf16.mxu0 0
        %3383 = vmatmul.mubr.bf16.gmra.mrb[0].mxu0 %v3326
        %v3384 = vpop.f32.mrb[0].mxu0
        %v3385 = vadd.f32 %v3073, %v3384
        %v3386 = vpop.f32.mrb[0].mxu0
        %v3387 = vpop.f32.mrb[0].mxu0
        %v3388 = vadd.f32 %v3073, %v3387
        %v3389 = vpop.f32.mrb[0].mxu0
        %3390 = vmatprep.mubr.bf16.mxu0 0
        %3391 = vmatmul.mubr.bf16.gmra.mrb[0].mxu0 %v3329
        %v3392 = vpop.f32.mrb[0].mxu0
        %v3393 = vadd.f32 %v3073, %v3392
        %v3394 = vpop.f32.mrb[0].mxu0
        %v3395 = vpop.f32.mrb[0].mxu0
        %v3396 = vadd.f32 %v3073, %v3395
        %v3397 = vpop.f32.mrb[0].mxu0
        %3398 = vdwg.mxu0
        %v3399 = vxor.u32 %v3369, 2147483648
        %v3400 = vxor.u32 %v3372, 2147483648
        %v3401 = vxor.u32 %v3377, 2147483648
        %v3402 = vxor.u32 %v3380, 2147483648
        %v3403 = vxor.u32 %v3385, 2147483648
        %v3404 = vxor.u32 %v3388, 2147483648
        %v3405 = vxor.u32 %v3393, 2147483648
        %v3406 = vxor.u32 %v3396, 2147483648
        %v3407 = vmul.f32 %v3399, 1.442695
        %v3408 = vpow.pop %v3407
        %v3409 = vmul.f32 %v3400, 1.442695
        %v3410 = vpow.pop %v3409
        %v3411 = vmul.f32 %v3401, 1.442695
        %v3412 = vpow.pop %v3411
        %v3413 = vmul.f32 %v3402, 1.442695
        %v3414 = vpow.pop %v3413
        %v3415 = vmul.f32 %v3403, 1.442695
        %v3416 = vpow.pop %v3415
        %v3417 = vmul.f32 %v3404, 1.442695
        %v3418 = vpow.pop %v3417
        %v3419 = vmul.f32 %v3405, 1.442695
        %v3420 = vpow.pop %v3419
        %v3421 = vmul.f32 %v3406, 1.442695
        %v3422 = vpow.pop %v3421
        %v3423 = vadd.f32 %v3408, 1.0
        %v3424 = vadd.f32 %v3410, 1.0
        %v3425 = vadd.f32 %v3412, 1.0
        %v3426 = vadd.f32 %v3414, 1.0
        %v3427 = vadd.f32 %v3416, 1.0
        %v3428 = vadd.f32 %v3418, 1.0
        %v3429 = vadd.f32 %v3420, 1.0
        %v3430 = vadd.f32 %v3422, 1.0
        %v3431 = vrcp.pop %v3423
        %v3432 = vmul.f32 1.0, %v3431
        %v3433 = vrcp.pop %v3424
        %v3434 = vmul.f32 1.0, %v3433
        %v3435 = vrcp.pop %v3425
        %v3436 = vmul.f32 1.0, %v3435
        %v3437 = vrcp.pop %v3426
        %v3438 = vmul.f32 1.0, %v3437
        %v3439 = vrcp.pop %v3427
        %v3440 = vmul.f32 1.0, %v3439
        %v3441 = vrcp.pop %v3428
        %v3442 = vmul.f32 1.0, %v3441
        %v3443 = vrcp.pop %v3429
        %v3444 = vmul.f32 1.0, %v3443
        %v3445 = vrcp.pop %v3430
        %v3446 = vmul.f32 1.0, %v3445
        %v3447 = vmul.f32 %v3369, %v3432
        %v3448 = vmul.f32 %v3372, %v3434
        %v3449 = vmul.f32 %v3377, %v3436
        %v3450 = vmul.f32 %v3380, %v3438
        %v3451 = vmul.f32 %v3385, %v3440
        %v3452 = vmul.f32 %v3388, %v3442
        %v3453 = vmul.f32 %v3393, %v3444
        %v3454 = vmul.f32 %v3396, %v3446
        %v3455 = vpack.c.bf16 %v3447, %v3447
        %v3456 = vpack.c.bf16 %v3448, %v3448
        %v3457 = vpack.c.bf16 %v3449, %v3449
        %v3458 = vpack.c.bf16 %v3450, %v3450
        %v3459 = vpack.c.bf16 %v3451, %v3451
        %v3460 = vpack.c.bf16 %v3452, %v3452
        %v3461 = vpack.c.bf16 %v3453, %v3453
        %v3462 = vpack.c.bf16 %v3454, %v3454
        %v3471 = vrot.slane %v3455, 4
        %v3472 = vrot.slane %v3456, 4
        %v3473 = vrot.slane %v3457, 4
        %v3474 = vrot.slane %v3458, 4
        %v3475 = vrot.slane %v3459, 4
        %v3476 = vrot.slane %v3460, 4
        %v3477 = vrot.slane %v3461, 4
        %v3478 = vrot.slane %v3462, 4
        %s3487 = scalar_lea.vmem [#allocation2], 152
        %3488 = vst.msk [vmem:[%s3487] sm:$0xf0] %vm2694, %v3471
        %3489 = vst.msk [vmem:[%s3487 + $0x8] sm:$0xf0] %vm2694, %v3472
        %3490 = vst.msk [vmem:[%s3487 + $0x10] sm:$0xf0] %vm2694, %v3473
        %3491 = vst.msk [vmem:[%s3487 + $0x18] sm:$0xf0] %vm2694, %v3474
        %3492 = vst.msk [vmem:[%s3487 + $0x20] sm:$0xf0] %vm2694, %v3475
        %3493 = vst.msk [vmem:[%s3487 + $0x28] sm:$0xf0] %vm2694, %v3476
        %3494 = vst.msk [vmem:[%s3487 + $0x30] sm:$0xf0] %vm2694, %v3477
        %3495 = vst.msk [vmem:[%s3487 + $0x38] sm:$0xf0] %vm2694, %v3478
        %v3496 = vld [vmem:[#allocation10] sm:$0x3]
        %v3497 = vld [vmem:[#allocation12] sm:$0x1]
        %v3499 = vlaneseq
        %v3500 = vshrl.u32 %v3499, 7
        %v3501 = vsub.s32 0, %v3500
        %v3502 = vrot.slane %v3497, %v3501
        %v3504 = vrot.slane %v3139, 1
        %v3505 = vsel %vm1951, %v3140, %v3504
        %v3506 = vrot.slane %v3141, 7
        %v3507 = vsel %vm1954, %v3506, %v3505
        %v3508 = vrot.slane %v3142, 6
        %v3509 = vsel %vm1957, %v3508, %v3507
        %v3510 = vrot.slane %v3143, 5
        %v3511 = vsel %vm1960, %v3510, %v3509
        %v3512 = vrot.slane %v3144, 4
        %v3513 = vsel %vm1963, %v3512, %v3511
        %v3514 = vrot.slane %v3145, 3
        %v3515 = vsel %vm1966, %v3514, %v3513
        %v3516 = vrot.slane %v3146, 2
        %v3517 = vsel %vm1969, %v3516, %v3515
        %v3518 = vrot.slane %v3147, 1
        %v3519 = vsel %vm1951, %v3148, %v3518
        %v3520 = vrot.slane %v3149, 7
        %v3521 = vsel %vm1954, %v3520, %v3519
        %v3522 = vrot.slane %v3150, 6
        %v3523 = vsel %vm1957, %v3522, %v3521
        %v3524 = vrot.slane %v3151, 5
        %v3525 = vsel %vm1960, %v3524, %v3523
        %v3526 = vrot.slane %v3152, 4
        %v3527 = vsel %vm1963, %v3526, %v3525
        %v3528 = vrot.slane %v3153, 3
        %v3529 = vsel %vm1966, %v3528, %v3527
        %v3530 = vrot.slane %v3154, 2
        %v3531 = vsel %vm1969, %v3530, %v3529
        %v3532 = vrot.slane %v3155, 1
        %v3533 = vsel %vm1951, %v3156, %v3532
        %v3534 = vrot.slane %v3157, 7
        %v3535 = vsel %vm1954, %v3534, %v3533
        %v3536 = vrot.slane %v3158, 6
        %v3537 = vsel %vm1957, %v3536, %v3535
        %v3538 = vrot.slane %v3159, 5
        %v3539 = vsel %vm1960, %v3538, %v3537
        %v3540 = vrot.slane %v3160, 4
        %v3541 = vsel %vm1963, %v3540, %v3539
        %v3542 = vrot.slane %v3161, 3
        %v3543 = vsel %vm1966, %v3542, %v3541
        %v3544 = vrot.slane %v3162, 2
        %v3545 = vsel %vm1969, %v3544, %v3543
        %v3546 = vrot.slane %v3163, 1
        %v3547 = vsel %vm1951, %v3164, %v3546
        %v3548 = vrot.slane %v3165, 7
        %v3549 = vsel %vm1954, %v3548, %v3547
        %v3550 = vrot.slane %v3166, 6
        %v3551 = vsel %vm1957, %v3550, %v3549
        %v3552 = vrot.slane %v3167, 5
        %v3553 = vsel %vm1960, %v3552, %v3551
        %v3554 = vrot.slane %v3168, 4
        %v3555 = vsel %vm1963, %v3554, %v3553
        %v3556 = vrot.slane %v3169, 3
        %v3557 = vsel %vm1966, %v3556, %v3555
        %v3558 = vrot.slane %v3170, 2
        %v3559 = vsel %vm1969, %v3558, %v3557
        %v3560 = vrot.slane %v3171, 1
        %v3561 = vsel %vm1951, %v3172, %v3560
        %v3562 = vrot.slane %v3173, 7
        %v3563 = vsel %vm1954, %v3562, %v3561
        %v3564 = vrot.slane %v3174, 6
        %v3565 = vsel %vm1957, %v3564, %v3563
        %v3566 = vrot.slane %v3175, 5
        %v3567 = vsel %vm1960, %v3566, %v3565
        %v3568 = vrot.slane %v3176, 4
        %v3569 = vsel %vm1963, %v3568, %v3567
        %v3570 = vrot.slane %v3177, 3
        %v3571 = vsel %vm1966, %v3570, %v3569
        %v3572 = vrot.slane %v3178, 2
        %v3573 = vsel %vm1969, %v3572, %v3571
        %v3574 = vrot.slane %v3179, 1
        %v3575 = vsel %vm1951, %v3180, %v3574
        %v3576 = vrot.slane %v3181, 7
        %v3577 = vsel %vm1954, %v3576, %v3575
        %v3578 = vrot.slane %v3182, 6
        %v3579 = vsel %vm1957, %v3578, %v3577
        %v3580 = vrot.slane %v3183, 5
        %v3581 = vsel %vm1960, %v3580, %v3579
        %v3582 = vrot.slane %v3184, 4
        %v3583 = vsel %vm1963, %v3582, %v3581
        %v3584 = vrot.slane %v3185, 3
        %v3585 = vsel %vm1966, %v3584, %v3583
        %v3586 = vrot.slane %v3186, 2
        %v3587 = vsel %vm1969, %v3586, %v3585
        %v3588 = vrot.slane %v3187, 1
        %v3589 = vsel %vm1951, %v3188, %v3588
        %v3590 = vrot.slane %v3189, 7
        %v3591 = vsel %vm1954, %v3590, %v3589
        %v3592 = vrot.slane %v3190, 6
        %v3593 = vsel %vm1957, %v3592, %v3591
        %v3594 = vrot.slane %v3191, 5
        %v3595 = vsel %vm1960, %v3594, %v3593
        %v3596 = vrot.slane %v3192, 4
        %v3597 = vsel %vm1963, %v3596, %v3595
        %v3598 = vrot.slane %v3193, 3
        %v3599 = vsel %vm1966, %v3598, %v3597
        %v3600 = vrot.slane %v3194, 2
        %v3601 = vsel %vm1969, %v3600, %v3599
        %v3602 = vrot.slane %v3195, 1
        %v3603 = vsel %vm1951, %v3196, %v3602
        %v3604 = vrot.slane %v3197, 7
        %v3605 = vsel %vm1954, %v3604, %v3603
        %v3606 = vrot.slane %v3198, 6
        %v3607 = vsel %vm1957, %v3606, %v3605
        %v3608 = vrot.slane %v3199, 5
        %v3609 = vsel %vm1960, %v3608, %v3607
        %v3610 = vrot.slane %v3200, 4
        %v3611 = vsel %vm1963, %v3610, %v3609
        %v3612 = vrot.slane %v3201, 3
        %v3613 = vsel %vm1966, %v3612, %v3611
        %v3614 = vrot.slane %v3202, 2
        %v3615 = vsel %vm1969, %v3614, %v3613
        %v3616 = vpack.c.b16 %v3531, %v3517
        %v3617 = vpack.c.b16 %v3559, %v3545
        %v3618 = vpack.c.b16 %v3587, %v3573
        %v3619 = vpack.c.b16 %v3615, %v3601
        %v3621 = vsel %vm414, %v3616, 0
        %v3624 = vsel %vm414, %v3617, 0
        %v3627 = vsel %vm414, %v3618, 0
        %v3630 = vsel %vm414, %v3619, 0
        %v3633 = vsel %vm2085, %v3496, 0
        %3635 = vmatprep.subr.bf16.mxu0 0
        %3636 = vmatpush1.bf16.msra.mxu0 %v3633
        %3637 = vmatprep.subr.bf16.mxu0 0
        %3638 = vmatpush1.bf16.msra.mxu0 0
        %3639 = vmatprep.subr.bf16.mxu0 0
        %3640 = vmatpush1.bf16.msra.mxu0 0
        %3641 = vmatprep.subr.bf16.mxu0 0
        %3642 = vmatpush1.bf16.msra.mxu0 0
        %3643 = vmatprep.subr.bf16.mxu0 0
        %3644 = vmatpush1.bf16.msra.mxu0 0
        %3645 = vmatprep.subr.bf16.mxu0 0
        %3646 = vmatpush1.bf16.msra.mxu0 0
        %3647 = vmatprep.subr.bf16.mxu0 0
        %3648 = vmatpush1.bf16.msra.mxu0 0
        %3649 = vmatprep.subr.bf16.mxu0 0
        %3650 = vmatpush1.bf16.msra.mxu0 0
        %3651 = vmatprep.subr.bf16.mxu0 0
        %3652 = vmatpush1.bf16.msra.mxu0 0
        %3653 = vmatprep.subr.bf16.mxu0 0
        %3654 = vmatpush1.bf16.msra.mxu0 0
        %3655 = vmatprep.subr.bf16.mxu0 0
        %3656 = vmatpush1.bf16.msra.mxu0 0
        %3657 = vmatprep.subr.bf16.mxu0 0
        %3658 = vmatpush1.bf16.msra.mxu0 0
        %3659 = vmatprep.subr.bf16.mxu0 0
        %3660 = vmatpush1.bf16.msra.mxu0 0
        %3661 = vmatprep.subr.bf16.mxu0 0
        %3662 = vmatpush1.bf16.msra.mxu0 0
        %3663 = vmatprep.subr.bf16.mxu0 0
        %3664 = vmatpush1.bf16.msra.mxu0 0
        %3665 = vmatprep.subr.bf16.mxu0 0
        %3666 = vmatpush1.bf16.msra.mxu0 0
        %3667 = vmatprep.mubr.bf16.mxu0 0
        %3668 = vmatmul.mubr.bf16.gmra.mrb[0].mxu0 %v3621
        %v3669 = vpop.f32.mrb[0].mxu0
        %v3670 = vadd.f32 %v3502, %v3669
        %v3671 = vpop.f32.mrb[0].mxu0
        %v3672 = vpop.f32.mrb[0].mxu0
        %v3673 = vadd.f32 %v3502, %v3672
        %v3674 = vpop.f32.mrb[0].mxu0
        %3675 = vmatprep.mubr.bf16.mxu0 0
        %3676 = vmatmul.mubr.bf16.gmra.mrb[0].mxu0 %v3624
        %v3677 = vpop.f32.mrb[0].mxu0
        %v3678 = vadd.f32 %v3502, %v3677
        %v3679 = vpop.f32.mrb[0].mxu0
        %v3680 = vpop.f32.mrb[0].mxu0
        %v3681 = vadd.f32 %v3502, %v3680
        %v3682 = vpop.f32.mrb[0].mxu0
        %3683 = vmatprep.mubr.bf16.mxu0 0
        %3684 = vmatmul.mubr.bf16.gmra.mrb[0].mxu0 %v3627
        %v3685 = vpop.f32.mrb[0].mxu0
        %v3686 = vadd.f32 %v3502, %v3685
        %v3687 = vpop.f32.mrb[0].mxu0
        %v3688 = vpop.f32.mrb[0].mxu0
        %v3689 = vadd.f32 %v3502, %v3688
        %v3690 = vpop.f32.mrb[0].mxu0
        %3691 = vmatprep.mubr.bf16.mxu0 0
        %3692 = vmatmul.mubr.bf16.gmra.mrb[0].mxu0 %v3630
        %v3693 = vpop.f32.mrb[0].mxu0
        %v3694 = vadd.f32 %v3502, %v3693
        %v3695 = vpop.f32.mrb[0].mxu0
        %v3696 = vpop.f32.mrb[0].mxu0
        %v3697 = vadd.f32 %v3502, %v3696
        %v3698 = vpop.f32.mrb[0].mxu0
        %3699 = vdwg.mxu0
        %v3700 = vxor.u32 %v3670, 2147483648
        %v3701 = vxor.u32 %v3673, 2147483648
        %v3702 = vxor.u32 %v3678, 2147483648
        %v3703 = vxor.u32 %v3681, 2147483648
        %v3704 = vxor.u32 %v3686, 2147483648
        %v3705 = vxor.u32 %v3689, 2147483648
        %v3706 = vxor.u32 %v3694, 2147483648
        %v3707 = vxor.u32 %v3697, 2147483648
        %v3708 = vmul.f32 %v3700, 1.442695
        %v3709 = vpow.pop %v3708
        %v3710 = vmul.f32 %v3701, 1.442695
        %v3711 = vpow.pop %v3710
        %v3712 = vmul.f32 %v3702, 1.442695
        %v3713 = vpow.pop %v3712
        %v3714 = vmul.f32 %v3703, 1.442695
        %v3715 = vpow.pop %v3714
        %v3716 = vmul.f32 %v3704, 1.442695
        %v3717 = vpow.pop %v3716
        %v3718 = vmul.f32 %v3705, 1.442695
        %v3719 = vpow.pop %v3718
        %v3720 = vmul.f32 %v3706, 1.442695
        %v3721 = vpow.pop %v3720
        %v3722 = vmul.f32 %v3707, 1.442695
        %v3723 = vpow.pop %v3722
        %v3724 = vadd.f32 %v3709, 1.0
        %v3725 = vadd.f32 %v3711, 1.0
        %v3726 = vadd.f32 %v3713, 1.0
        %v3727 = vadd.f32 %v3715, 1.0
        %v3728 = vadd.f32 %v3717, 1.0
        %v3729 = vadd.f32 %v3719, 1.0
        %v3730 = vadd.f32 %v3721, 1.0
        %v3731 = vadd.f32 %v3723, 1.0
        %v3732 = vrcp.pop %v3724
        %v3733 = vmul.f32 1.0, %v3732
        %v3734 = vrcp.pop %v3725
        %v3735 = vmul.f32 1.0, %v3734
        %v3736 = vrcp.pop %v3726
        %v3737 = vmul.f32 1.0, %v3736
        %v3738 = vrcp.pop %v3727
        %v3739 = vmul.f32 1.0, %v3738
        %v3740 = vrcp.pop %v3728
        %v3741 = vmul.f32 1.0, %v3740
        %v3742 = vrcp.pop %v3729
        %v3743 = vmul.f32 1.0, %v3742
        %v3744 = vrcp.pop %v3730
        %v3745 = vmul.f32 1.0, %v3744
        %v3746 = vrcp.pop %v3731
        %v3747 = vmul.f32 1.0, %v3746
        %v3748 = vmul.f32 %v3670, %v3733
        %v3749 = vmul.f32 %v3673, %v3735
        %v3750 = vmul.f32 %v3678, %v3737
        %v3751 = vmul.f32 %v3681, %v3739
        %v3752 = vmul.f32 %v3686, %v3741
        %v3753 = vmul.f32 %v3689, %v3743
        %v3754 = vmul.f32 %v3694, %v3745
        %v3755 = vmul.f32 %v3697, %v3747
        %v3756 = vpack.c.bf16 %v3748, %v3748
        %v3757 = vpack.c.bf16 %v3749, %v3749
        %v3758 = vpack.c.bf16 %v3750, %v3750
        %v3759 = vpack.c.bf16 %v3751, %v3751
        %v3760 = vpack.c.bf16 %v3752, %v3752
        %v3761 = vpack.c.bf16 %v3753, %v3753
        %v3762 = vpack.c.bf16 %v3754, %v3754
        %v3763 = vpack.c.bf16 %v3755, %v3755
        %v3772 = vrot.slane %v3756, 4
        %v3773 = vrot.slane %v3757, 4
        %v3774 = vrot.slane %v3758, 4
        %v3775 = vrot.slane %v3759, 4
        %v3776 = vrot.slane %v3760, 4
        %v3777 = vrot.slane %v3761, 4
        %v3778 = vrot.slane %v3762, 4
        %v3779 = vrot.slane %v3763, 4
        %s3788 = scalar_lea.vmem [#allocation2], 224
        %3789 = vst.msk [vmem:[%s3788] sm:$0xf0] %vm2694, %v3772
        %3790 = vst.msk [vmem:[%s3788 + $0x8] sm:$0xf0] %vm2694, %v3773
        %3791 = vst.msk [vmem:[%s3788 + $0x10] sm:$0xf0] %vm2694, %v3774
        %3792 = vst.msk [vmem:[%s3788 + $0x18] sm:$0xf0] %vm2694, %v3775
        %3793 = vst.msk [vmem:[%s3788 + $0x20] sm:$0xf0] %vm2694, %v3776
        %3794 = vst.msk [vmem:[%s3788 + $0x28] sm:$0xf0] %vm2694, %v3777
        %3795 = vst.msk [vmem:[%s3788 + $0x30] sm:$0xf0] %vm2694, %v3778
        %3796 = vst.msk [vmem:[%s3788 + $0x38] sm:$0xf0] %vm2694, %v3779
        %3797 = vst.msk [vmem:[#allocation3] sm:$0xff] %vm414, 0.0
        %3798 = vst.msk [vmem:[#allocation3 + $0x8] sm:$0xff] %vm414, 0.0
        %3799 = vst.msk [vmem:[#allocation3 + $0x10] sm:$0xff] %vm414, 0.0
        %3800 = vst.msk [vmem:[#allocation3 + $0x18] sm:$0xff] %vm414, 0.0
        %3801 = vst.msk [vmem:[#allocation3 + $0x20] sm:$0xff] %vm414, 0.0
        %3802 = vst.msk [vmem:[#allocation3 + $0x28] sm:$0xff] %vm414, 0.0
        %3803 = vst.msk [vmem:[#allocation3 + $0x30] sm:$0xff] %vm414, 0.0
        %3804 = vst.msk [vmem:[#allocation3 + $0x38] sm:$0xff] %vm414, 0.0
        %v3805 = vld [vmem:[%s416] sm:$0xf8]
        %v3806 = vld [vmem:[%s416 + $0x8] sm:$0xf8]
        %v3807 = vld [vmem:[%s416 + $0x10] sm:$0xf8]
        %v3808 = vld [vmem:[%s416 + $0x18] sm:$0xf8]
        %v3809 = vld [vmem:[%s416 + $0x20] sm:$0xf8]
        %v3810 = vld [vmem:[%s416 + $0x28] sm:$0xf8]
        %v3811 = vld [vmem:[%s416 + $0x30] sm:$0xf8]
        %v3812 = vld [vmem:[%s416 + $0x38] sm:$0xf8]
        %v3813 = vld [vmem:[#allocation13] sm:$0x3]
        %v3814 = vld [vmem:[#allocation3] sm:$0xff]
        %v3815 = vld [vmem:[#allocation3 + $0x8] sm:$0xff]
        %v3816 = vld [vmem:[#allocation3 + $0x10] sm:$0xff]
        %v3817 = vld [vmem:[#allocation3 + $0x18] sm:$0xff]
        %v3818 = vld [vmem:[#allocation3 + $0x20] sm:$0xff]
        %v3819 = vld [vmem:[#allocation3 + $0x28] sm:$0xff]
        %v3820 = vld [vmem:[#allocation3 + $0x30] sm:$0xff]
        %v3821 = vld [vmem:[#allocation3 + $0x38] sm:$0xff]
        %v3830 = vunpack.c.l.b16 %v3805
        %v3831 = vunpack.c.h.b16 %v3805
        %v3832 = vunpack.c.l.b16 %v3806
        %v3833 = vunpack.c.h.b16 %v3806
        %v3834 = vunpack.c.l.b16 %v3807
        %v3835 = vunpack.c.h.b16 %v3807
        %v3836 = vunpack.c.l.b16 %v3808
        %v3837 = vunpack.c.h.b16 %v3808
        %v3838 = vunpack.c.l.b16 %v3809
        %v3839 = vunpack.c.h.b16 %v3809
        %v3840 = vunpack.c.l.b16 %v3810
        %v3841 = vunpack.c.h.b16 %v3810
        %v3842 = vunpack.c.l.b16 %v3811
        %v3843 = vunpack.c.h.b16 %v3811
        %v3844 = vunpack.c.l.b16 %v3812
        %v3845 = vunpack.c.h.b16 %v3812
        %v3846 = vpack.c.b16 %v3830, %v3830
        %v3847 = vpack.c.b16 %v3831, %v3831
        %v3848 = vpack.c.b16 %v3832, %v3832
        %v3849 = vpack.c.b16 %v3833, %v3833
        %v3850 = vpack.c.b16 %v3834, %v3834
        %v3851 = vpack.c.b16 %v3835, %v3835
        %v3852 = vpack.c.b16 %v3836, %v3836
        %v3853 = vpack.c.b16 %v3837, %v3837
        %v3854 = vpack.c.b16 %v3838, %v3838
        %v3855 = vpack.c.b16 %v3839, %v3839
        %v3856 = vpack.c.b16 %v3840, %v3840
        %v3857 = vpack.c.b16 %v3841, %v3841
        %v3858 = vpack.c.b16 %v3842, %v3842
        %v3859 = vpack.c.b16 %v3843, %v3843
        %v3860 = vpack.c.b16 %v3844, %v3844
        %v3861 = vpack.c.b16 %v3845, %v3845
        %vm3862 = vsmask.f32 256
        %vm3863 = vsmask.f32 4368
        %vm3864 = vmor %vm3862, %vm3863
        %v3866 = vshrl.u32 %v3846, 16
        %v3868 = vrot.slane %v3866, 7
        %v3869 = vrot.slane %v3868, 4
        %v3871 = vshrl.u32 %v3847, 16
        %v3873 = vrot.slane %v3871, 7
        %v3874 = vshll.u32 %v3847, 16
        %v3876 = vor.u32 %v3873, %v3874
        %v3877 = vsel %vm3864, %v3869, %v3876
        %v3879 = vshrl.u32 %v3848, 16
        %v3881 = vrot.slane %v3879, 7
        %v3882 = vrot.slane %v3881, 4
        %v3884 = vshrl.u32 %v3849, 16
        %v3886 = vrot.slane %v3884, 7
        %v3887 = vshll.u32 %v3849, 16
        %v3889 = vor.u32 %v3886, %v3887
        %v3890 = vsel %vm3864, %v3882, %v3889
        %v3892 = vshrl.u32 %v3850, 16
        %v3894 = vrot.slane %v3892, 7
        %v3895 = vrot.slane %v3894, 4
        %v3897 = vshrl.u32 %v3851, 16
        %v3899 = vrot.slane %v3897, 7
        %v3900 = vshll.u32 %v3851, 16
        %v3902 = vor.u32 %v3899, %v3900
        %v3903 = vsel %vm3864, %v3895, %v3902
        %v3905 = vshrl.u32 %v3852, 16
        %v3907 = vrot.slane %v3905, 7
        %v3908 = vrot.slane %v3907, 4
        %v3910 = vshrl.u32 %v3853, 16
        %v3912 = vrot.slane %v3910, 7
        %v3913 = vshll.u32 %v3853, 16
        %v3915 = vor.u32 %v3912, %v3913
        %v3916 = vsel %vm3864, %v3908, %v3915
        %v3918 = vshrl.u32 %v3854, 16
        %v3920 = vrot.slane %v3918, 7
        %v3921 = vrot.slane %v3920, 4
        %v3923 = vshrl.u32 %v3855, 16
        %v3925 = vrot.slane %v3923, 7
        %v3926 = vshll.u32 %v3855, 16
        %v3928 = vor.u32 %v3925, %v3926
        %v3929 = vsel %vm3864, %v3921, %v3928
        %v3931 = vshrl.u32 %v3856, 16
        %v3933 = vrot.slane %v3931, 7
        %v3934 = vrot.slane %v3933, 4
        %v3936 = vshrl.u32 %v3857, 16
        %v3938 = vrot.slane %v3936, 7
        %v3939 = vshll.u32 %v3857, 16
        %v3941 = vor.u32 %v3938, %v3939
        %v3942 = vsel %vm3864, %v3934, %v3941
        %v3944 = vshrl.u32 %v3858, 16
        %v3946 = vrot.slane %v3944, 7
        %v3947 = vrot.slane %v3946, 4
        %v3949 = vshrl.u32 %v3859, 16
        %v3951 = vrot.slane %v3949, 7
        %v3952 = vshll.u32 %v3859, 16
        %v3954 = vor.u32 %v3951, %v3952
        %v3955 = vsel %vm3864, %v3947, %v3954
        %v3957 = vshrl.u32 %v3860, 16
        %v3959 = vrot.slane %v3957, 7
        %v3960 = vrot.slane %v3959, 4
        %v3962 = vshrl.u32 %v3861, 16
        %v3964 = vrot.slane %v3962, 7
        %v3965 = vshll.u32 %v3861, 16
        %v3967 = vor.u32 %v3964, %v3965
        %v3968 = vsel %vm3864, %v3960, %v3967
        %v3969 = vunpack.c.l.b16 %v3877
        %v3970 = vunpack.c.l.b16 %v3890
        %v3971 = vunpack.c.l.b16 %v3903
        %v3972 = vunpack.c.l.b16 %v3916
        %v3973 = vunpack.c.l.b16 %v3929
        %v3974 = vunpack.c.l.b16 %v3942
        %v3975 = vunpack.c.l.b16 %v3955
        %v3976 = vunpack.c.l.b16 %v3968
        %v3977 = vpack.c.b16 %v3970, %v3969
        %v3978 = vpack.c.b16 %v3972, %v3971
        %v3979 = vpack.c.b16 %v3974, %v3973
        %v3980 = vpack.c.b16 %v3976, %v3975
        %v3982 = vsel %vm414, %v3977, 0
        %v3985 = vsel %vm414, %v3978, 0
        %v3988 = vsel %vm414, %v3979, 0
        %v3991 = vsel %vm414, %v3980, 0
        %v3994 = vsel %vm2085, %v3813, 0
        %3996 = vmatprep.subr.bf16.mxu0 0
        %3997 = vmatpush1.bf16.msra.mxu0 %v3994
        %3998 = vmatprep.subr.bf16.mxu0 0
        %3999 = vmatpush1.bf16.msra.mxu0 0
        %4000 = vmatprep.subr.bf16.mxu0 0
        %4001 = vmatpush1.bf16.msra.mxu0 0
        %4002 = vmatprep.subr.bf16.mxu0 0
        %4003 = vmatpush1.bf16.msra.mxu0 0
        %4004 = vmatprep.subr.bf16.mxu0 0
        %4005 = vmatpush1.bf16.msra.mxu0 0
        %4006 = vmatprep.subr.bf16.mxu0 0
        %4007 = vmatpush1.bf16.msra.mxu0 0
        %4008 = vmatprep.subr.bf16.mxu0 0
        %4009 = vmatpush1.bf16.msra.mxu0 0
        %4010 = vmatprep.subr.bf16.mxu0 0
        %4011 = vmatpush1.bf16.msra.mxu0 0
        %4012 = vmatprep.subr.bf16.mxu0 0
        %4013 = vmatpush1.bf16.msra.mxu0 0
        %4014 = vmatprep.subr.bf16.mxu0 0
        %4015 = vmatpush1.bf16.msra.mxu0 0
        %4016 = vmatprep.subr.bf16.mxu0 0
        %4017 = vmatpush1.bf16.msra.mxu0 0
        %4018 = vmatprep.subr.bf16.mxu0 0
        %4019 = vmatpush1.bf16.msra.mxu0 0
        %4020 = vmatprep.subr.bf16.mxu0 0
        %4021 = vmatpush1.bf16.msra.mxu0 0
        %4022 = vmatprep.subr.bf16.mxu0 0
        %4023 = vmatpush1.bf16.msra.mxu0 0
        %4024 = vmatprep.subr.bf16.mxu0 0
        %4025 = vmatpush1.bf16.msra.mxu0 0
        %4026 = vmatprep.subr.bf16.mxu0 0
        %4027 = vmatpush1.bf16.msra.mxu0 0
        %4028 = vmatprep.mubr.bf16.mxu0 0
        %4029 = vmatmul.mubr.bf16.gmra.mrb[0].mxu0 %v3982
        %v4030 = vpop.f32.mrb[0].mxu0
        %v4031 = vadd.f32 0.0, %v4030
        %v4032 = vpop.f32.mrb[0].mxu0
        %v4033 = vpop.f32.mrb[0].mxu0
        %v4034 = vadd.f32 0.0, %v4033
        %v4035 = vpop.f32.mrb[0].mxu0
        %4036 = vmatprep.mubr.bf16.mxu0 0
        %4037 = vmatmul.mubr.bf16.gmra.mrb[0].mxu0 %v3985
        %v4038 = vpop.f32.mrb[0].mxu0
        %v4039 = vadd.f32 0.0, %v4038
        %v4040 = vpop.f32.mrb[0].mxu0
        %v4041 = vpop.f32.mrb[0].mxu0
        %v4042 = vadd.f32 0.0, %v4041
        %v4043 = vpop.f32.mrb[0].mxu0
        %4044 = vmatprep.mubr.bf16.mxu0 0
        %4045 = vmatmul.mubr.bf16.gmra.mrb[0].mxu0 %v3988
        %v4046 = vpop.f32.mrb[0].mxu0
        %v4047 = vadd.f32 0.0, %v4046
        %v4048 = vpop.f32.mrb[0].mxu0
        %v4049 = vpop.f32.mrb[0].mxu0
        %v4050 = vadd.f32 0.0, %v4049
        %v4051 = vpop.f32.mrb[0].mxu0
        %4052 = vmatprep.mubr.bf16.mxu0 0
        %4053 = vmatmul.mubr.bf16.gmra.mrb[0].mxu0 %v3991
        %v4054 = vpop.f32.mrb[0].mxu0
        %v4055 = vadd.f32 0.0, %v4054
        %v4056 = vpop.f32.mrb[0].mxu0
        %v4057 = vpop.f32.mrb[0].mxu0
        %v4058 = vadd.f32 0.0, %v4057
        %v4059 = vpop.f32.mrb[0].mxu0
        %4060 = vdwg.mxu0
        %v4061 = vadd.f32 %v3814, %v4031
        %v4062 = vadd.f32 %v3815, %v4034
        %v4063 = vadd.f32 %v3816, %v4039
        %v4064 = vadd.f32 %v3817, %v4042
        %v4065 = vadd.f32 %v3818, %v4047
        %v4066 = vadd.f32 %v3819, %v4050
        %v4067 = vadd.f32 %v3820, %v4055
        %v4068 = vadd.f32 %v3821, %v4058
        %4069 = vst.msk [vmem:[#allocation3] sm:$0xff] %vm414, %v4061
        %4070 = vst.msk [vmem:[#allocation3 + $0x8] sm:$0xff] %vm414, %v4062
        %4071 = vst.msk [vmem:[#allocation3 + $0x10] sm:$0xff] %vm414, %v4063
        %4072 = vst.msk [vmem:[#allocation3 + $0x18] sm:$0xff] %vm414, %v4064
        %4073 = vst.msk [vmem:[#allocation3 + $0x20] sm:$0xff] %vm414, %v4065
        %4074 = vst.msk [vmem:[#allocation3 + $0x28] sm:$0xff] %vm414, %v4066
        %4075 = vst.msk [vmem:[#allocation3 + $0x30] sm:$0xff] %vm414, %v4067
        %4076 = vst.msk [vmem:[#allocation3 + $0x38] sm:$0xff] %vm414, %v4068
        %v4077 = vld [vmem:[%s413] sm:$0xf0]
        %v4078 = vld [vmem:[%s413 + $0x8] sm:$0xf0]
        %v4079 = vld [vmem:[%s413 + $0x10] sm:$0xf0]
        %v4080 = vld [vmem:[%s413 + $0x18] sm:$0xf0]
        %v4081 = vld [vmem:[%s413 + $0x20] sm:$0xf0]
        %v4082 = vld [vmem:[%s413 + $0x28] sm:$0xf0]
        %v4083 = vld [vmem:[%s413 + $0x30] sm:$0xf0]
        %v4084 = vld [vmem:[%s413 + $0x38] sm:$0xf0]
        %v4085 = vld [vmem:[#allocation13] sm:$0xc]
        %v4086 = vld [vmem:[#allocation3] sm:$0xff]
        %v4087 = vld [vmem:[#allocation3 + $0x8] sm:$0xff]
        %v4088 = vld [vmem:[#allocation3 + $0x10] sm:$0xff]
        %v4089 = vld [vmem:[#allocation3 + $0x18] sm:$0xff]
        %v4090 = vld [vmem:[#allocation3 + $0x20] sm:$0xff]
        %v4091 = vld [vmem:[#allocation3 + $0x28] sm:$0xff]
        %v4092 = vld [vmem:[#allocation3 + $0x30] sm:$0xff]
        %v4093 = vld [vmem:[#allocation3 + $0x38] sm:$0xff]
        %v4102 = vunpack.c.h.b16 %v4077
        %v4103 = vunpack.c.h.b16 %v4078
        %v4104 = vunpack.c.h.b16 %v4079
        %v4105 = vunpack.c.h.b16 %v4080
        %v4106 = vunpack.c.h.b16 %v4081
        %v4107 = vunpack.c.h.b16 %v4082
        %v4108 = vunpack.c.h.b16 %v4083
        %v4109 = vunpack.c.h.b16 %v4084
        %v4110 = vpack.c.b16 %v4103, %v4102
        %v4111 = vpack.c.b16 %v4105, %v4104
        %v4112 = vpack.c.b16 %v4107, %v4106
        %v4113 = vpack.c.b16 %v4109, %v4108
        %v4115 = vunpack.c.l.b16 %v4085
        %v4116 = vpack.c.b16 %v4115, %v4115
        %v4117 = vrot.slane %v4116, 2
        %v4119 = vsel %vm414, %v4110, 0
        %v4122 = vsel %vm414, %v4111, 0
        %v4125 = vsel %vm414, %v4112, 0
        %v4128 = vsel %vm414, %v4113, 0
        %v4131 = vsel %vm2085, %v4117, 0
        %4133 = vmatprep.subr.bf16.mxu0 0
        %4134 = vmatpush1.bf16.msra.mxu0 %v4131
        %4135 = vmatprep.subr.bf16.mxu0 0
        %4136 = vmatpush1.bf16.msra.mxu0 0
        %4137 = vmatprep.subr.bf16.mxu0 0
        %4138 = vmatpush1.bf16.msra.mxu0 0
        %4139 = vmatprep.subr.bf16.mxu0 0
        %4140 = vmatpush1.bf16.msra.mxu0 0
        %4141 = vmatprep.subr.bf16.mxu0 0
        %4142 = vmatpush1.bf16.msra.mxu0 0
        %4143 = vmatprep.subr.bf16.mxu0 0
        %4144 = vmatpush1.bf16.msra.mxu0 0
        %4145 = vmatprep.subr.bf16.mxu0 0
        %4146 = vmatpush1.bf16.msra.mxu0 0
        %4147 = vmatprep.subr.bf16.mxu0 0
        %4148 = vmatpush1.bf16.msra.mxu0 0
        %4149 = vmatprep.subr.bf16.mxu0 0
        %4150 = vmatpush1.bf16.msra.mxu0 0
        %4151 = vmatprep.subr.bf16.mxu0 0
        %4152 = vmatpush1.bf16.msra.mxu0 0
        %4153 = vmatprep.subr.bf16.mxu0 0
        %4154 = vmatpush1.bf16.msra.mxu0 0
        %4155 = vmatprep.subr.bf16.mxu0 0
        %4156 = vmatpush1.bf16.msra.mxu0 0
        %4157 = vmatprep.subr.bf16.mxu0 0
        %4158 = vmatpush1.bf16.msra.mxu0 0
        %4159 = vmatprep.subr.bf16.mxu0 0
        %4160 = vmatpush1.bf16.msra.mxu0 0
        %4161 = vmatprep.subr.bf16.mxu0 0
        %4162 = vmatpush1.bf16.msra.mxu0 0
        %4163 = vmatprep.subr.bf16.mxu0 0
        %4164 = vmatpush1.bf16.msra.mxu0 0
        %4165 = vmatprep.mubr.bf16.mxu0 0
        %4166 = vmatmul.mubr.bf16.gmra.mrb[0].mxu0 %v4119
        %v4167 = vpop.f32.mrb[0].mxu0
        %v4168 = vadd.f32 0.0, %v4167
        %v4169 = vpop.f32.mrb[0].mxu0
        %v4170 = vpop.f32.mrb[0].mxu0
        %v4171 = vadd.f32 0.0, %v4170
        %v4172 = vpop.f32.mrb[0].mxu0
        %4173 = vmatprep.mubr.bf16.mxu0 0
        %4174 = vmatmul.mubr.bf16.gmra.mrb[0].mxu0 %v4122
        %v4175 = vpop.f32.mrb[0].mxu0
        %v4176 = vadd.f32 0.0, %v4175
        %v4177 = vpop.f32.mrb[0].mxu0
        %v4178 = vpop.f32.mrb[0].mxu0
        %v4179 = vadd.f32 0.0, %v4178
        %v4180 = vpop.f32.mrb[0].mxu0
        %4181 = vmatprep.mubr.bf16.mxu0 0
        %4182 = vmatmul.mubr.bf16.gmra.mrb[0].mxu0 %v4125
        %v4183 = vpop.f32.mrb[0].mxu0
        %v4184 = vadd.f32 0.0, %v4183
        %v4185 = vpop.f32.mrb[0].mxu0
        %v4186 = vpop.f32.mrb[0].mxu0
        %v4187 = vadd.f32 0.0, %v4186
        %v4188 = vpop.f32.mrb[0].mxu0
        %4189 = vmatprep.mubr.bf16.mxu0 0
        %4190 = vmatmul.mubr.bf16.gmra.mrb[0].mxu0 %v4128
        %v4191 = vpop.f32.mrb[0].mxu0
        %v4192 = vadd.f32 0.0, %v4191
        %v4193 = vpop.f32.mrb[0].mxu0
        %v4194 = vpop.f32.mrb[0].mxu0
        %v4195 = vadd.f32 0.0, %v4194
        %v4196 = vpop.f32.mrb[0].mxu0
        %4197 = vdwg.mxu0
        %v4198 = vadd.f32 %v4086, %v4168
        %v4199 = vadd.f32 %v4087, %v4171
        %v4200 = vadd.f32 %v4088, %v4176
        %v4201 = vadd.f32 %v4089, %v4179
        %v4202 = vadd.f32 %v4090, %v4184
        %v4203 = vadd.f32 %v4091, %v4187
        %v4204 = vadd.f32 %v4092, %v4192
        %v4205 = vadd.f32 %v4093, %v4195
        %4206 = vst.msk [vmem:[#allocation3] sm:$0xff] %vm414, %v4198
        %4207 = vst.msk [vmem:[#allocation3 + $0x8] sm:$0xff] %vm414, %v4199
        %4208 = vst.msk [vmem:[#allocation3 + $0x10] sm:$0xff] %vm414, %v4200
        %4209 = vst.msk [vmem:[#allocation3 + $0x18] sm:$0xff] %vm414, %v4201
        %4210 = vst.msk [vmem:[#allocation3 + $0x20] sm:$0xff] %vm414, %v4202
        %4211 = vst.msk [vmem:[#allocation3 + $0x28] sm:$0xff] %vm414, %v4203
        %4212 = vst.msk [vmem:[#allocation3 + $0x30] sm:$0xff] %vm414, %v4204
        %4213 = vst.msk [vmem:[#allocation3 + $0x38] sm:$0xff] %vm414, %v4205
        %v4214 = vld [vmem:[%s416] sm:$0xf0]
        %v4215 = vld [vmem:[%s416 + $0x8] sm:$0xf0]
        %v4216 = vld [vmem:[%s416 + $0x10] sm:$0xf0]
        %v4217 = vld [vmem:[%s416 + $0x18] sm:$0xf0]
        %v4218 = vld [vmem:[%s416 + $0x20] sm:$0xf0]
        %v4219 = vld [vmem:[%s416 + $0x28] sm:$0xf0]
        %v4220 = vld [vmem:[%s416 + $0x30] sm:$0xf0]
        %v4221 = vld [vmem:[%s416 + $0x38] sm:$0xf0]
        %v4222 = vld [vmem:[#allocation13 + $0x4] sm:$0x3]
        %v4223 = vld [vmem:[#allocation3] sm:$0xff]
        %v4224 = vld [vmem:[#allocation3 + $0x8] sm:$0xff]
        %v4225 = vld [vmem:[#allocation3 + $0x10] sm:$0xff]
        %v4226 = vld [vmem:[#allocation3 + $0x18] sm:$0xff]
        %v4227 = vld [vmem:[#allocation3 + $0x20] sm:$0xff]
        %v4228 = vld [vmem:[#allocation3 + $0x28] sm:$0xff]
        %v4229 = vld [vmem:[#allocation3 + $0x30] sm:$0xff]
        %v4230 = vld [vmem:[#allocation3 + $0x38] sm:$0xff]
        %v4239 = vunpack.c.h.b16 %v4214
        %v4240 = vunpack.c.h.b16 %v4215
        %v4241 = vunpack.c.h.b16 %v4216
        %v4242 = vunpack.c.h.b16 %v4217
        %v4243 = vunpack.c.h.b16 %v4218
        %v4244 = vunpack.c.h.b16 %v4219
        %v4245 = vunpack.c.h.b16 %v4220
        %v4246 = vunpack.c.h.b16 %v4221
        %v4247 = vpack.c.b16 %v4240, %v4239
        %v4248 = vpack.c.b16 %v4242, %v4241
        %v4249 = vpack.c.b16 %v4244, %v4243
        %v4250 = vpack.c.b16 %v4246, %v4245
        %v4252 = vsel %vm414, %v4247, 0
        %v4255 = vsel %vm414, %v4248, 0
        %v4258 = vsel %vm414, %v4249, 0
        %v4261 = vsel %vm414, %v4250, 0
        %v4264 = vsel %vm2085, %v4222, 0
        %4266 = vmatprep.subr.bf16.mxu0 0
        %4267 = vmatpush1.bf16.msra.mxu0 %v4264
        %4268 = vmatprep.subr.bf16.mxu0 0
        %4269 = vmatpush1.bf16.msra.mxu0 0
        %4270 = vmatprep.subr.bf16.mxu0 0
        %4271 = vmatpush1.bf16.msra.mxu0 0
        %4272 = vmatprep.subr.bf16.mxu0 0
        %4273 = vmatpush1.bf16.msra.mxu0 0
        %4274 = vmatprep.subr.bf16.mxu0 0
        %4275 = vmatpush1.bf16.msra.mxu0 0
        %4276 = vmatprep.subr.bf16.mxu0 0
        %4277 = vmatpush1.bf16.msra.mxu0 0
        %4278 = vmatprep.subr.bf16.mxu0 0
        %4279 = vmatpush1.bf16.msra.mxu0 0
        %4280 = vmatprep.subr.bf16.mxu0 0
        %4281 = vmatpush1.bf16.msra.mxu0 0
        %4282 = vmatprep.subr.bf16.mxu0 0
        %4283 = vmatpush1.bf16.msra.mxu0 0
        %4284 = vmatprep.subr.bf16.mxu0 0
        %4285 = vmatpush1.bf16.msra.mxu0 0
        %4286 = vmatprep.subr.bf16.mxu0 0
        %4287 = vmatpush1.bf16.msra.mxu0 0
        %4288 = vmatprep.subr.bf16.mxu0 0
        %4289 = vmatpush1.bf16.msra.mxu0 0
        %4290 = vmatprep.subr.bf16.mxu0 0
        %4291 = vmatpush1.bf16.msra.mxu0 0
        %4292 = vmatprep.subr.bf16.mxu0 0
        %4293 = vmatpush1.bf16.msra.mxu0 0
        %4294 = vmatprep.subr.bf16.mxu0 0
        %4295 = vmatpush1.bf16.msra.mxu0 0
        %4296 = vmatprep.subr.bf16.mxu0 0
        %4297 = vmatpush1.bf16.msra.mxu0 0
        %4298 = vmatprep.mubr.bf16.mxu0 0
        %4299 = vmatmul.mubr.bf16.gmra.mrb[0].mxu0 %v4252
        %v4300 = vpop.f32.mrb[0].mxu0
        %v4301 = vadd.f32 0.0, %v4300
        %v4302 = vpop.f32.mrb[0].mxu0
        %v4303 = vpop.f32.mrb[0].mxu0
        %v4304 = vadd.f32 0.0, %v4303
        %v4305 = vpop.f32.mrb[0].mxu0
        %4306 = vmatprep.mubr.bf16.mxu0 0
        %4307 = vmatmul.mubr.bf16.gmra.mrb[0].mxu0 %v4255
        %v4308 = vpop.f32.mrb[0].mxu0
        %v4309 = vadd.f32 0.0, %v4308
        %v4310 = vpop.f32.mrb[0].mxu0
        %v4311 = vpop.f32.mrb[0].mxu0
        %v4312 = vadd.f32 0.0, %v4311
        %v4313 = vpop.f32.mrb[0].mxu0
        %4314 = vmatprep.mubr.bf16.mxu0 0
        %4315 = vmatmul.mubr.bf16.gmra.mrb[0].mxu0 %v4258
        %v4316 = vpop.f32.mrb[0].mxu0
        %v4317 = vadd.f32 0.0, %v4316
        %v4318 = vpop.f32.mrb[0].mxu0
        %v4319 = vpop.f32.mrb[0].mxu0
        %v4320 = vadd.f32 0.0, %v4319
        %v4321 = vpop.f32.mrb[0].mxu0
        %4322 = vmatprep.mubr.bf16.mxu0 0
        %4323 = vmatmul.mubr.bf16.gmra.mrb[0].mxu0 %v4261
        %v4324 = vpop.f32.mrb[0].mxu0
        %v4325 = vadd.f32 0.0, %v4324
        %v4326 = vpop.f32.mrb[0].mxu0
        %v4327 = vpop.f32.mrb[0].mxu0
        %v4328 = vadd.f32 0.0, %v4327
        %v4329 = vpop.f32.mrb[0].mxu0
        %4330 = vdwg.mxu0
        %v4331 = vadd.f32 %v4223, %v4301
        %v4332 = vadd.f32 %v4224, %v4304
        %v4333 = vadd.f32 %v4225, %v4309
        %v4334 = vadd.f32 %v4226, %v4312
        %v4335 = vadd.f32 %v4227, %v4317
        %v4336 = vadd.f32 %v4228, %v4320
        %v4337 = vadd.f32 %v4229, %v4325
        %v4338 = vadd.f32 %v4230, %v4328
        %4339 = vst.msk [vmem:[#allocation3] sm:$0xff] %vm414, %v4331
        %4340 = vst.msk [vmem:[#allocation3 + $0x8] sm:$0xff] %vm414, %v4332
        %4341 = vst.msk [vmem:[#allocation3 + $0x10] sm:$0xff] %vm414, %v4333
        %4342 = vst.msk [vmem:[#allocation3 + $0x18] sm:$0xff] %vm414, %v4334
        %4343 = vst.msk [vmem:[#allocation3 + $0x20] sm:$0xff] %vm414, %v4335
        %4344 = vst.msk [vmem:[#allocation3 + $0x28] sm:$0xff] %vm414, %v4336
        %4345 = vst.msk [vmem:[#allocation3 + $0x30] sm:$0xff] %vm414, %v4337
        %4346 = vst.msk [vmem:[#allocation3 + $0x38] sm:$0xff] %vm414, %v4338
        %v4347 = vld [vmem:[%s418] sm:$0xf8]
        %v4348 = vld [vmem:[%s418 + $0x8] sm:$0xf8]
        %v4349 = vld [vmem:[%s418 + $0x10] sm:$0xf8]
        %v4350 = vld [vmem:[%s418 + $0x18] sm:$0xf8]
        %v4351 = vld [vmem:[%s418 + $0x20] sm:$0xf8]
        %v4352 = vld [vmem:[%s418 + $0x28] sm:$0xf8]
        %v4353 = vld [vmem:[%s418 + $0x30] sm:$0xf8]
        %v4354 = vld [vmem:[%s418 + $0x38] sm:$0xf8]
        %v4355 = vld [vmem:[#allocation13 + $0x4] sm:$0xc]
        %v4356 = vld [vmem:[#allocation3] sm:$0xff]
        %v4357 = vld [vmem:[#allocation3 + $0x8] sm:$0xff]
        %v4358 = vld [vmem:[#allocation3 + $0x10] sm:$0xff]
        %v4359 = vld [vmem:[#allocation3 + $0x18] sm:$0xff]
        %v4360 = vld [vmem:[#allocation3 + $0x20] sm:$0xff]
        %v4361 = vld [vmem:[#allocation3 + $0x28] sm:$0xff]
        %v4362 = vld [vmem:[#allocation3 + $0x30] sm:$0xff]
        %v4363 = vld [vmem:[#allocation3 + $0x38] sm:$0xff]
        %v4372 = vunpack.c.l.b16 %v4347
        %v4373 = vunpack.c.h.b16 %v4347
        %v4374 = vunpack.c.l.b16 %v4348
        %v4375 = vunpack.c.h.b16 %v4348
        %v4376 = vunpack.c.l.b16 %v4349
        %v4377 = vunpack.c.h.b16 %v4349
        %v4378 = vunpack.c.l.b16 %v4350
        %v4379 = vunpack.c.h.b16 %v4350
        %v4380 = vunpack.c.l.b16 %v4351
        %v4381 = vunpack.c.h.b16 %v4351
        %v4382 = vunpack.c.l.b16 %v4352
        %v4383 = vunpack.c.h.b16 %v4352
        %v4384 = vunpack.c.l.b16 %v4353
        %v4385 = vunpack.c.h.b16 %v4353
        %v4386 = vunpack.c.l.b16 %v4354
        %v4387 = vunpack.c.h.b16 %v4354
        %v4388 = vpack.c.b16 %v4372, %v4372
        %v4389 = vpack.c.b16 %v4373, %v4373
        %v4390 = vpack.c.b16 %v4374, %v4374
        %v4391 = vpack.c.b16 %v4375, %v4375
        %v4392 = vpack.c.b16 %v4376, %v4376
        %v4393 = vpack.c.b16 %v4377, %v4377
        %v4394 = vpack.c.b16 %v4378, %v4378
        %v4395 = vpack.c.b16 %v4379, %v4379
        %v4396 = vpack.c.b16 %v4380, %v4380
        %v4397 = vpack.c.b16 %v4381, %v4381
        %v4398 = vpack.c.b16 %v4382, %v4382
        %v4399 = vpack.c.b16 %v4383, %v4383
        %v4400 = vpack.c.b16 %v4384, %v4384
        %v4401 = vpack.c.b16 %v4385, %v4385
        %v4402 = vpack.c.b16 %v4386, %v4386
        %v4403 = vpack.c.b16 %v4387, %v4387
        %v4405 = vshrl.u32 %v4388, 16
        %v4407 = vrot.slane %v4405, 7
        %v4408 = vrot.slane %v4407, 4
        %v4410 = vshrl.u32 %v4389, 16
        %v4412 = vrot.slane %v4410, 7
        %v4413 = vshll.u32 %v4389, 16
        %v4415 = vor.u32 %v4412, %v4413
        %v4416 = vsel %vm3864, %v4408, %v4415
        %v4418 = vshrl.u32 %v4390, 16
        %v4420 = vrot.slane %v4418, 7
        %v4421 = vrot.slane %v4420, 4
        %v4423 = vshrl.u32 %v4391, 16
        %v4425 = vrot.slane %v4423, 7
        %v4426 = vshll.u32 %v4391, 16
        %v4428 = vor.u32 %v4425, %v4426
        %v4429 = vsel %vm3864, %v4421, %v4428
        %v4431 = vshrl.u32 %v4392, 16
        %v4433 = vrot.slane %v4431, 7
        %v4434 = vrot.slane %v4433, 4
        %v4436 = vshrl.u32 %v4393, 16
        %v4438 = vrot.slane %v4436, 7
        %v4439 = vshll.u32 %v4393, 16
        %v4441 = vor.u32 %v4438, %v4439
        %v4442 = vsel %vm3864, %v4434, %v4441
        %v4444 = vshrl.u32 %v4394, 16
        %v4446 = vrot.slane %v4444, 7
        %v4447 = vrot.slane %v4446, 4
        %v4449 = vshrl.u32 %v4395, 16
        %v4451 = vrot.slane %v4449, 7
        %v4452 = vshll.u32 %v4395, 16
        %v4454 = vor.u32 %v4451, %v4452
        %v4455 = vsel %vm3864, %v4447, %v4454
        %v4457 = vshrl.u32 %v4396, 16
        %v4459 = vrot.slane %v4457, 7
        %v4460 = vrot.slane %v4459, 4
        %v4462 = vshrl.u32 %v4397, 16
        %v4464 = vrot.slane %v4462, 7
        %v4465 = vshll.u32 %v4397, 16
        %v4467 = vor.u32 %v4464, %v4465
        %v4468 = vsel %vm3864, %v4460, %v4467
        %v4470 = vshrl.u32 %v4398, 16
        %v4472 = vrot.slane %v4470, 7
        %v4473 = vrot.slane %v4472, 4
        %v4475 = vshrl.u32 %v4399, 16
        %v4477 = vrot.slane %v4475, 7
        %v4478 = vshll.u32 %v4399, 16
        %v4480 = vor.u32 %v4477, %v4478
        %v4481 = vsel %vm3864, %v4473, %v4480
        %v4483 = vshrl.u32 %v4400, 16
        %v4485 = vrot.slane %v4483, 7
        %v4486 = vrot.slane %v4485, 4
        %v4488 = vshrl.u32 %v4401, 16
        %v4490 = vrot.slane %v4488, 7
        %v4491 = vshll.u32 %v4401, 16
        %v4493 = vor.u32 %v4490, %v4491
        %v4494 = vsel %vm3864, %v4486, %v4493
        %v4496 = vshrl.u32 %v4402, 16
        %v4498 = vrot.slane %v4496, 7
        %v4499 = vrot.slane %v4498, 4
        %v4501 = vshrl.u32 %v4403, 16
        %v4503 = vrot.slane %v4501, 7
        %v4504 = vshll.u32 %v4403, 16
        %v4506 = vor.u32 %v4503, %v4504
        %v4507 = vsel %vm3864, %v4499, %v4506
        %v4508 = vunpack.c.l.b16 %v4416
        %v4509 = vunpack.c.l.b16 %v4429
        %v4510 = vunpack.c.l.b16 %v4442
        %v4511 = vunpack.c.l.b16 %v4455
        %v4512 = vunpack.c.l.b16 %v4468
        %v4513 = vunpack.c.l.b16 %v4481
        %v4514 = vunpack.c.l.b16 %v4494
        %v4515 = vunpack.c.l.b16 %v4507
        %v4516 = vpack.c.b16 %v4509, %v4508
        %v4517 = vpack.c.b16 %v4511, %v4510
        %v4518 = vpack.c.b16 %v4513, %v4512
        %v4519 = vpack.c.b16 %v4515, %v4514
        %v4521 = vunpack.c.l.b16 %v4355
        %v4522 = vpack.c.b16 %v4521, %v4521
        %v4523 = vrot.slane %v4522, 2
        %v4525 = vsel %vm414, %v4516, 0
        %v4528 = vsel %vm414, %v4517, 0
        %v4531 = vsel %vm414, %v4518, 0
        %v4534 = vsel %vm414, %v4519, 0
        %v4537 = vsel %vm2085, %v4523, 0
        %4539 = vmatprep.subr.bf16.mxu0 0
        %4540 = vmatpush1.bf16.msra.mxu0 %v4537
        %4541 = vmatprep.subr.bf16.mxu0 0
        %4542 = vmatpush1.bf16.msra.mxu0 0
        %4543 = vmatprep.subr.bf16.mxu0 0
        %4544 = vmatpush1.bf16.msra.mxu0 0
        %4545 = vmatprep.subr.bf16.mxu0 0
        %4546 = vmatpush1.bf16.msra.mxu0 0
        %4547 = vmatprep.subr.bf16.mxu0 0
        %4548 = vmatpush1.bf16.msra.mxu0 0
        %4549 = vmatprep.subr.bf16.mxu0 0
        %4550 = vmatpush1.bf16.msra.mxu0 0
        %4551 = vmatprep.subr.bf16.mxu0 0
        %4552 = vmatpush1.bf16.msra.mxu0 0
        %4553 = vmatprep.subr.bf16.mxu0 0
        %4554 = vmatpush1.bf16.msra.mxu0 0
        %4555 = vmatprep.subr.bf16.mxu0 0
        %4556 = vmatpush1.bf16.msra.mxu0 0
        %4557 = vmatprep.subr.bf16.mxu0 0
        %4558 = vmatpush1.bf16.msra.mxu0 0
        %4559 = vmatprep.subr.bf16.mxu0 0
        %4560 = vmatpush1.bf16.msra.mxu0 0
        %4561 = vmatprep.subr.bf16.mxu0 0
        %4562 = vmatpush1.bf16.msra.mxu0 0
        %4563 = vmatprep.subr.bf16.mxu0 0
        %4564 = vmatpush1.bf16.msra.mxu0 0
        %4565 = vmatprep.subr.bf16.mxu0 0
        %4566 = vmatpush1.bf16.msra.mxu0 0
        %4567 = vmatprep.subr.bf16.mxu0 0
        %4568 = vmatpush1.bf16.msra.mxu0 0
        %4569 = vmatprep.subr.bf16.mxu0 0
        %4570 = vmatpush1.bf16.msra.mxu0 0
        %4571 = vmatprep.mubr.bf16.mxu0 0
        %4572 = vmatmul.mubr.bf16.gmra.mrb[0].mxu0 %v4525
        %v4573 = vpop.f32.mrb[0].mxu0
        %v4574 = vadd.f32 0.0, %v4573
        %v4575 = vpop.f32.mrb[0].mxu0
        %v4576 = vpop.f32.mrb[0].mxu0
        %v4577 = vadd.f32 0.0, %v4576
        %v4578 = vpop.f32.mrb[0].mxu0
        %4579 = vmatprep.mubr.bf16.mxu0 0
        %4580 = vmatmul.mubr.bf16.gmra.mrb[0].mxu0 %v4528
        %v4581 = vpop.f32.mrb[0].mxu0
        %v4582 = vadd.f32 0.0, %v4581
        %v4583 = vpop.f32.mrb[0].mxu0
        %v4584 = vpop.f32.mrb[0].mxu0
        %v4585 = vadd.f32 0.0, %v4584
        %v4586 = vpop.f32.mrb[0].mxu0
        %4587 = vmatprep.mubr.bf16.mxu0 0
        %4588 = vmatmul.mubr.bf16.gmra.mrb[0].mxu0 %v4531
        %v4589 = vpop.f32.mrb[0].mxu0
        %v4590 = vadd.f32 0.0, %v4589
        %v4591 = vpop.f32.mrb[0].mxu0
        %v4592 = vpop.f32.mrb[0].mxu0
        %v4593 = vadd.f32 0.0, %v4592
        %v4594 = vpop.f32.mrb[0].mxu0
        %4595 = vmatprep.mubr.bf16.mxu0 0
        %4596 = vmatmul.mubr.bf16.gmra.mrb[0].mxu0 %v4534
        %v4597 = vpop.f32.mrb[0].mxu0
        %v4598 = vadd.f32 0.0, %v4597
        %v4599 = vpop.f32.mrb[0].mxu0
        %v4600 = vpop.f32.mrb[0].mxu0
        %v4601 = vadd.f32 0.0, %v4600
        %v4602 = vpop.f32.mrb[0].mxu0
        %4603 = vdwg.mxu0
        %v4604 = vadd.f32 %v4356, %v4574
        %v4605 = vadd.f32 %v4357, %v4577
        %v4606 = vadd.f32 %v4358, %v4582
        %v4607 = vadd.f32 %v4359, %v4585
        %v4608 = vadd.f32 %v4360, %v4590
        %v4609 = vadd.f32 %v4361, %v4593
        %v4610 = vadd.f32 %v4362, %v4598
        %v4611 = vadd.f32 %v4363, %v4601
        %4612 = vst.msk [vmem:[#allocation3] sm:$0xff] %vm414, %v4604
        %4613 = vst.msk [vmem:[#allocation3 + $0x8] sm:$0xff] %vm414, %v4605
        %4614 = vst.msk [vmem:[#allocation3 + $0x10] sm:$0xff] %vm414, %v4606
        %4615 = vst.msk [vmem:[#allocation3 + $0x18] sm:$0xff] %vm414, %v4607
        %4616 = vst.msk [vmem:[#allocation3 + $0x20] sm:$0xff] %vm414, %v4608
        %4617 = vst.msk [vmem:[#allocation3 + $0x28] sm:$0xff] %vm414, %v4609
        %4618 = vst.msk [vmem:[#allocation3 + $0x30] sm:$0xff] %vm414, %v4610
        %4619 = vst.msk [vmem:[#allocation3 + $0x38] sm:$0xff] %vm414, %v4611
        %v4620 = vld [vmem:[#allocation2] sm:$0xf0]
        %v4621 = vld [vmem:[#allocation2 + $0x8] sm:$0xf0]
        %v4622 = vld [vmem:[#allocation2 + $0x10] sm:$0xf0]
        %v4623 = vld [vmem:[#allocation2 + $0x18] sm:$0xf0]
        %v4624 = vld [vmem:[#allocation2 + $0x20] sm:$0xf0]
        %v4625 = vld [vmem:[#allocation2 + $0x28] sm:$0xf0]
        %v4626 = vld [vmem:[#allocation2 + $0x30] sm:$0xf0]
        %v4627 = vld [vmem:[#allocation2 + $0x38] sm:$0xf0]
        %v4628 = vld [vmem:[#allocation13 + $0x8] sm:$0x3]
        %v4629 = vld [vmem:[#allocation3] sm:$0xff]
        %v4630 = vld [vmem:[#allocation3 + $0x8] sm:$0xff]
        %v4631 = vld [vmem:[#allocation3 + $0x10] sm:$0xff]
        %v4632 = vld [vmem:[#allocation3 + $0x18] sm:$0xff]
        %v4633 = vld [vmem:[#allocation3 + $0x20] sm:$0xff]
        %v4634 = vld [vmem:[#allocation3 + $0x28] sm:$0xff]
        %v4635 = vld [vmem:[#allocation3 + $0x30] sm:$0xff]
        %v4636 = vld [vmem:[#allocation3 + $0x38] sm:$0xff]
        %v4645 = vunpack.c.h.b16 %v4620
        %v4646 = vunpack.c.h.b16 %v4621
        %v4647 = vunpack.c.h.b16 %v4622
        %v4648 = vunpack.c.h.b16 %v4623
        %v4649 = vunpack.c.h.b16 %v4624
        %v4650 = vunpack.c.h.b16 %v4625
        %v4651 = vunpack.c.h.b16 %v4626
        %v4652 = vunpack.c.h.b16 %v4627
        %v4653 = vpack.c.b16 %v4646, %v4645
        %v4654 = vpack.c.b16 %v4648, %v4647
        %v4655 = vpack.c.b16 %v4650, %v4649
        %v4656 = vpack.c.b16 %v4652, %v4651
        %v4658 = vsel %vm414, %v4653, 0
        %v4661 = vsel %vm414, %v4654, 0
        %v4664 = vsel %vm414, %v4655, 0
        %v4667 = vsel %vm414, %v4656, 0
        %v4670 = vsel %vm2085, %v4628, 0
        %4672 = vmatprep.subr.bf16.mxu0 0
        %4673 = vmatpush1.bf16.msra.mxu0 %v4670
        %4674 = vmatprep.subr.bf16.mxu0 0
        %4675 = vmatpush1.bf16.msra.mxu0 0
        %4676 = vmatprep.subr.bf16.mxu0 0
        %4677 = vmatpush1.bf16.msra.mxu0 0
        %4678 = vmatprep.subr.bf16.mxu0 0
        %4679 = vmatpush1.bf16.msra.mxu0 0
        %4680 = vmatprep.subr.bf16.mxu0 0
        %4681 = vmatpush1.bf16.msra.mxu0 0
        %4682 = vmatprep.subr.bf16.mxu0 0
        %4683 = vmatpush1.bf16.msra.mxu0 0
        %4684 = vmatprep.subr.bf16.mxu0 0
        %4685 = vmatpush1.bf16.msra.mxu0 0
        %4686 = vmatprep.subr.bf16.mxu0 0
        %4687 = vmatpush1.bf16.msra.mxu0 0
        %4688 = vmatprep.subr.bf16.mxu0 0
        %4689 = vmatpush1.bf16.msra.mxu0 0
        %4690 = vmatprep.subr.bf16.mxu0 0
        %4691 = vmatpush1.bf16.msra.mxu0 0
        %4692 = vmatprep.subr.bf16.mxu0 0
        %4693 = vmatpush1.bf16.msra.mxu0 0
        %4694 = vmatprep.subr.bf16.mxu0 0
        %4695 = vmatpush1.bf16.msra.mxu0 0
        %4696 = vmatprep.subr.bf16.mxu0 0
        %4697 = vmatpush1.bf16.msra.mxu0 0
        %4698 = vmatprep.subr.bf16.mxu0 0
        %4699 = vmatpush1.bf16.msra.mxu0 0
        %4700 = vmatprep.subr.bf16.mxu0 0
        %4701 = vmatpush1.bf16.msra.mxu0 0
        %4702 = vmatprep.subr.bf16.mxu0 0
        %4703 = vmatpush1.bf16.msra.mxu0 0
        %4704 = vmatprep.mubr.bf16.mxu0 0
        %4705 = vmatmul.mubr.bf16.gmra.mrb[0].mxu0 %v4658
        %v4706 = vpop.f32.mrb[0].mxu0
        %v4707 = vadd.f32 0.0, %v4706
        %v4708 = vpop.f32.mrb[0].mxu0
        %v4709 = vpop.f32.mrb[0].mxu0
        %v4710 = vadd.f32 0.0, %v4709
        %v4711 = vpop.f32.mrb[0].mxu0
        %4712 = vmatprep.mubr.bf16.mxu0 0
        %4713 = vmatmul.mubr.bf16.gmra.mrb[0].mxu0 %v4661
        %v4714 = vpop.f32.mrb[0].mxu0
        %v4715 = vadd.f32 0.0, %v4714
        %v4716 = vpop.f32.mrb[0].mxu0
        %v4717 = vpop.f32.mrb[0].mxu0
        %v4718 = vadd.f32 0.0, %v4717
        %v4719 = vpop.f32.mrb[0].mxu0
        %4720 = vmatprep.mubr.bf16.mxu0 0
        %4721 = vmatmul.mubr.bf16.gmra.mrb[0].mxu0 %v4664
        %v4722 = vpop.f32.mrb[0].mxu0
        %v4723 = vadd.f32 0.0, %v4722
        %v4724 = vpop.f32.mrb[0].mxu0
        %v4725 = vpop.f32.mrb[0].mxu0
        %v4726 = vadd.f32 0.0, %v4725
        %v4727 = vpop.f32.mrb[0].mxu0
        %4728 = vmatprep.mubr.bf16.mxu0 0
        %4729 = vmatmul.mubr.bf16.gmra.mrb[0].mxu0 %v4667
        %v4730 = vpop.f32.mrb[0].mxu0
        %v4731 = vadd.f32 0.0, %v4730
        %v4732 = vpop.f32.mrb[0].mxu0
        %v4733 = vpop.f32.mrb[0].mxu0
        %v4734 = vadd.f32 0.0, %v4733
        %v4735 = vpop.f32.mrb[0].mxu0
        %4736 = vdwg.mxu0
        %v4737 = vadd.f32 %v4629, %v4707
        %v4738 = vadd.f32 %v4630, %v4710
        %v4739 = vadd.f32 %v4631, %v4715
        %v4740 = vadd.f32 %v4632, %v4718
        %v4741 = vadd.f32 %v4633, %v4723
        %v4742 = vadd.f32 %v4634, %v4726
        %v4743 = vadd.f32 %v4635, %v4731
        %v4744 = vadd.f32 %v4636, %v4734
        %4745 = vst.msk [vmem:[#allocation3] sm:$0xff] %vm414, %v4737
        %4746 = vst.msk [vmem:[#allocation3 + $0x8] sm:$0xff] %vm414, %v4738
        %4747 = vst.msk [vmem:[#allocation3 + $0x10] sm:$0xff] %vm414, %v4739
        %4748 = vst.msk [vmem:[#allocation3 + $0x18] sm:$0xff] %vm414, %v4740
        %4749 = vst.msk [vmem:[#allocation3 + $0x20] sm:$0xff] %vm414, %v4741
        %4750 = vst.msk [vmem:[#allocation3 + $0x28] sm:$0xff] %vm414, %v4742
        %4751 = vst.msk [vmem:[#allocation3 + $0x30] sm:$0xff] %vm414, %v4743
        %4752 = vst.msk [vmem:[#allocation3 + $0x38] sm:$0xff] %vm414, %v4744
        %v4753 = vld [vmem:[%s418] sm:$0xf0]
        %v4754 = vld [vmem:[%s418 + $0x8] sm:$0xf0]
        %v4755 = vld [vmem:[%s418 + $0x10] sm:$0xf0]
        %v4756 = vld [vmem:[%s418 + $0x18] sm:$0xf0]
        %v4757 = vld [vmem:[%s418 + $0x20] sm:$0xf0]
        %v4758 = vld [vmem:[%s418 + $0x28] sm:$0xf0]
        %v4759 = vld [vmem:[%s418 + $0x30] sm:$0xf0]
        %v4760 = vld [vmem:[%s418 + $0x38] sm:$0xf0]
        %v4761 = vld [vmem:[#allocation13 + $0x8] sm:$0xc]
        %v4762 = vld [vmem:[#allocation3] sm:$0xff]
        %v4763 = vld [vmem:[#allocation3 + $0x8] sm:$0xff]
        %v4764 = vld [vmem:[#allocation3 + $0x10] sm:$0xff]
        %v4765 = vld [vmem:[#allocation3 + $0x18] sm:$0xff]
        %v4766 = vld [vmem:[#allocation3 + $0x20] sm:$0xff]
        %v4767 = vld [vmem:[#allocation3 + $0x28] sm:$0xff]
        %v4768 = vld [vmem:[#allocation3 + $0x30] sm:$0xff]
        %v4769 = vld [vmem:[#allocation3 + $0x38] sm:$0xff]
        %v4778 = vunpack.c.h.b16 %v4753
        %v4779 = vunpack.c.h.b16 %v4754
        %v4780 = vunpack.c.h.b16 %v4755
        %v4781 = vunpack.c.h.b16 %v4756
        %v4782 = vunpack.c.h.b16 %v4757
        %v4783 = vunpack.c.h.b16 %v4758
        %v4784 = vunpack.c.h.b16 %v4759
        %v4785 = vunpack.c.h.b16 %v4760
        %v4786 = vpack.c.b16 %v4779, %v4778
        %v4787 = vpack.c.b16 %v4781, %v4780
        %v4788 = vpack.c.b16 %v4783, %v4782
        %v4789 = vpack.c.b16 %v4785, %v4784
        %v4791 = vunpack.c.l.b16 %v4761
        %v4792 = vpack.c.b16 %v4791, %v4791
        %v4793 = vrot.slane %v4792, 2
        %v4795 = vsel %vm414, %v4786, 0
        %v4798 = vsel %vm414, %v4787, 0
        %v4801 = vsel %vm414, %v4788, 0
        %v4804 = vsel %vm414, %v4789, 0
        %v4807 = vsel %vm2085, %v4793, 0
        %4809 = vmatprep.subr.bf16.mxu0 0
        %4810 = vmatpush1.bf16.msra.mxu0 %v4807
        %4811 = vmatprep.subr.bf16.mxu0 0
        %4812 = vmatpush1.bf16.msra.mxu0 0
        %4813 = vmatprep.subr.bf16.mxu0 0
        %4814 = vmatpush1.bf16.msra.mxu0 0
        %4815 = vmatprep.subr.bf16.mxu0 0
        %4816 = vmatpush1.bf16.msra.mxu0 0
        %4817 = vmatprep.subr.bf16.mxu0 0
        %4818 = vmatpush1.bf16.msra.mxu0 0
        %4819 = vmatprep.subr.bf16.mxu0 0
        %4820 = vmatpush1.bf16.msra.mxu0 0
        %4821 = vmatprep.subr.bf16.mxu0 0
        %4822 = vmatpush1.bf16.msra.mxu0 0
        %4823 = vmatprep.subr.bf16.mxu0 0
        %4824 = vmatpush1.bf16.msra.mxu0 0
        %4825 = vmatprep.subr.bf16.mxu0 0
        %4826 = vmatpush1.bf16.msra.mxu0 0
        %4827 = vmatprep.subr.bf16.mxu0 0
        %4828 = vmatpush1.bf16.msra.mxu0 0
        %4829 = vmatprep.subr.bf16.mxu0 0
        %4830 = vmatpush1.bf16.msra.mxu0 0
        %4831 = vmatprep.subr.bf16.mxu0 0
        %4832 = vmatpush1.bf16.msra.mxu0 0
        %4833 = vmatprep.subr.bf16.mxu0 0
        %4834 = vmatpush1.bf16.msra.mxu0 0
        %4835 = vmatprep.subr.bf16.mxu0 0
        %4836 = vmatpush1.bf16.msra.mxu0 0
        %4837 = vmatprep.subr.bf16.mxu0 0
        %4838 = vmatpush1.bf16.msra.mxu0 0
        %4839 = vmatprep.subr.bf16.mxu0 0
        %4840 = vmatpush1.bf16.msra.mxu0 0
        %4841 = vmatprep.mubr.bf16.mxu0 0
        %4842 = vmatmul.mubr.bf16.gmra.mrb[0].mxu0 %v4795
        %v4843 = vpop.f32.mrb[0].mxu0
        %v4844 = vadd.f32 0.0, %v4843
        %v4845 = vpop.f32.mrb[0].mxu0
        %v4846 = vpop.f32.mrb[0].mxu0
        %v4847 = vadd.f32 0.0, %v4846
        %v4848 = vpop.f32.mrb[0].mxu0
        %4849 = vmatprep.mubr.bf16.mxu0 0
        %4850 = vmatmul.mubr.bf16.gmra.mrb[0].mxu0 %v4798
        %v4851 = vpop.f32.mrb[0].mxu0
        %v4852 = vadd.f32 0.0, %v4851
        %v4853 = vpop.f32.mrb[0].mxu0
        %v4854 = vpop.f32.mrb[0].mxu0
        %v4855 = vadd.f32 0.0, %v4854
        %v4856 = vpop.f32.mrb[0].mxu0
        %4857 = vmatprep.mubr.bf16.mxu0 0
        %4858 = vmatmul.mubr.bf16.gmra.mrb[0].mxu0 %v4801
        %v4859 = vpop.f32.mrb[0].mxu0
        %v4860 = vadd.f32 0.0, %v4859
        %v4861 = vpop.f32.mrb[0].mxu0
        %v4862 = vpop.f32.mrb[0].mxu0
        %v4863 = vadd.f32 0.0, %v4862
        %v4864 = vpop.f32.mrb[0].mxu0
        %4865 = vmatprep.mubr.bf16.mxu0 0
        %4866 = vmatmul.mubr.bf16.gmra.mrb[0].mxu0 %v4804
        %v4867 = vpop.f32.mrb[0].mxu0
        %v4868 = vadd.f32 0.0, %v4867
        %v4869 = vpop.f32.mrb[0].mxu0
        %v4870 = vpop.f32.mrb[0].mxu0
        %v4871 = vadd.f32 0.0, %v4870
        %v4872 = vpop.f32.mrb[0].mxu0
        %4873 = vdwg.mxu0
        %v4874 = vadd.f32 %v4762, %v4844
        %v4875 = vadd.f32 %v4763, %v4847
        %v4876 = vadd.f32 %v4764, %v4852
        %v4877 = vadd.f32 %v4765, %v4855
        %v4878 = vadd.f32 %v4766, %v4860
        %v4879 = vadd.f32 %v4767, %v4863
        %v4880 = vadd.f32 %v4768, %v4868
        %v4881 = vadd.f32 %v4769, %v4871
        %4882 = vst.msk [vmem:[#allocation3] sm:$0xff] %vm414, %v4874
        %4883 = vst.msk [vmem:[#allocation3 + $0x8] sm:$0xff] %vm414, %v4875
        %4884 = vst.msk [vmem:[#allocation3 + $0x10] sm:$0xff] %vm414, %v4876
        %4885 = vst.msk [vmem:[#allocation3 + $0x18] sm:$0xff] %vm414, %v4877
        %4886 = vst.msk [vmem:[#allocation3 + $0x20] sm:$0xff] %vm414, %v4878
        %4887 = vst.msk [vmem:[#allocation3 + $0x28] sm:$0xff] %vm414, %v4879
        %4888 = vst.msk [vmem:[#allocation3 + $0x30] sm:$0xff] %vm414, %v4880
        %4889 = vst.msk [vmem:[#allocation3 + $0x38] sm:$0xff] %vm414, %v4881
        %v4890 = vld [vmem:[%s3788] sm:$0xf8]
        %v4891 = vld [vmem:[%s3788 + $0x8] sm:$0xf8]
        %v4892 = vld [vmem:[%s3788 + $0x10] sm:$0xf8]
        %v4893 = vld [vmem:[%s3788 + $0x18] sm:$0xf8]
        %v4894 = vld [vmem:[%s3788 + $0x20] sm:$0xf8]
        %v4895 = vld [vmem:[%s3788 + $0x28] sm:$0xf8]
        %v4896 = vld [vmem:[%s3788 + $0x30] sm:$0xf8]
        %v4897 = vld [vmem:[%s3788 + $0x38] sm:$0xf8]
        %v4898 = vld [vmem:[#allocation13 + $0xc] sm:$0x3]
        %v4899 = vld [vmem:[#allocation3] sm:$0xff]
        %v4900 = vld [vmem:[#allocation3 + $0x8] sm:$0xff]
        %v4901 = vld [vmem:[#allocation3 + $0x10] sm:$0xff]
        %v4902 = vld [vmem:[#allocation3 + $0x18] sm:$0xff]
        %v4903 = vld [vmem:[#allocation3 + $0x20] sm:$0xff]
        %v4904 = vld [vmem:[#allocation3 + $0x28] sm:$0xff]
        %v4905 = vld [vmem:[#allocation3 + $0x30] sm:$0xff]
        %v4906 = vld [vmem:[#allocation3 + $0x38] sm:$0xff]
        %v4915 = vunpack.c.l.b16 %v4890
        %v4916 = vunpack.c.h.b16 %v4890
        %v4917 = vunpack.c.l.b16 %v4891
        %v4918 = vunpack.c.h.b16 %v4891
        %v4919 = vunpack.c.l.b16 %v4892
        %v4920 = vunpack.c.h.b16 %v4892
        %v4921 = vunpack.c.l.b16 %v4893
        %v4922 = vunpack.c.h.b16 %v4893
        %v4923 = vunpack.c.l.b16 %v4894
        %v4924 = vunpack.c.h.b16 %v4894
        %v4925 = vunpack.c.l.b16 %v4895
        %v4926 = vunpack.c.h.b16 %v4895
        %v4927 = vunpack.c.l.b16 %v4896
        %v4928 = vunpack.c.h.b16 %v4896
        %v4929 = vunpack.c.l.b16 %v4897
        %v4930 = vunpack.c.h.b16 %v4897
        %v4931 = vpack.c.b16 %v4915, %v4915
        %v4932 = vpack.c.b16 %v4916, %v4916
        %v4933 = vpack.c.b16 %v4917, %v4917
        %v4934 = vpack.c.b16 %v4918, %v4918
        %v4935 = vpack.c.b16 %v4919, %v4919
        %v4936 = vpack.c.b16 %v4920, %v4920
        %v4937 = vpack.c.b16 %v4921, %v4921
        %v4938 = vpack.c.b16 %v4922, %v4922
        %v4939 = vpack.c.b16 %v4923, %v4923
        %v4940 = vpack.c.b16 %v4924, %v4924
        %v4941 = vpack.c.b16 %v4925, %v4925
        %v4942 = vpack.c.b16 %v4926, %v4926
        %v4943 = vpack.c.b16 %v4927, %v4927
        %v4944 = vpack.c.b16 %v4928, %v4928
        %v4945 = vpack.c.b16 %v4929, %v4929
        %v4946 = vpack.c.b16 %v4930, %v4930
        %v4948 = vshrl.u32 %v4931, 16
        %v4950 = vrot.slane %v4948, 7
        %v4951 = vrot.slane %v4950, 4
        %v4953 = vshrl.u32 %v4932, 16
        %v4955 = vrot.slane %v4953, 7
        %v4956 = vshll.u32 %v4932, 16
        %v4958 = vor.u32 %v4955, %v4956
        %v4959 = vsel %vm3864, %v4951, %v4958
        %v4961 = vshrl.u32 %v4933, 16
        %v4963 = vrot.slane %v4961, 7
        %v4964 = vrot.slane %v4963, 4
        %v4966 = vshrl.u32 %v4934, 16
        %v4968 = vrot.slane %v4966, 7
        %v4969 = vshll.u32 %v4934, 16
        %v4971 = vor.u32 %v4968, %v4969
        %v4972 = vsel %vm3864, %v4964, %v4971
        %v4974 = vshrl.u32 %v4935, 16
        %v4976 = vrot.slane %v4974, 7
        %v4977 = vrot.slane %v4976, 4
        %v4979 = vshrl.u32 %v4936, 16
        %v4981 = vrot.slane %v4979, 7
        %v4982 = vshll.u32 %v4936, 16
        %v4984 = vor.u32 %v4981, %v4982
        %v4985 = vsel %vm3864, %v4977, %v4984
        %v4987 = vshrl.u32 %v4937, 16
        %v4989 = vrot.slane %v4987, 7
        %v4990 = vrot.slane %v4989, 4
        %v4992 = vshrl.u32 %v4938, 16
        %v4994 = vrot.slane %v4992, 7
        %v4995 = vshll.u32 %v4938, 16
        %v4997 = vor.u32 %v4994, %v4995
        %v4998 = vsel %vm3864, %v4990, %v4997
        %v5000 = vshrl.u32 %v4939, 16
        %v5002 = vrot.slane %v5000, 7
        %v5003 = vrot.slane %v5002, 4
        %v5005 = vshrl.u32 %v4940, 16
        %v5007 = vrot.slane %v5005, 7
        %v5008 = vshll.u32 %v4940, 16
        %v5010 = vor.u32 %v5007, %v5008
        %v5011 = vsel %vm3864, %v5003, %v5010
        %v5013 = vshrl.u32 %v4941, 16
        %v5015 = vrot.slane %v5013, 7
        %v5016 = vrot.slane %v5015, 4
        %v5018 = vshrl.u32 %v4942, 16
        %v5020 = vrot.slane %v5018, 7
        %v5021 = vshll.u32 %v4942, 16
        %v5023 = vor.u32 %v5020, %v5021
        %v5024 = vsel %vm3864, %v5016, %v5023
        %v5026 = vshrl.u32 %v4943, 16
        %v5028 = vrot.slane %v5026, 7
        %v5029 = vrot.slane %v5028, 4
        %v5031 = vshrl.u32 %v4944, 16
        %v5033 = vrot.slane %v5031, 7
        %v5034 = vshll.u32 %v4944, 16
        %v5036 = vor.u32 %v5033, %v5034
        %v5037 = vsel %vm3864, %v5029, %v5036
        %v5039 = vshrl.u32 %v4945, 16
        %v5041 = vrot.slane %v5039, 7
        %v5042 = vrot.slane %v5041, 4
        %v5044 = vshrl.u32 %v4946, 16
        %v5046 = vrot.slane %v5044, 7
        %v5047 = vshll.u32 %v4946, 16
        %v5049 = vor.u32 %v5046, %v5047
        %v5050 = vsel %vm3864, %v5042, %v5049
        %v5051 = vunpack.c.l.b16 %v4959
        %v5052 = vunpack.c.l.b16 %v4972
        %v5053 = vunpack.c.l.b16 %v4985
        %v5054 = vunpack.c.l.b16 %v4998
        %v5055 = vunpack.c.l.b16 %v5011
        %v5056 = vunpack.c.l.b16 %v5024
        %v5057 = vunpack.c.l.b16 %v5037
        %v5058 = vunpack.c.l.b16 %v5050
        %v5059 = vpack.c.b16 %v5052, %v5051
        %v5060 = vpack.c.b16 %v5054, %v5053
        %v5061 = vpack.c.b16 %v5056, %v5055
        %v5062 = vpack.c.b16 %v5058, %v5057
        %v5064 = vsel %vm414, %v5059, 0
        %v5067 = vsel %vm414, %v5060, 0
        %v5070 = vsel %vm414, %v5061, 0
        %v5073 = vsel %vm414, %v5062, 0
        %v5076 = vsel %vm2085, %v4898, 0
        %5078 = vmatprep.subr.bf16.mxu0 0
        %5079 = vmatpush1.bf16.msra.mxu0 %v5076
        %5080 = vmatprep.subr.bf16.mxu0 0
        %5081 = vmatpush1.bf16.msra.mxu0 0
        %5082 = vmatprep.subr.bf16.mxu0 0
        %5083 = vmatpush1.bf16.msra.mxu0 0
        %5084 = vmatprep.subr.bf16.mxu0 0
        %5085 = vmatpush1.bf16.msra.mxu0 0
        %5086 = vmatprep.subr.bf16.mxu0 0
        %5087 = vmatpush1.bf16.msra.mxu0 0
        %5088 = vmatprep.subr.bf16.mxu0 0
        %5089 = vmatpush1.bf16.msra.mxu0 0
        %5090 = vmatprep.subr.bf16.mxu0 0
        %5091 = vmatpush1.bf16.msra.mxu0 0
        %5092 = vmatprep.subr.bf16.mxu0 0
        %5093 = vmatpush1.bf16.msra.mxu0 0
        %5094 = vmatprep.subr.bf16.mxu0 0
        %5095 = vmatpush1.bf16.msra.mxu0 0
        %5096 = vmatprep.subr.bf16.mxu0 0
        %5097 = vmatpush1.bf16.msra.mxu0 0
        %5098 = vmatprep.subr.bf16.mxu0 0
        %5099 = vmatpush1.bf16.msra.mxu0 0
        %5100 = vmatprep.subr.bf16.mxu0 0
        %5101 = vmatpush1.bf16.msra.mxu0 0
        %5102 = vmatprep.subr.bf16.mxu0 0
        %5103 = vmatpush1.bf16.msra.mxu0 0
        %5104 = vmatprep.subr.bf16.mxu0 0
        %5105 = vmatpush1.bf16.msra.mxu0 0
        %5106 = vmatprep.subr.bf16.mxu0 0
        %5107 = vmatpush1.bf16.msra.mxu0 0
        %5108 = vmatprep.subr.bf16.mxu0 0
        %5109 = vmatpush1.bf16.msra.mxu0 0
        %5110 = vmatprep.mubr.bf16.mxu0 0
        %5111 = vmatmul.mubr.bf16.gmra.mrb[0].mxu0 %v5064
        %v5112 = vpop.f32.mrb[0].mxu0
        %v5113 = vadd.f32 0.0, %v5112
        %v5114 = vpop.f32.mrb[0].mxu0
        %v5115 = vpop.f32.mrb[0].mxu0
        %v5116 = vadd.f32 0.0, %v5115
        %v5117 = vpop.f32.mrb[0].mxu0
        %5118 = vmatprep.mubr.bf16.mxu0 0
        %5119 = vmatmul.mubr.bf16.gmra.mrb[0].mxu0 %v5067
        %v5120 = vpop.f32.mrb[0].mxu0
        %v5121 = vadd.f32 0.0, %v5120
        %v5122 = vpop.f32.mrb[0].mxu0
        %v5123 = vpop.f32.mrb[0].mxu0
        %v5124 = vadd.f32 0.0, %v5123
        %v5125 = vpop.f32.mrb[0].mxu0
        %5126 = vmatprep.mubr.bf16.mxu0 0
        %5127 = vmatmul.mubr.bf16.gmra.mrb[0].mxu0 %v5070
        %v5128 = vpop.f32.mrb[0].mxu0
        %v5129 = vadd.f32 0.0, %v5128
        %v5130 = vpop.f32.mrb[0].mxu0
        %v5131 = vpop.f32.mrb[0].mxu0
        %v5132 = vadd.f32 0.0, %v5131
        %v5133 = vpop.f32.mrb[0].mxu0
        %5134 = vmatprep.mubr.bf16.mxu0 0
        %5135 = vmatmul.mubr.bf16.gmra.mrb[0].mxu0 %v5073
        %v5136 = vpop.f32.mrb[0].mxu0
        %v5137 = vadd.f32 0.0, %v5136
        %v5138 = vpop.f32.mrb[0].mxu0
        %v5139 = vpop.f32.mrb[0].mxu0
        %v5140 = vadd.f32 0.0, %v5139
        %v5141 = vpop.f32.mrb[0].mxu0
        %5142 = vdwg.mxu0
        %v5143 = vadd.f32 %v4899, %v5113
        %v5144 = vadd.f32 %v4900, %v5116
        %v5145 = vadd.f32 %v4901, %v5121
        %v5146 = vadd.f32 %v4902, %v5124
        %v5147 = vadd.f32 %v4903, %v5129
        %v5148 = vadd.f32 %v4904, %v5132
        %v5149 = vadd.f32 %v4905, %v5137
        %v5150 = vadd.f32 %v4906, %v5140
        %5151 = vst.msk [vmem:[#allocation3] sm:$0xff] %vm414, %v5143
        %5152 = vst.msk [vmem:[#allocation3 + $0x8] sm:$0xff] %vm414, %v5144
        %5153 = vst.msk [vmem:[#allocation3 + $0x10] sm:$0xff] %vm414, %v5145
        %5154 = vst.msk [vmem:[#allocation3 + $0x18] sm:$0xff] %vm414, %v5146
        %5155 = vst.msk [vmem:[#allocation3 + $0x20] sm:$0xff] %vm414, %v5147
        %5156 = vst.msk [vmem:[#allocation3 + $0x28] sm:$0xff] %vm414, %v5148
        %5157 = vst.msk [vmem:[#allocation3 + $0x30] sm:$0xff] %vm414, %v5149
        %5158 = vst.msk [vmem:[#allocation3 + $0x38] sm:$0xff] %vm414, %v5150
        %v5159 = vld [vmem:[%s3487] sm:$0xf0]
        %v5160 = vld [vmem:[%s3487 + $0x8] sm:$0xf0]
        %v5161 = vld [vmem:[%s3487 + $0x10] sm:$0xf0]
        %v5162 = vld [vmem:[%s3487 + $0x18] sm:$0xf0]
        %v5163 = vld [vmem:[%s3487 + $0x20] sm:$0xf0]
        %v5164 = vld [vmem:[%s3487 + $0x28] sm:$0xf0]
        %v5165 = vld [vmem:[%s3487 + $0x30] sm:$0xf0]
        %v5166 = vld [vmem:[%s3487 + $0x38] sm:$0xf0]
        %v5167 = vld [vmem:[#allocation13 + $0xc] sm:$0xc]
        %v5168 = vld [vmem:[#allocation3] sm:$0xff]
        %v5169 = vld [vmem:[#allocation3 + $0x8] sm:$0xff]
        %v5170 = vld [vmem:[#allocation3 + $0x10] sm:$0xff]
        %v5171 = vld [vmem:[#allocation3 + $0x18] sm:$0xff]
        %v5172 = vld [vmem:[#allocation3 + $0x20] sm:$0xff]
        %v5173 = vld [vmem:[#allocation3 + $0x28] sm:$0xff]
        %v5174 = vld [vmem:[#allocation3 + $0x30] sm:$0xff]
        %v5175 = vld [vmem:[#allocation3 + $0x38] sm:$0xff]
        %v5184 = vunpack.c.h.b16 %v5159
        %v5185 = vunpack.c.h.b16 %v5160
        %v5186 = vunpack.c.h.b16 %v5161
        %v5187 = vunpack.c.h.b16 %v5162
        %v5188 = vunpack.c.h.b16 %v5163
        %v5189 = vunpack.c.h.b16 %v5164
        %v5190 = vunpack.c.h.b16 %v5165
        %v5191 = vunpack.c.h.b16 %v5166
        %v5192 = vpack.c.b16 %v5185, %v5184
        %v5193 = vpack.c.b16 %v5187, %v5186
        %v5194 = vpack.c.b16 %v5189, %v5188
        %v5195 = vpack.c.b16 %v5191, %v5190
        %v5197 = vunpack.c.l.b16 %v5167
        %v5198 = vpack.c.b16 %v5197, %v5197
        %v5199 = vrot.slane %v5198, 2
        %v5201 = vsel %vm414, %v5192, 0
        %v5204 = vsel %vm414, %v5193, 0
        %v5207 = vsel %vm414, %v5194, 0
        %v5210 = vsel %vm414, %v5195, 0
        %v5213 = vsel %vm2085, %v5199, 0
        %5215 = vmatprep.subr.bf16.mxu0 0
        %5216 = vmatpush1.bf16.msra.mxu0 %v5213
        %5217 = vmatprep.subr.bf16.mxu0 0
        %5218 = vmatpush1.bf16.msra.mxu0 0
        %5219 = vmatprep.subr.bf16.mxu0 0
        %5220 = vmatpush1.bf16.msra.mxu0 0
        %5221 = vmatprep.subr.bf16.mxu0 0
        %5222 = vmatpush1.bf16.msra.mxu0 0
        %5223 = vmatprep.subr.bf16.mxu0 0
        %5224 = vmatpush1.bf16.msra.mxu0 0
        %5225 = vmatprep.subr.bf16.mxu0 0
        %5226 = vmatpush1.bf16.msra.mxu0 0
        %5227 = vmatprep.subr.bf16.mxu0 0
        %5228 = vmatpush1.bf16.msra.mxu0 0
        %5229 = vmatprep.subr.bf16.mxu0 0
        %5230 = vmatpush1.bf16.msra.mxu0 0
        %5231 = vmatprep.subr.bf16.mxu0 0
        %5232 = vmatpush1.bf16.msra.mxu0 0
        %5233 = vmatprep.subr.bf16.mxu0 0
        %5234 = vmatpush1.bf16.msra.mxu0 0
        %5235 = vmatprep.subr.bf16.mxu0 0
        %5236 = vmatpush1.bf16.msra.mxu0 0
        %5237 = vmatprep.subr.bf16.mxu0 0
        %5238 = vmatpush1.bf16.msra.mxu0 0
        %5239 = vmatprep.subr.bf16.mxu0 0
        %5240 = vmatpush1.bf16.msra.mxu0 0
        %5241 = vmatprep.subr.bf16.mxu0 0
        %5242 = vmatpush1.bf16.msra.mxu0 0
        %5243 = vmatprep.subr.bf16.mxu0 0
        %5244 = vmatpush1.bf16.msra.mxu0 0
        %5245 = vmatprep.subr.bf16.mxu0 0
        %5246 = vmatpush1.bf16.msra.mxu0 0
        %5247 = vmatprep.mubr.bf16.mxu0 0
        %5248 = vmatmul.mubr.bf16.gmra.mrb[0].mxu0 %v5201
        %v5249 = vpop.f32.mrb[0].mxu0
        %v5250 = vadd.f32 0.0, %v5249
        %v5251 = vpop.f32.mrb[0].mxu0
        %v5252 = vpop.f32.mrb[0].mxu0
        %v5253 = vadd.f32 0.0, %v5252
        %v5254 = vpop.f32.mrb[0].mxu0
        %5255 = vmatprep.mubr.bf16.mxu0 0
        %5256 = vmatmul.mubr.bf16.gmra.mrb[0].mxu0 %v5204
        %v5257 = vpop.f32.mrb[0].mxu0
        %v5258 = vadd.f32 0.0, %v5257
        %v5259 = vpop.f32.mrb[0].mxu0
        %v5260 = vpop.f32.mrb[0].mxu0
        %v5261 = vadd.f32 0.0, %v5260
        %v5262 = vpop.f32.mrb[0].mxu0
        %5263 = vmatprep.mubr.bf16.mxu0 0
        %5264 = vmatmul.mubr.bf16.gmra.mrb[0].mxu0 %v5207
        %v5265 = vpop.f32.mrb[0].mxu0
        %v5266 = vadd.f32 0.0, %v5265
        %v5267 = vpop.f32.mrb[0].mxu0
        %v5268 = vpop.f32.mrb[0].mxu0
        %v5269 = vadd.f32 0.0, %v5268
        %v5270 = vpop.f32.mrb[0].mxu0
        %5271 = vmatprep.mubr.bf16.mxu0 0
        %5272 = vmatmul.mubr.bf16.gmra.mrb[0].mxu0 %v5210
        %v5273 = vpop.f32.mrb[0].mxu0
        %v5274 = vadd.f32 0.0, %v5273
        %v5275 = vpop.f32.mrb[0].mxu0
        %v5276 = vpop.f32.mrb[0].mxu0
        %v5277 = vadd.f32 0.0, %v5276
        %v5278 = vpop.f32.mrb[0].mxu0
        %5279 = vdwg.mxu0
        %v5280 = vadd.f32 %v5168, %v5250
        %v5281 = vadd.f32 %v5169, %v5253
        %v5282 = vadd.f32 %v5170, %v5258
        %v5283 = vadd.f32 %v5171, %v5261
        %v5284 = vadd.f32 %v5172, %v5266
        %v5285 = vadd.f32 %v5173, %v5269
        %v5286 = vadd.f32 %v5174, %v5274
        %v5287 = vadd.f32 %v5175, %v5277
        %5288 = vst.msk [vmem:[#allocation3] sm:$0xff] %vm414, %v5280
        %5289 = vst.msk [vmem:[#allocation3 + $0x8] sm:$0xff] %vm414, %v5281
        %5290 = vst.msk [vmem:[#allocation3 + $0x10] sm:$0xff] %vm414, %v5282
        %5291 = vst.msk [vmem:[#allocation3 + $0x18] sm:$0xff] %vm414, %v5283
        %5292 = vst.msk [vmem:[#allocation3 + $0x20] sm:$0xff] %vm414, %v5284
        %5293 = vst.msk [vmem:[#allocation3 + $0x28] sm:$0xff] %vm414, %v5285
        %5294 = vst.msk [vmem:[#allocation3 + $0x30] sm:$0xff] %vm414, %v5286
        %5295 = vst.msk [vmem:[#allocation3 + $0x38] sm:$0xff] %vm414, %v5287
        %v5296 = vld [vmem:[%s3788] sm:$0xf0]
        %v5297 = vld [vmem:[%s3788 + $0x8] sm:$0xf0]
        %v5298 = vld [vmem:[%s3788 + $0x10] sm:$0xf0]
        %v5299 = vld [vmem:[%s3788 + $0x18] sm:$0xf0]
        %v5300 = vld [vmem:[%s3788 + $0x20] sm:$0xf0]
        %v5301 = vld [vmem:[%s3788 + $0x28] sm:$0xf0]
        %v5302 = vld [vmem:[%s3788 + $0x30] sm:$0xf0]
        %v5303 = vld [vmem:[%s3788 + $0x38] sm:$0xf0]
        %v5304 = vld [vmem:[#allocation13 + $0x10] sm:$0x3]
        %v5305 = vld [vmem:[#allocation3] sm:$0xff]
        %v5306 = vld [vmem:[#allocation3 + $0x8] sm:$0xff]
        %v5307 = vld [vmem:[#allocation3 + $0x10] sm:$0xff]
        %v5308 = vld [vmem:[#allocation3 + $0x18] sm:$0xff]
        %v5309 = vld [vmem:[#allocation3 + $0x20] sm:$0xff]
        %v5310 = vld [vmem:[#allocation3 + $0x28] sm:$0xff]
        %v5311 = vld [vmem:[#allocation3 + $0x30] sm:$0xff]
        %v5312 = vld [vmem:[#allocation3 + $0x38] sm:$0xff]
        %v5321 = vunpack.c.h.b16 %v5296
        %v5322 = vunpack.c.h.b16 %v5297
        %v5323 = vunpack.c.h.b16 %v5298
        %v5324 = vunpack.c.h.b16 %v5299
        %v5325 = vunpack.c.h.b16 %v5300
        %v5326 = vunpack.c.h.b16 %v5301
        %v5327 = vunpack.c.h.b16 %v5302
        %v5328 = vunpack.c.h.b16 %v5303
        %v5329 = vpack.c.b16 %v5322, %v5321
        %v5330 = vpack.c.b16 %v5324, %v5323
        %v5331 = vpack.c.b16 %v5326, %v5325
        %v5332 = vpack.c.b16 %v5328, %v5327
        %v5334 = vsel %vm414, %v5329, 0
        %v5337 = vsel %vm414, %v5330, 0
        %v5340 = vsel %vm414, %v5331, 0
        %v5343 = vsel %vm414, %v5332, 0
        %v5346 = vsel %vm2085, %v5304, 0
        %5348 = vmatprep.subr.bf16.mxu0 0
        %5349 = vmatpush1.bf16.msra.mxu0 %v5346
        %5350 = vmatprep.subr.bf16.mxu0 0
        %5351 = vmatpush1.bf16.msra.mxu0 0
        %5352 = vmatprep.subr.bf16.mxu0 0
        %5353 = vmatpush1.bf16.msra.mxu0 0
        %5354 = vmatprep.subr.bf16.mxu0 0
        %5355 = vmatpush1.bf16.msra.mxu0 0
        %5356 = vmatprep.subr.bf16.mxu0 0
        %5357 = vmatpush1.bf16.msra.mxu0 0
        %5358 = vmatprep.subr.bf16.mxu0 0
        %5359 = vmatpush1.bf16.msra.mxu0 0
        %5360 = vmatprep.subr.bf16.mxu0 0
        %5361 = vmatpush1.bf16.msra.mxu0 0
        %5362 = vmatprep.subr.bf16.mxu0 0
        %5363 = vmatpush1.bf16.msra.mxu0 0
        %5364 = vmatprep.subr.bf16.mxu0 0
        %5365 = vmatpush1.bf16.msra.mxu0 0
        %5366 = vmatprep.subr.bf16.mxu0 0
        %5367 = vmatpush1.bf16.msra.mxu0 0
        %5368 = vmatprep.subr.bf16.mxu0 0
        %5369 = vmatpush1.bf16.msra.mxu0 0
        %5370 = vmatprep.subr.bf16.mxu0 0
        %5371 = vmatpush1.bf16.msra.mxu0 0
        %5372 = vmatprep.subr.bf16.mxu0 0
        %5373 = vmatpush1.bf16.msra.mxu0 0
        %5374 = vmatprep.subr.bf16.mxu0 0
        %5375 = vmatpush1.bf16.msra.mxu0 0
        %5376 = vmatprep.subr.bf16.mxu0 0
        %5377 = vmatpush1.bf16.msra.mxu0 0
        %5378 = vmatprep.subr.bf16.mxu0 0
        %5379 = vmatpush1.bf16.msra.mxu0 0
        %5380 = vmatprep.mubr.bf16.mxu0 0
        %5381 = vmatmul.mubr.bf16.gmra.mrb[0].mxu0 %v5334
        %v5382 = vpop.f32.mrb[0].mxu0
        %v5383 = vadd.f32 0.0, %v5382
        %v5384 = vpop.f32.mrb[0].mxu0
        %v5385 = vpop.f32.mrb[0].mxu0
        %v5386 = vadd.f32 0.0, %v5385
        %v5387 = vpop.f32.mrb[0].mxu0
        %5388 = vmatprep.mubr.bf16.mxu0 0
        %5389 = vmatmul.mubr.bf16.gmra.mrb[0].mxu0 %v5337
        %v5390 = vpop.f32.mrb[0].mxu0
        %v5391 = vadd.f32 0.0, %v5390
        %v5392 = vpop.f32.mrb[0].mxu0
        %v5393 = vpop.f32.mrb[0].mxu0
        %v5394 = vadd.f32 0.0, %v5393
        %v5395 = vpop.f32.mrb[0].mxu0
        %5396 = vmatprep.mubr.bf16.mxu0 0
        %5397 = vmatmul.mubr.bf16.gmra.mrb[0].mxu0 %v5340
        %v5398 = vpop.f32.mrb[0].mxu0
        %v5399 = vadd.f32 0.0, %v5398
        %v5400 = vpop.f32.mrb[0].mxu0
        %v5401 = vpop.f32.mrb[0].mxu0
        %v5402 = vadd.f32 0.0, %v5401
        %v5403 = vpop.f32.mrb[0].mxu0
        %5404 = vmatprep.mubr.bf16.mxu0 0
        %5405 = vmatmul.mubr.bf16.gmra.mrb[0].mxu0 %v5343
        %v5406 = vpop.f32.mrb[0].mxu0
        %v5407 = vadd.f32 0.0, %v5406
        %v5408 = vpop.f32.mrb[0].mxu0
        %v5409 = vpop.f32.mrb[0].mxu0
        %v5410 = vadd.f32 0.0, %v5409
        %v5411 = vpop.f32.mrb[0].mxu0
        %5412 = vdwg.mxu0
        %v5413 = vadd.f32 %v5305, %v5383
        %v5414 = vadd.f32 %v5306, %v5386
        %v5415 = vadd.f32 %v5307, %v5391
        %v5416 = vadd.f32 %v5308, %v5394
        %v5417 = vadd.f32 %v5309, %v5399
        %v5418 = vadd.f32 %v5310, %v5402
        %v5419 = vadd.f32 %v5311, %v5407
        %v5420 = vadd.f32 %v5312, %v5410
        %5421 = vst.msk [vmem:[#allocation3] sm:$0xff] %vm414, %v5413
        %5422 = vst.msk [vmem:[#allocation3 + $0x8] sm:$0xff] %vm414, %v5414
        %5423 = vst.msk [vmem:[#allocation3 + $0x10] sm:$0xff] %vm414, %v5415
        %5424 = vst.msk [vmem:[#allocation3 + $0x18] sm:$0xff] %vm414, %v5416
        %5425 = vst.msk [vmem:[#allocation3 + $0x20] sm:$0xff] %vm414, %v5417
        %5426 = vst.msk [vmem:[#allocation3 + $0x28] sm:$0xff] %vm414, %v5418
        %5427 = vst.msk [vmem:[#allocation3 + $0x30] sm:$0xff] %vm414, %v5419
        %5428 = vst.msk [vmem:[#allocation3 + $0x38] sm:$0xff] %vm414, %v5420
        %v5429 = vld [vmem:[#allocation3] sm:$0xff]
        %v5430 = vld [vmem:[#allocation3 + $0x8] sm:$0xff]
        %v5431 = vld [vmem:[#allocation3 + $0x10] sm:$0xff]
        %v5432 = vld [vmem:[#allocation3 + $0x18] sm:$0xff]
        %v5433 = vld [vmem:[#allocation3 + $0x20] sm:$0xff]
        %v5434 = vld [vmem:[#allocation3 + $0x28] sm:$0xff]
        %v5435 = vld [vmem:[#allocation3 + $0x30] sm:$0xff]
        %v5436 = vld [vmem:[#allocation3 + $0x38] sm:$0xff]
        %v5437 = vld [vmem:[#allocation15] sm:$0x1]
        %v5439 = vlaneseq
        %v5440 = vshrl.u32 %v5439, 7
        %v5441 = vsub.s32 0, %v5440
        %v5442 = vrot.slane %v5437, %v5441
        %v5444 = vadd.f32 %v5429, %v5442
        %v5445 = vadd.f32 %v5430, %v5442
        %v5446 = vadd.f32 %v5431, %v5442
        %v5447 = vadd.f32 %v5432, %v5442
        %v5448 = vadd.f32 %v5433, %v5442
        %v5449 = vadd.f32 %v5434, %v5442
        %v5450 = vadd.f32 %v5435, %v5442
        %v5451 = vadd.f32 %v5436, %v5442
        %v5452 = vxor.u32 %v5444, 2147483648
        %v5453 = vxor.u32 %v5445, 2147483648
        %v5454 = vxor.u32 %v5446, 2147483648
        %v5455 = vxor.u32 %v5447, 2147483648
        %v5456 = vxor.u32 %v5448, 2147483648
        %v5457 = vxor.u32 %v5449, 2147483648
        %v5458 = vxor.u32 %v5450, 2147483648
        %v5459 = vxor.u32 %v5451, 2147483648
        %v5460 = vmul.f32 %v5452, 1.442695
        %v5461 = vpow.pop %v5460
        %v5462 = vmul.f32 %v5453, 1.442695
        %v5463 = vpow.pop %v5462
        %v5464 = vmul.f32 %v5454, 1.442695
        %v5465 = vpow.pop %v5464
        %v5466 = vmul.f32 %v5455, 1.442695
        %v5467 = vpow.pop %v5466
        %v5468 = vmul.f32 %v5456, 1.442695
        %v5469 = vpow.pop %v5468
        %v5470 = vmul.f32 %v5457, 1.442695
        %v5471 = vpow.pop %v5470
        %v5472 = vmul.f32 %v5458, 1.442695
        %v5473 = vpow.pop %v5472
        %v5474 = vmul.f32 %v5459, 1.442695
        %v5475 = vpow.pop %v5474
        %v5476 = vadd.f32 %v5461, 1.0
        %v5477 = vadd.f32 %v5463, 1.0
        %v5478 = vadd.f32 %v5465, 1.0
        %v5479 = vadd.f32 %v5467, 1.0
        %v5480 = vadd.f32 %v5469, 1.0
        %v5481 = vadd.f32 %v5471, 1.0
        %v5482 = vadd.f32 %v5473, 1.0
        %v5483 = vadd.f32 %v5475, 1.0
        %v5484 = vrcp.pop %v5476
        %v5485 = vmul.f32 1.0, %v5484
        %v5486 = vrcp.pop %v5477
        %v5487 = vmul.f32 1.0, %v5486
        %v5488 = vrcp.pop %v5478
        %v5489 = vmul.f32 1.0, %v5488
        %v5490 = vrcp.pop %v5479
        %v5491 = vmul.f32 1.0, %v5490
        %v5492 = vrcp.pop %v5480
        %v5493 = vmul.f32 1.0, %v5492
        %v5494 = vrcp.pop %v5481
        %v5495 = vmul.f32 1.0, %v5494
        %v5496 = vrcp.pop %v5482
        %v5497 = vmul.f32 1.0, %v5496
        %v5498 = vrcp.pop %v5483
        %v5499 = vmul.f32 1.0, %v5498
        %v5500 = vmul.f32 %v5444, %v5485
        %v5501 = vmul.f32 %v5445, %v5487
        %v5502 = vmul.f32 %v5446, %v5489
        %v5503 = vmul.f32 %v5447, %v5491
        %v5504 = vmul.f32 %v5448, %v5493
        %v5505 = vmul.f32 %v5449, %v5495
        %v5506 = vmul.f32 %v5450, %v5497
        %v5507 = vmul.f32 %v5451, %v5499
        %5508 = vst.msk [vmem:[%s404] sm:$0xff] %vm414, %v2202
        %5509 = vst.msk [vmem:[%s404 + $0x8] sm:$0xff] %vm414, %v2203
        %5510 = vst.msk [vmem:[%s404 + $0x10] sm:$0xff] %vm414, %v2204
        %5511 = vst.msk [vmem:[%s404 + $0x18] sm:$0xff] %vm414, %v2205
        %5512 = vst.msk [vmem:[%s404 + $0x20] sm:$0xff] %vm414, %v2206
        %5513 = vst.msk [vmem:[%s404 + $0x28] sm:$0xff] %vm414, %v2207
        %5514 = vst.msk [vmem:[%s404 + $0x30] sm:$0xff] %vm414, %v2208
        %5515 = vst.msk [vmem:[%s404 + $0x38] sm:$0xff] %vm414, %v2209
        %5516 = vst.msk [vmem:[%s411] sm:$0xff] %vm414, %v5500
        %5517 = vst.msk [vmem:[%s411 + $0x8] sm:$0xff] %vm414, %v5501
        %5518 = vst.msk [vmem:[%s411 + $0x10] sm:$0xff] %vm414, %v5502
        %5519 = vst.msk [vmem:[%s411 + $0x18] sm:$0xff] %vm414, %v5503
        %5520 = vst.msk [vmem:[%s411 + $0x20] sm:$0xff] %vm414, %v5504
        %5521 = vst.msk [vmem:[%s411 + $0x28] sm:$0xff] %vm414, %v5505
        %5522 = vst.msk [vmem:[%s411 + $0x30] sm:$0xff] %vm414, %v5506
        %5523 = vst.msk [vmem:[%s411 + $0x38] sm:$0xff] %vm414, %v5507
        %s5524 = sand.u32 %s192, 1
        %s5525 = scalar_lea.sflag [#allocation6], %s5524
        %s5526 = sand.u32 %s192, 1
        %s5527 = smul.addr %s5526, 64
        %s5528 = scalar_lea.vmem [#allocation16], %s5527
        %s5529 = sand.u32 %s218, 1
        %s5530 = scalar_lea.sflag [#allocation18], %s5529
        %s5531 = sand.u32 %s218, 1
        %s5532 = smul.addr %s5531, 64
        %s5533 = scalar_lea.vmem [#allocation17], %s5532
        // Predicated region
        $region77: #{tpu_custom_call.1} parent=47 // pred_check
          %p5534 = pneg %p202
        $region78: #{tpu_custom_call.1} parent=47 // pred_check_branch
          %5536 = sbr.rel (%p5534) target = $region80
        $region79: #{tpu_custom_call.1} parent=47 // pred_region
          %s5538 = ssub.s32 1024, 1024
          %5539 = vsyncadd %s5525, %s5538
          %s5540 = smul.addr %s32, 8
          %s5541 = smul.addr %s5540, 128
          %s5542 = scalar_lea.hbm %s7, %s5541
          %s5543 = sshll.u32 %s5528, 4
          %s5544 = int_to_ptr.vmem [resolvable:$true] %s5543
          %5549 = dma.vmem_to_hbm [thread:$0]  %s5544, 1024, %s5542, %s5525, 128, 128, 8
        $region80: #{tpu_custom_call.1} parent=47 // pred_fallthru
          _
        // Predicated region
        $region81: #{tpu_custom_call.1} parent=47 // pred_check
          %p5550 = pneg %p228
        $region82: #{tpu_custom_call.1} parent=47 // pred_check_branch
          %5552 = sbr.rel (%p5550) target = $region84
        $region83: #{tpu_custom_call.1} parent=47 // pred_region
          %s5554 = ssub.s32 1024, 1024
          %5555 = vsyncadd %s5530, %s5554
          %s5556 = smul.addr %s32, 8
          %s5557 = smul.addr %s5556, 128
          %s5558 = scalar_lea.hbm %s8, %s5557
          %s5559 = sshll.u32 %s5533, 4
          %s5560 = int_to_ptr.vmem [resolvable:$true] %s5559
          %5565 = dma.vmem_to_hbm [thread:$0]  %s5560, 1024, %s5558, %s5530, 128, 128, 8
        $region84: #{tpu_custom_call.1} parent=47 // pred_fallthru
          _
      $region48: #{tpu_custom_call.1} parent=5 // pred_fallthru
        _
      %p5566 = scmp.le.s32.totalorder 2, %s27
      // Predicated region
      $region85: #{tpu_custom_call.1} parent=5 // pred_check
        %p5567 = pneg %p5566
      $region86: #{tpu_custom_call.1} parent=5 // pred_check_branch
        %5569 = sbr.rel (%p5567) target = $region88
      $region87: #{tpu_custom_call.1} parent=5 // pred_region
        %s5570 = ssub.s32 %s27, 2
        // Predicated region
        $region89: #{tpu_custom_call.1} parent=87 // pred_check
          %p5571 = pneg %p208
        $region90: #{tpu_custom_call.1} parent=87 // pred_check_branch
          %5573 = sbr.rel (%p5571) target = $region92
        $region91: #{tpu_custom_call.1} parent=87 // pred_region
          %s5574 = sand.u32 %s193, 1
          %s5575 = scalar_lea.sflag [#allocation6], %s5574
          %s5576 = sand.u32 %s193, 1
          %s5577 = smul.addr %s5576, 64
          %s5578 = scalar_lea.vmem [#allocation16], %s5577
          %5579 = dma.done %s5575, 1024
        $region92: #{tpu_custom_call.1} parent=87 // pred_fallthru
          _
        // Predicated region
        $region93: #{tpu_custom_call.1} parent=87 // pred_check
          %p5580 = pneg %p234
        $region94: #{tpu_custom_call.1} parent=87 // pred_check_branch
          %5582 = sbr.rel (%p5580) target = $region96
        $region95: #{tpu_custom_call.1} parent=87 // pred_region
          %s5583 = sand.u32 %s219, 1
          %s5584 = scalar_lea.sflag [#allocation18], %s5583
          %s5585 = sand.u32 %s219, 1
          %s5586 = smul.addr %s5585, 64
          %s5587 = scalar_lea.vmem [#allocation17], %s5586
          %5588 = dma.done %s5584, 1024
        $region96: #{tpu_custom_call.1} parent=87 // pred_fallthru
          _
      $region88: #{tpu_custom_call.1} parent=5 // pred_fallthru
        _
    $region6: #{tpu_custom_call.1} parent=1 // loop_footer
      %s31 = sadd.s32 1, %s27
    $region7: #{tpu_custom_call.1} parent=1 // loop_footer_branch
      %26 = sbr.rel target = $region3
    $region8: #{tpu_custom_call.1} parent=1 // loop_exit
      _
    %5589 = vsyncpa [#allocation5], 1
    %s5590 = scalar_lea.sflag [#allocation5], 1
    %5591 = vsyncpa %s5590, 1
    %5592 = vsyncpa [#allocation8], 1
    %5593 = vsyncpa [#allocation11], 1
    %5594 = vsyncpa [#allocation14], 1
    %5595 = vsyncpa [#allocation6], 1
    %s5596 = scalar_lea.sflag [#allocation6], 1
    %5597 = vsyncpa %s5596, 1
    %5598 = vsyncpa [#allocation18], 1
    %s5599 = scalar_lea.sflag [#allocation18], 1
    %5600 = vsyncpa %s5599, 1

</llo_original>
